<compile_context>
chip_gen: v7x
topology: tpu7x:2x2x1
jax: 0.10.0
libtpu: 0.0.40
codegen_flags: <defaults>
</compile_context>

<pallas_src>
import functools
import math

import jax
import jax.numpy as jnp
from jax import lax
from jax.experimental import pallas as pl
from jax.experimental.pallas import tpu as pltpu


def _ceil_to(x, m):
    return -(-x // m) * m


# ----------------------------- Pallas kernel --------------------------------
def _conv4d_kernel(a_ref, w_ref, b_ref, o_ref, *, K0, O0, s0, N1):
    """One grid step = one batch element.

    a_ref : (P0, Kc, N1)    inner-im2col'ed input, bf16.
                            Kc = Cin*K1*K2*K3, N1 = O1*O2*O3 (lane-dense).
    w_ref : (K0, Cout, Kc)  full weight slab (grid-invariant), bf16.
    b_ref : (Cout, 1)       bias, f32 (grid-invariant).
    o_ref : (Cout, O0*N1)   output block for this batch, final layout.
    """
    bias = b_ref[...]                                    # (Cout, 1) f32
    # Hoist the tiny per-tap weight loads out of the position loop.
    ws = [w_ref[k0] for k0 in range(K0)]                 # K0 x (Cout, Kc)

    # O0*K0 matmuls total (12 at the test shape).  The K0-tap accumulation is
    # kept in registers (Cout x N1 f32 = 8 vregs); each output row-block is
    # stored once, full-sublane and lane-aligned (unmasked vst).
    # Note: M = Cout = 8 is inherently small for the MXU; K = 108 / N = 1024
    # is the best contraction shape available without further HBM expansion.
    for o0 in range(O0):
        acc = None
        for k0 in range(K0):
            rhs = a_ref[o0 * s0 + k0]                    # (Kc, N1) bf16
            part = jnp.dot(ws[k0], rhs,
                           preferred_element_type=jnp.float32)  # (Cout, N1)
            acc = part if acc is None else acc + part
        o_ref[:, pl.ds(o0 * N1, N1)] = (acc + bias).astype(o_ref.dtype)


# ------------------------------ wrapper --------------------------------------
def conv4d_pallas(x, weight, bias, stride, padding, *,
                  compute_dtype=jnp.bfloat16):
    """Equivalent of convNd.forward for num_dims=4, rank=0, non-transposed,
    groups=1, dilation=1, padding_mode='zeros'."""
    B, Cin, D0, D1, D2, D3 = x.shape
    Cout = weight.shape[0]
    K0, K1, K2, K3 = weight.shape[2:]
    s = tuple(stride)
    p = tuple(padding)
    D = (D0, D1, D2, D3)
    Ksz = (K0, K1, K2, K3)
    O = tuple((D[i] + 2 * p[i] - Ksz[i]) // s[i] + 1 for i in range(4))
    P = tuple(D[i] + 2 * p[i] for i in range(4))

    # ---- prologue: bf16 before any expansion, transpose before slicing. ----
    xb = x.astype(compute_dtype)
    xp = jnp.pad(xb, ((0, 0), (0, 0),
                      (p[0], p[0]), (p[1], p[1]), (p[2], p[2]), (p[3], p[3])))
    # (B, Cin, P0, P1, P2, P3) -> (B, P0, Cin, P1, P2, P3)  (cheap, pre-expansion)
    xpt = jnp.transpose(xp, (0, 2, 1, 3, 4, 5))

    # im2col over the three inner kernel dims (k1, k2, k3); the output
    # positions (o1, o2, o3) form the lane-dense last dim.
    cols = []
    for k1 in range(K1):
        for k2 in range(K2):
            for k3 in range(K3):
                cols.append(
                    xpt[:, :, :,
                        k1:k1 + (O[1] - 1) * s[1] + 1:s[1],
                        k2:k2 + (O[2] - 1) * s[2] + 1:s[2],
                        k3:k3 + (O[3] - 1) * s[3] + 1:s[3]])  # (B,P0,Cin,O1,O2,O3)
    K123 = K1 * K2 * K3
    Kc = Cin * K123                  # folded contraction depth (108 here)
    N1 = O[1] * O[2] * O[3]          # lane dim per matmul (1024 here)
    A = jnp.stack(cols, axis=3)                      # (B,P0,Cin,K123,O1,O2,O3)
    A = A.reshape(B, P[0], Kc, N1)                   # free row-major merge

    # weight (Cout,Cin,K0,K1,K2,K3) -> (K0, Cout, Cin*K1*K2*K3); the
    # (Cin,K1,K2,K3) contraction order matches A's Kc order.
    W2 = jnp.transpose(weight, (2, 0, 1, 3, 4, 5)).reshape(K0, Cout, Kc)
    W2 = W2.astype(compute_dtype)
    bias2 = bias.astype(jnp.float32).reshape(Cout, 1)

    out_dtype = x.dtype
    ON1 = O[0] * N1

    kernel = functools.partial(_conv4d_kernel, K0=K0, O0=O[0], s0=s[0], N1=N1)

    # VMEM budget derived from the actual (tile-padded) block sizes; streamed
    # per-batch blocks are double-buffered by the pipeline.
    a_blk = P[0] * _ceil_to(Kc, 16) * _ceil_to(N1, 128) * 2      # bf16
    w_blk = K0 * _ceil_to(Cout, 16) * _ceil_to(Kc, 128) * 2      # bf16
    b_blk = _ceil_to(Cout, 8) * 128 * 4                          # f32
    o_blk = _ceil_to(Cout, 8) * _ceil_to(ON1, 128) * 4           # f32
    vmem_needed = 2 * (a_blk + o_blk) + w_blk + b_blk
    vmem_limit = int(min(max(2 * vmem_needed, 16 * 1024 * 1024),
                         48 * 1024 * 1024))
    # TODO(synk): for large spatial volumes add a lane-tiling grid axis over
    # N1 (multiples of 128), re-derive the blocks for v7x's 64 MiB VMEM, and
    # mark it "parallel" so B=1 still feeds both v7x TensorCores.

    flops = 2 * B * O[0] * K0 * Cout * Kc * N1
    bytes_accessed = int(A.size * A.dtype.itemsize
                         + W2.size * W2.dtype.itemsize
                         + bias2.size * bias2.dtype.itemsize
                         + B * Cout * ON1 * jnp.dtype(out_dtype).itemsize)

    out = pl.pallas_call(
        kernel,
        out_shape=jax.ShapeDtypeStruct((B, Cout, ON1), out_dtype),
        grid_spec=pltpu.PrefetchScalarGridSpec(
            num_scalar_prefetch=0,
            grid=(B,),
            in_specs=[
                # per-batch inner-im2col block (one DMA per grid step)
                pl.BlockSpec((None, P[0], Kc, N1), lambda b: (b, 0, 0, 0)),
                # full weight slab, grid-invariant (~5 KB bf16)
                pl.BlockSpec((K0, Cout, Kc), lambda b: (0, 0, 0)),
                # bias, grid-invariant
                pl.BlockSpec((Cout, 1), lambda b: (0, 0)),
            ],
            out_specs=pl.BlockSpec((None, Cout, ON1), lambda b: (b, 0, 0)),
        ),
        compiler_params=pltpu.CompilerParams(
            dimension_semantics=("parallel",),   # batch across v7x's 2 TCs
            vmem_limit_bytes=vmem_limit,
        ),
        cost_estimate=pl.CostEstimate(
            flops=flops, transcendentals=0, bytes_accessed=bytes_accessed),
    )(A, W2, bias2)

    # Free row-major split: (B, Cout, O0*O1*O2*O3) -> (B, Cout, O0, O1, O2, O3)
    return out.reshape(B, Cout, O[0], O[1], O[2], O[3])


# --------------------------- pure-JAX reference ------------------------------
def conv4d_ref(x, weight, bias, stride, padding):
    B, Cin = x.shape[:2]
    Cout = weight.shape[0]
    K0, K1, K2, K3 = weight.shape[2:]
    s = tuple(stride)
    p = tuple(padding)
    D = x.shape[2:]
    Ksz = (K0, K1, K2, K3)
    O = tuple((D[i] + 2 * p[i] - Ksz[i]) // s[i] + 1 for i in range(4))
    xp = jnp.pad(
        x, ((0, 0), (0, 0), (p[0], p[0]), (p[1], p[1]), (p[2], p[2]), (p[3], p[3])))
    out = jnp.zeros((B, Cout) + O, dtype=jnp.float32)
    for k0 in range(K0):
        for k1 in range(K1):
            for k2 in range(K2):
                for k3 in range(K3):
                    sl = xp[:, :,
                            k0:k0 + (O[0] - 1) * s[0] + 1:s[0],
                            k1:k1 + (O[1] - 1) * s[1] + 1:s[1],
                            k2:k2 + (O[2] - 1) * s[2] + 1:s[2],
                            k3:k3 + (O[3] - 1) * s[3] + 1:s[3]]
                    out = out + jnp.einsum(
                        'bcxyzw,oc->boxyzw', sl,
                        weight[:, :, k0, k1, k2, k3],
                        precision=lax.Precision.HIGHEST)
    out = out + bias[None, :, None, None, None, None]
    return out.astype(x.dtype)


# ---------------------------------- main --------------------------------------
if __name__ == "__main__":
    # TODO(synk): is_transposed=True / padding_mode != 'zeros' / groups > 1 /
    # dilation != 1 branches of convNd are not implemented here.
    B, Cin, Cout = 2, 4, 8
    spatial = (4, 4, 16, 16)          # inner O1*O2*O3 = 1024 -> lane-dense matmuls
    kernel_size = (3, 3, 3, 3)
    stride = (1, 1, 1, 1)
    padding = (1, 1, 1, 1)

    key = jax.random.PRNGKey(0)
    kx, kw, kb = jax.random.split(key, 3)

    x = jax.random.normal(kx, (B, Cin) + spatial, dtype=jnp.float32)

    # convNd default init: uniform(-k, k), k = 1/sqrt(Cin * prod(kernel_size)).
    k = 1.0 / math.sqrt(Cin * math.prod(kernel_size))
    weight = jax.random.uniform(
        kw, (Cout, Cin) + kernel_size, minval=-k, maxval=k, dtype=jnp.float32)
    bias = jax.random.uniform(kb, (Cout,), minval=-k, maxval=k, dtype=jnp.float32)

    conv = jax.jit(functools.partial(conv4d_pallas, stride=stride, padding=padding))
    out = jax.block_until_ready(conv(x, weight, bias))

    # Reference on bf16-rounded operands (the kernel feeds the MXU bf16 inputs
    # with f32 accumulation), computed in full-precision f32.
    xq = x.astype(jnp.bfloat16).astype(jnp.float32)
    wq = weight.astype(jnp.bfloat16).astype(jnp.float32)
    ref_fn = jax.jit(functools.partial(conv4d_ref, stride=stride, padding=padding))
    ref = jax.block_until_ready(ref_fn(xq, wq, bias))

    assert out.shape == (B, Cout) + spatial, out.shape
    max_err = float(jnp.max(jnp.abs(out - ref)))
    assert jnp.allclose(out, ref, rtol=1e-3, atol=1e-3), max_err

    print("KERNEL_OK")
</pallas_src>

<mosaic_0001>
module attributes {stable_mosaic.version = 11 : i64} {
  func.func @_conv4d_kernel(%arg0: i32, %arg1: memref<1x6x108x1024xbf16, #tpu.memory_space<vmem>>, %arg2: memref<3x8x108xbf16, #tpu.memory_space<vmem>>, %arg3: memref<8x1xf32, #tpu.memory_space<vmem>>, %arg4: memref<1x8x4096xf32, #tpu.memory_space<vmem>>) attributes {dimension_semantics = [#tpu.dimension_semantics<parallel>], iteration_bounds = array<i64: 2>, scalar_prefetch = 0 : i64, scratch_operands = 0 : i64, tpu.core_type = #tpu.core_type<tc>, window_params = [{transform_indices = @transform_0, window_bounds = array<i64: 1, 6, 108, 1024>}, {pipeline_mode = #tpu.pipeline_mode<synchronous>, transform_indices = @transform_1, window_bounds = array<i64: 3, 8, 108>}, {pipeline_mode = #tpu.pipeline_mode<synchronous>, transform_indices = @transform_2, window_bounds = array<i64: 8, 1>}, {transform_indices = @transform_3, window_bounds = array<i64: 1, 8, 4096>}]} {
    %c0 = arith.constant 0 : index
    %c0_0 = arith.constant 0 : index
    %0 = vector.load %arg3[%c0, %c0_0] : memref<8x1xf32, #tpu.memory_space<vmem>>, vector<8x1xf32>
    %c0_1 = arith.constant 0 : index
    %c0_2 = arith.constant 0 : index
    %c0_3 = arith.constant 0 : index
    %1 = vector.load %arg2[%c0_1, %c0_2, %c0_3] : memref<3x8x108xbf16, #tpu.memory_space<vmem>>, vector<1x8x108xbf16>
    %2 = vector.shape_cast %1 : vector<1x8x108xbf16> to vector<8x108xbf16>
    %c1 = arith.constant 1 : index
    %c0_4 = arith.constant 0 : index
    %c0_5 = arith.constant 0 : index
    %3 = vector.load %arg2[%c1, %c0_4, %c0_5] : memref<3x8x108xbf16, #tpu.memory_space<vmem>>, vector<1x8x108xbf16>
    %4 = vector.shape_cast %3 : vector<1x8x108xbf16> to vector<8x108xbf16>
    %c2 = arith.constant 2 : index
    %c0_6 = arith.constant 0 : index
    %c0_7 = arith.constant 0 : index
    %5 = vector.load %arg2[%c2, %c0_6, %c0_7] : memref<3x8x108xbf16, #tpu.memory_space<vmem>>, vector<1x8x108xbf16>
    %6 = vector.shape_cast %5 : vector<1x8x108xbf16> to vector<8x108xbf16>
    %c0_8 = arith.constant 0 : index
    %c0_9 = arith.constant 0 : index
    %c0_10 = arith.constant 0 : index
    %c0_11 = arith.constant 0 : index
    %7 = vector.load %arg1[%c0_8, %c0_9, %c0_10, %c0_11] : memref<1x6x108x1024xbf16, #tpu.memory_space<vmem>>, vector<1x1x108x1024xbf16>
    %8 = vector.shape_cast %7 : vector<1x1x108x1024xbf16> to vector<108x1024xbf16>
    %cst = arith.constant dense<0.000000e+00> : vector<8x1024xf32>
    %9 = tpu.matmul %2, %8, %cst {dimension_numbers = #tpu.dot_dimension_numbers<[1], [0], [0], [1], [0, 0, 1, 1], [], []>} : vector<8x108xbf16>, vector<108x1024xbf16>, vector<8x1024xf32> -> vector<8x1024xf32>
    %c0_12 = arith.constant 0 : index
    %c1_13 = arith.constant 1 : index
    %c0_14 = arith.constant 0 : index
    %c0_15 = arith.constant 0 : index
    %10 = vector.load %arg1[%c0_12, %c1_13, %c0_14, %c0_15] : memref<1x6x108x1024xbf16, #tpu.memory_space<vmem>>, vector<1x1x108x1024xbf16>
    %11 = vector.shape_cast %10 : vector<1x1x108x1024xbf16> to vector<108x1024xbf16>
    %cst_16 = arith.constant dense<0.000000e+00> : vector<8x1024xf32>
    %12 = tpu.matmul %4, %11, %cst_16 {dimension_numbers = #tpu.dot_dimension_numbers<[1], [0], [0], [1], [0, 0, 1, 1], [], []>} : vector<8x108xbf16>, vector<108x1024xbf16>, vector<8x1024xf32> -> vector<8x1024xf32>
    %13 = arith.addf %9, %12 : vector<8x1024xf32>
    %c0_17 = arith.constant 0 : index
    %c2_18 = arith.constant 2 : index
    %c0_19 = arith.constant 0 : index
    %c0_20 = arith.constant 0 : index
    %14 = vector.load %arg1[%c0_17, %c2_18, %c0_19, %c0_20] : memref<1x6x108x1024xbf16, #tpu.memory_space<vmem>>, vector<1x1x108x1024xbf16>
    %15 = vector.shape_cast %14 : vector<1x1x108x1024xbf16> to vector<108x1024xbf16>
    %cst_21 = arith.constant dense<0.000000e+00> : vector<8x1024xf32>
    %16 = tpu.matmul %6, %15, %cst_21 {dimension_numbers = #tpu.dot_dimension_numbers<[1], [0], [0], [1], [0, 0, 1, 1], [], []>} : vector<8x108xbf16>, vector<108x1024xbf16>, vector<8x1024xf32> -> vector<8x1024xf32>
    %17 = arith.addf %13, %16 : vector<8x1024xf32>
    %18 = vector.broadcast %0 : vector<8x1xf32> to vector<8x1024xf32>
    %19 = arith.addf %17, %18 : vector<8x1024xf32>
    %c0_22 = arith.constant 0 : index
    %c0_23 = arith.constant 0 : index
    %c0_24 = arith.constant 0 : index
    %20 = vector.load %arg4[%c0_22, %c0_23, %c0_24] : memref<1x8x4096xf32, #tpu.memory_space<vmem>>, vector<1x8x1024xf32>
    %21 = vector.shape_cast %20 : vector<1x8x1024xf32> to vector<8x1024xf32>
    %22 = vector.shape_cast %19 : vector<8x1024xf32> to vector<1x8x1024xf32>
    tpu.vector_store %arg4[%c0_22, %c0_23, %c0_24], %22 {strides = array<i32>} : memref<1x8x4096xf32, #tpu.memory_space<vmem>>, vector<1x8x1024xf32>,
    %c0_25 = arith.constant 0 : index
    %c1_26 = arith.constant 1 : index
    %c0_27 = arith.constant 0 : index
    %c0_28 = arith.constant 0 : index
    %23 = vector.load %arg1[%c0_25, %c1_26, %c0_27, %c0_28] : memref<1x6x108x1024xbf16, #tpu.memory_space<vmem>>, vector<1x1x108x1024xbf16>
    %24 = vector.shape_cast %23 : vector<1x1x108x1024xbf16> to vector<108x1024xbf16>
    %cst_29 = arith.constant dense<0.000000e+00> : vector<8x1024xf32>
    %25 = tpu.matmul %2, %24, %cst_29 {dimension_numbers = #tpu.dot_dimension_numbers<[1], [0], [0], [1], [0, 0, 1, 1], [], []>} : vector<8x108xbf16>, vector<108x1024xbf16>, vector<8x1024xf32> -> vector<8x1024xf32>
    %c0_30 = arith.constant 0 : index
    %c2_31 = arith.constant 2 : index
    %c0_32 = arith.constant 0 : index
    %c0_33 = arith.constant 0 : index
    %26 = vector.load %arg1[%c0_30, %c2_31, %c0_32, %c0_33] : memref<1x6x108x1024xbf16, #tpu.memory_space<vmem>>, vector<1x1x108x1024xbf16>
    %27 = vector.shape_cast %26 : vector<1x1x108x1024xbf16> to vector<108x1024xbf16>
    %cst_34 = arith.constant dense<0.000000e+00> : vector<8x1024xf32>
    %28 = tpu.matmul %4, %27, %cst_34 {dimension_numbers = #tpu.dot_dimension_numbers<[1], [0], [0], [1], [0, 0, 1, 1], [], []>} : vector<8x108xbf16>, vector<108x1024xbf16>, vector<8x1024xf32> -> vector<8x1024xf32>
    %29 = arith.addf %25, %28 : vector<8x1024xf32>
    %c0_35 = arith.constant 0 : index
    %c3 = arith.constant 3 : index
    %c0_36 = arith.constant 0 : index
    %c0_37 = arith.constant 0 : index
    %30 = vector.load %arg1[%c0_35, %c3, %c0_36, %c0_37] : memref<1x6x108x1024xbf16, #tpu.memory_space<vmem>>, vector<1x1x108x1024xbf16>
    %31 = vector.shape_cast %30 : vector<1x1x108x1024xbf16> to vector<108x1024xbf16>
    %cst_38 = arith.constant dense<0.000000e+00> : vector<8x1024xf32>
    %32 = tpu.matmul %6, %31, %cst_38 {dimension_numbers = #tpu.dot_dimension_numbers<[1], [0], [0], [1], [0, 0, 1, 1], [], []>} : vector<8x108xbf16>, vector<108x1024xbf16>, vector<8x1024xf32> -> vector<8x1024xf32>
    %33 = arith.addf %29, %32 : vector<8x1024xf32>
    %34 = vector.broadcast %0 : vector<8x1xf32> to vector<8x1024xf32>
    %35 = arith.addf %33, %34 : vector<8x1024xf32>
    %c0_39 = arith.constant 0 : index
    %c0_40 = arith.constant 0 : index
    %c1024 = arith.constant 1024 : index
    %36 = vector.load %arg4[%c0_39, %c0_40, %c1024] : memref<1x8x4096xf32, #tpu.memory_space<vmem>>, vector<1x8x1024xf32>
    %37 = vector.shape_cast %36 : vector<1x8x1024xf32> to vector<8x1024xf32>
    %38 = vector.shape_cast %35 : vector<8x1024xf32> to vector<1x8x1024xf32>
    tpu.vector_store %arg4[%c0_39, %c0_40, %c1024], %38 {strides = array<i32>} : memref<1x8x4096xf32, #tpu.memory_space<vmem>>, vector<1x8x1024xf32>,
    %c0_41 = arith.constant 0 : index
    %c2_42 = arith.constant 2 : index
    %c0_43 = arith.constant 0 : index
    %c0_44 = arith.constant 0 : index
    %39 = vector.load %arg1[%c0_41, %c2_42, %c0_43, %c0_44] : memref<1x6x108x1024xbf16, #tpu.memory_space<vmem>>, vector<1x1x108x1024xbf16>
    %40 = vector.shape_cast %39 : vector<1x1x108x1024xbf16> to vector<108x1024xbf16>
    %cst_45 = arith.constant dense<0.000000e+00> : vector<8x1024xf32>
    %41 = tpu.matmul %2, %40, %cst_45 {dimension_numbers = #tpu.dot_dimension_numbers<[1], [0], [0], [1], [0, 0, 1, 1], [], []>} : vector<8x108xbf16>, vector<108x1024xbf16>, vector<8x1024xf32> -> vector<8x1024xf32>
    %c0_46 = arith.constant 0 : index
    %c3_47 = arith.constant 3 : index
    %c0_48 = arith.constant 0 : index
    %c0_49 = arith.constant 0 : index
    %42 = vector.load %arg1[%c0_46, %c3_47, %c0_48, %c0_49] : memref<1x6x108x1024xbf16, #tpu.memory_space<vmem>>, vector<1x1x108x1024xbf16>
    %43 = vector.shape_cast %42 : vector<1x1x108x1024xbf16> to vector<108x1024xbf16>
    %cst_50 = arith.constant dense<0.000000e+00> : vector<8x1024xf32>
    %44 = tpu.matmul %4, %43, %cst_50 {dimension_numbers = #tpu.dot_dimension_numbers<[1], [0], [0], [1], [0, 0, 1, 1], [], []>} : vector<8x108xbf16>, vector<108x1024xbf16>, vector<8x1024xf32> -> vector<8x1024xf32>
    %45 = arith.addf %41, %44 : vector<8x1024xf32>
    %c0_51 = arith.constant 0 : index
    %c4 = arith.constant 4 : index
    %c0_52 = arith.constant 0 : index
    %c0_53 = arith.constant 0 : index
    %46 = vector.load %arg1[%c0_51, %c4, %c0_52, %c0_53] : memref<1x6x108x1024xbf16, #tpu.memory_space<vmem>>, vector<1x1x108x1024xbf16>
    %47 = vector.shape_cast %46 : vector<1x1x108x1024xbf16> to vector<108x1024xbf16>
    %cst_54 = arith.constant dense<0.000000e+00> : vector<8x1024xf32>
    %48 = tpu.matmul %6, %47, %cst_54 {dimension_numbers = #tpu.dot_dimension_numbers<[1], [0], [0], [1], [0, 0, 1, 1], [], []>} : vector<8x108xbf16>, vector<108x1024xbf16>, vector<8x1024xf32> -> vector<8x1024xf32>
    %49 = arith.addf %45, %48 : vector<8x1024xf32>
    %50 = vector.broadcast %0 : vector<8x1xf32> to vector<8x1024xf32>
    %51 = arith.addf %49, %50 : vector<8x1024xf32>
    %c0_55 = arith.constant 0 : index
    %c0_56 = arith.constant 0 : index
    %c2048 = arith.constant 2048 : index
    %52 = vector.load %arg4[%c0_55, %c0_56, %c2048] : memref<1x8x4096xf32, #tpu.memory_space<vmem>>, vector<1x8x1024xf32>
    %53 = vector.shape_cast %52 : vector<1x8x1024xf32> to vector<8x1024xf32>
    %54 = vector.shape_cast %51 : vector<8x1024xf32> to vector<1x8x1024xf32>
    tpu.vector_store %arg4[%c0_55, %c0_56, %c2048], %54 {strides = array<i32>} : memref<1x8x4096xf32, #tpu.memory_space<vmem>>, vector<1x8x1024xf32>,
    %c0_57 = arith.constant 0 : index
    %c3_58 = arith.constant 3 : index
    %c0_59 = arith.constant 0 : index
    %c0_60 = arith.constant 0 : index
    %55 = vector.load %arg1[%c0_57, %c3_58, %c0_59, %c0_60] : memref<1x6x108x1024xbf16, #tpu.memory_space<vmem>>, vector<1x1x108x1024xbf16>
    %56 = vector.shape_cast %55 : vector<1x1x108x1024xbf16> to vector<108x1024xbf16>
    %cst_61 = arith.constant dense<0.000000e+00> : vector<8x1024xf32>
    %57 = tpu.matmul %2, %56, %cst_61 {dimension_numbers = #tpu.dot_dimension_numbers<[1], [0], [0], [1], [0, 0, 1, 1], [], []>} : vector<8x108xbf16>, vector<108x1024xbf16>, vector<8x1024xf32> -> vector<8x1024xf32>
    %c0_62 = arith.constant 0 : index
    %c4_63 = arith.constant 4 : index
    %c0_64 = arith.constant 0 : index
    %c0_65 = arith.constant 0 : index
    %58 = vector.load %arg1[%c0_62, %c4_63, %c0_64, %c0_65] : memref<1x6x108x1024xbf16, #tpu.memory_space<vmem>>, vector<1x1x108x1024xbf16>
    %59 = vector.shape_cast %58 : vector<1x1x108x1024xbf16> to vector<108x1024xbf16>
    %cst_66 = arith.constant dense<0.000000e+00> : vector<8x1024xf32>
    %60 = tpu.matmul %4, %59, %cst_66 {dimension_numbers = #tpu.dot_dimension_numbers<[1], [0], [0], [1], [0, 0, 1, 1], [], []>} : vector<8x108xbf16>, vector<108x1024xbf16>, vector<8x1024xf32> -> vector<8x1024xf32>
    %61 = arith.addf %57, %60 : vector<8x1024xf32>
    %c0_67 = arith.constant 0 : index
    %c5 = arith.constant 5 : index
    %c0_68 = arith.constant 0 : index
    %c0_69 = arith.constant 0 : index
    %62 = vector.load %arg1[%c0_67, %c5, %c0_68, %c0_69] : memref<1x6x108x1024xbf16, #tpu.memory_space<vmem>>, vector<1x1x108x1024xbf16>
    %63 = vector.shape_cast %62 : vector<1x1x108x1024xbf16> to vector<108x1024xbf16>
    %cst_70 = arith.constant dense<0.000000e+00> : vector<8x1024xf32>
    %64 = tpu.matmul %6, %63, %cst_70 {dimension_numbers = #tpu.dot_dimension_numbers<[1], [0], [0], [1], [0, 0, 1, 1], [], []>} : vector<8x108xbf16>, vector<108x1024xbf16>, vector<8x1024xf32> -> vector<8x1024xf32>
    %65 = arith.addf %61, %64 : vector<8x1024xf32>
    %66 = vector.broadcast %0 : vector<8x1xf32> to vector<8x1024xf32>
    %67 = arith.addf %65, %66 : vector<8x1024xf32>
    %c0_71 = arith.constant 0 : index
    %c0_72 = arith.constant 0 : index
    %c3072 = arith.constant 3072 : index
    %68 = vector.load %arg4[%c0_71, %c0_72, %c3072] : memref<1x8x4096xf32, #tpu.memory_space<vmem>>, vector<1x8x1024xf32>
    %69 = vector.shape_cast %68 : vector<1x8x1024xf32> to vector<8x1024xf32>
    %70 = vector.shape_cast %67 : vector<8x1024xf32> to vector<1x8x1024xf32>
    tpu.vector_store %arg4[%c0_71, %c0_72, %c3072], %70 {strides = array<i32>} : memref<1x8x4096xf32, #tpu.memory_space<vmem>>, vector<1x8x1024xf32>,
    return
  }
  func.func @transform_0(%arg0: i32) -> (i32, i32, i32, i32) {
    %c0_i32 = arith.constant 0 : i32
    %c0_i32_0 = arith.constant 0 : i32
    %c0_i32_1 = arith.constant 0 : i32
    %c0_i32_2 = arith.constant 0 : i32
    return %arg0, %c0_i32, %c0_i32_0, %c0_i32_1 : i32, i32, i32, i32
  }
  func.func @transform_1(%arg0: i32) -> (i32, i32, i32) {
    %c0_i32 = arith.constant 0 : i32
    %c0_i32_0 = arith.constant 0 : i32
    %c0_i32_1 = arith.constant 0 : i32
    %c0_i32_2 = arith.constant 0 : i32
    return %c0_i32, %c0_i32_0, %c0_i32_1 : i32, i32, i32
  }
  func.func @transform_2(%arg0: i32) -> (i32, i32) {
    %c0_i32 = arith.constant 0 : i32
    %c0_i32_0 = arith.constant 0 : i32
    %c0_i32_1 = arith.constant 0 : i32
    return %c0_i32, %c0_i32_0 : i32, i32
  }
  func.func @transform_3(%arg0: i32) -> (i32, i32, i32) {
    %c0_i32 = arith.constant 0 : i32
    %c0_i32_0 = arith.constant 0 : i32
    %c0_i32_1 = arith.constant 0 : i32
    return %arg0, %c0_i32, %c0_i32_0 : i32, i32, i32
  }
}

</mosaic_0001>

<llo_original>
// kernel: conv4d_pallas.1
$region0: #{conv4d_pallas.1}
  #allocation0 [shape = 'u32[]', space=smem, size = 0x4, offset = 0x4, fixed_abs, tag = 'smem constant byte address 0x4 - core index']
  #allocation1 [shape = 'u32[144,128]{1,0:T(1,128)}', space=vmem, size = 0x12000, scoped, tag = 'internal scratch']
  %s0 = inlined_call_operand.vmem [shape: bf16[2,6,108,1024], index: 0, kind: input, shape index: {}]
  %s1 = inlined_call_operand.vmem [shape: bf16[3,8,108], index: 1, kind: input, shape index: {}]
  %s2 = inlined_call_operand.vmem [shape: f32[8,1], index: 2, kind: input, shape index: {}]
  %s3 = inlined_call_operand.vmem [shape: f32[2,8,4096], index: 3, kind: output, shape index: {}]
  %s4 = sld [smem:[#allocation0]]
  $region45: #{conv4d_pallas.1} parent=0
    _
  %s6 = ssub.s32 1, %s4
  %s7 = scalar_select 0, %s6, %s4
  loop: start=0, step=1, limit=4
  $region2: #{conv4d_pallas.1} parent=0 // loop_pre_header
    _
  $region3: #{conv4d_pallas.1} parent=0 // loop_header
    %s9 = sphi 0, %s13
    %p10 = scmp.ge.s32.totalorder %s9, 4
    %s19 = sphi 0, %s21
    %s22 = sphi 0, %s19
    %s23 = sphi 0, %s22
    %s39 = sphi 0, %s23
    %s43 = sphi 0, %s43
    %s45 = sphi 0, %s43
    %s46 = sphi 0, %s45
    %s60 = sphi 0, %s46
    %s64 = sphi 0, %s64
    %s66 = sphi 0, %s64
    %s67 = sphi 0, %s66
    %s81 = sphi 0, %s67
    %s87 = sphi 0, %s89
    %s90 = sphi 0, %s87
    %s91 = sphi 0, %s90
    %s107 = sphi 0, %s91
  $region4: #{conv4d_pallas.1} parent=0 // loop_header_branch
    %12 = sbr.rel (%p10) target = $region8
  $region5: #{conv4d_pallas.1} parent=0 // loop_body
    %s14 = ssub.s32 %s9, 1
    %s15 = ssub.s32 %s9, 2
    %s16 = sadd.s32 %s9, 1
    %s17 = ssub.s32 %s9, %s16
    %p18 = scmp.eq.s32.totalorder %s17, 0
    %s20 = sadd.s32 %s19, 1
    %s21 = scalar_select %p18, %s19, %s20
    %p24 = pneg %p18
    %p25 = scmp.eq.s32.totalorder %s9, 1
    %p26 = por %p24, %p25
    %p27 = scmp.ne.s32.totalorder %s19, %s22
    %p28 = scmp.eq.s32.totalorder %s9, 0
    %p29 = por %p27, %p28
    %p30 = scmp.ne.s32.totalorder %s19, %s22
    %p31 = scmp.eq.s32.totalorder %s14, 1
    %p32 = por %p30, %p31
    %p33 = scmp.ne.s32.totalorder %s22, %s23
    %p34 = scmp.eq.s32.totalorder %s14, 0
    %p35 = por %p33, %p34
    %p36 = scmp.ne.s32.totalorder %s22, %s23
    %p37 = scmp.eq.s32.totalorder %s15, 1
    %p38 = por %p36, %p37
    %p40 = scmp.ne.s32.totalorder %s23, %s39
    %p41 = scmp.eq.s32.totalorder %s15, 0
    %p42 = por %p40, %p41
    %s44 = sadd.s32 %s43, 1
    %p47 = scmp.eq.s32.totalorder %s9, 1
    %p48 = scmp.ne.s32.totalorder %s43, %s45
    %p49 = scmp.eq.s32.totalorder %s9, 0
    %p50 = por %p48, %p49
    %p51 = scmp.ne.s32.totalorder %s43, %s45
    %p52 = scmp.eq.s32.totalorder %s14, 1
    %p53 = por %p51, %p52
    %p54 = scmp.ne.s32.totalorder %s45, %s46
    %p55 = scmp.eq.s32.totalorder %s14, 0
    %p56 = por %p54, %p55
    %p57 = scmp.ne.s32.totalorder %s45, %s46
    %p58 = scmp.eq.s32.totalorder %s15, 1
    %p59 = por %p57, %p58
    %p61 = scmp.ne.s32.totalorder %s46, %s60
    %p62 = scmp.eq.s32.totalorder %s15, 0
    %p63 = por %p61, %p62
    %s65 = sadd.s32 %s64, 1
    %p68 = scmp.eq.s32.totalorder %s9, 1
    %p69 = scmp.ne.s32.totalorder %s64, %s66
    %p70 = scmp.eq.s32.totalorder %s9, 0
    %p71 = por %p69, %p70
    %p72 = scmp.ne.s32.totalorder %s64, %s66
    %p73 = scmp.eq.s32.totalorder %s14, 1
    %p74 = por %p72, %p73
    %p75 = scmp.ne.s32.totalorder %s66, %s67
    %p76 = scmp.eq.s32.totalorder %s14, 0
    %p77 = por %p75, %p76
    %p78 = scmp.ne.s32.totalorder %s66, %s67
    %p79 = scmp.eq.s32.totalorder %s15, 1
    %p80 = por %p78, %p79
    %p82 = scmp.ne.s32.totalorder %s67, %s81
    %p83 = scmp.eq.s32.totalorder %s15, 0
    %p84 = por %p82, %p83
    %s85 = ssub.s32 %s9, %s16
    %p86 = scmp.eq.s32.totalorder %s85, 0
    %s88 = sadd.s32 %s87, 1
    %s89 = scalar_select %p86, %s87, %s88
    %p92 = pneg %p86
    %p93 = scmp.eq.s32.totalorder %s9, 1
    %p94 = por %p92, %p93
    %p95 = scmp.ne.s32.totalorder %s87, %s90
    %p96 = scmp.eq.s32.totalorder %s9, 0
    %p97 = por %p95, %p96
    %p98 = scmp.ne.s32.totalorder %s87, %s90
    %p99 = scmp.eq.s32.totalorder %s14, 1
    %p100 = por %p98, %p99
    %p101 = scmp.ne.s32.totalorder %s90, %s91
    %p102 = scmp.eq.s32.totalorder %s14, 0
    %p103 = por %p101, %p102
    %p104 = scmp.ne.s32.totalorder %s90, %s91
    %p105 = scmp.eq.s32.totalorder %s15, 1
    %p106 = por %p104, %p105
    %p108 = scmp.ne.s32.totalorder %s91, %s107
    %p109 = scmp.eq.s32.totalorder %s15, 0
    %p110 = por %p108, %p109
    %p111 = scmp.le.s32.totalorder 1, %s9
    %p112 = scmp.lt.s32.totalorder %s9, 3
    %p113 = pnand %p111, %p112
    %p114 = pneg %p113
    // Predicated region
    $region9: #{conv4d_pallas.1} parent=5 // pred_check
      _
    $region10: #{conv4d_pallas.1} parent=5 // pred_check_branch
      %116 = sbr.rel (%p113) target = $region12
    $region11: #{conv4d_pallas.1} parent=5 // pred_region
      %s117 = ssub.s32 %s9, 1
      // Predicated region
      $region13: #{conv4d_pallas.1} parent=11 // pred_check
        %p118 = pneg %p56
      $region14: #{conv4d_pallas.1} parent=11 // pred_check_branch
        %120 = sbr.rel (%p118) target = $region16
      $region15: #{conv4d_pallas.1} parent=11 // pred_region
        _
      $region16: #{conv4d_pallas.1} parent=11 // pred_fallthru
        _
      // Predicated region
      $region17: #{conv4d_pallas.1} parent=11 // pred_check
        %p121 = pneg %p77
      $region18: #{conv4d_pallas.1} parent=11 // pred_check_branch
        %123 = sbr.rel (%p121) target = $region20
      $region19: #{conv4d_pallas.1} parent=11 // pred_region
        _
      $region20: #{conv4d_pallas.1} parent=11 // pred_fallthru
        _
    $region12: #{conv4d_pallas.1} parent=5 // pred_fallthru
      _
    %p124 = scmp.lt.s32.totalorder %s9, 2
    // Predicated region
    $region21: #{conv4d_pallas.1} parent=5 // pred_check
      %p125 = pneg %p124
    $region22: #{conv4d_pallas.1} parent=5 // pred_check_branch
      %127 = sbr.rel (%p125) target = $region24
    $region23: #{conv4d_pallas.1} parent=5 // pred_region
      // Predicated region
      $region25: #{conv4d_pallas.1} parent=23 // pred_check
        %p128 = pneg %p29
      $region26: #{conv4d_pallas.1} parent=23 // pred_check_branch
        %130 = sbr.rel (%p128) target = $region28
      $region27: #{conv4d_pallas.1} parent=23 // pred_region
        %p131 = scmp.lt.s32.totalorder %s9, 1
        %s132 = scalar_select %p131, %s9, 1
        %s133 = smul.addr %s132, 672
        %s134 = smul.addr %s133, 4
        %s135 = scalar_lea.vmem %s0, %s134
      $region28: #{conv4d_pallas.1} parent=23 // pred_fallthru
        _
    $region24: #{conv4d_pallas.1} parent=5 // pred_fallthru
      _
    %p136 = scmp.le.s32.totalorder 1, %s9
    %p137 = scmp.lt.s32.totalorder %s9, 3
    %p138 = pnand %p136, %p137
    %p139 = pneg %p138
    // Predicated region
    $region29: #{conv4d_pallas.1} parent=5 // pred_check
      _
    $region30: #{conv4d_pallas.1} parent=5 // pred_check_branch
      %141 = sbr.rel (%p138) target = $region32
    $region31: #{conv4d_pallas.1} parent=5 // pred_region
      %s142 = ssub.s32 %s9, 1
      %p143 = scmp.lt.s32.totalorder %s14, 1
      %s144 = scalar_select %p143, %s14, 1
      %s145 = smul.addr %s144, 672
      %s146 = smul.addr %s145, 4
      %s147 = scalar_lea.vmem %s0, %s146
      %p148 = pneg %p35
      %p149 = pneg %p32
      %p150 = pneg %p56
      %p151 = pneg %p53
      %p152 = pneg %p77
      %p153 = pneg %p74
      %p154 = pneg %p103
      %p155 = pneg %p100
      %p156 = scmp.lt.s32.totalorder %s14, 1
      %s157 = scalar_select %p156, %s14, 1
      %s158 = smul.addr %s157, 32
      %s159 = smul.addr %s158, 8
      %s160 = scalar_lea.vmem %s3, %s159
      %p161 = scmp.lt.s32.totalorder %s14, 1
      %s162 = scalar_select %p161, %s14, 1
      %s163 = smul.addr %s162, 672
      %s164 = smul.addr %s163, 4
      %s165 = scalar_lea.vmem %s0, %s164
      %p166 = scmp.lt.s32.totalorder %s14, 1
      %s167 = scalar_select %p166, %s14, 1
      %s168 = smul.addr %s167, 32
      %s169 = smul.addr %s168, 8
      %s170 = scalar_lea.vmem %s3, %s169
      %v172 = vld [vmem:[%s2] sm:$0xff]
      %v173 = vld [vmem:[%s1] sm:$0xf]
      %s174 = scalar_lea.vmem %s1, 4
      %v175 = vld [vmem:[%s174] sm:$0xf]
      %s176 = scalar_lea.vmem %s1, 8
      %v177 = vld [vmem:[%s176] sm:$0xf]
      %v178 = vld [vmem:[%s165] sm:$0xff]
      %v179 = vld [vmem:[%s165 + $0x8] sm:$0xff]
      %v180 = vld [vmem:[%s165 + $0x10] sm:$0xff]
      %v181 = vld [vmem:[%s165 + $0x18] sm:$0xff]
      %v182 = vld [vmem:[%s165 + $0x20] sm:$0xff]
      %v183 = vld [vmem:[%s165 + $0x28] sm:$0xff]
      %v184 = vld [vmem:[%s165 + $0x30] sm:$0xff]
      %v185 = vld [vmem:[%s165 + $0x38] sm:$0xff]
      %v186 = vld [vmem:[%s165 + $0x40] sm:$0xff]
      %v187 = vld [vmem:[%s165 + $0x48] sm:$0xff]
      %v188 = vld [vmem:[%s165 + $0x50] sm:$0xff]
      %v189 = vld [vmem:[%s165 + $0x58] sm:$0xff]
      %v190 = vld [vmem:[%s165 + $0x60] sm:$0xff]
      %v191 = vld [vmem:[%s165 + $0x68] sm:$0xff]
      %v192 = vld [vmem:[%s165 + $0x70] sm:$0xff]
      %v193 = vld [vmem:[%s165 + $0x78] sm:$0xff]
      %v194 = vld [vmem:[%s165 + $0x80] sm:$0xff]
      %v195 = vld [vmem:[%s165 + $0x88] sm:$0xff]
      %v196 = vld [vmem:[%s165 + $0x90] sm:$0xff]
      %v197 = vld [vmem:[%s165 + $0x98] sm:$0xff]
      %v198 = vld [vmem:[%s165 + $0xa0] sm:$0xff]
      %v199 = vld [vmem:[%s165 + $0xa8] sm:$0xff]
      %v200 = vld [vmem:[%s165 + $0xb0] sm:$0xff]
      %v201 = vld [vmem:[%s165 + $0xb8] sm:$0xff]
      %v202 = vld [vmem:[%s165 + $0xc0] sm:$0xff]
      %v203 = vld [vmem:[%s165 + $0xc8] sm:$0xff]
      %v204 = vld [vmem:[%s165 + $0xd0] sm:$0xff]
      %v205 = vld [vmem:[%s165 + $0xd8] sm:$0xff]
      %v206 = vld [vmem:[%s165 + $0xe0] sm:$0xff]
      %v207 = vld [vmem:[%s165 + $0xe8] sm:$0xff]
      %v208 = vld [vmem:[%s165 + $0xf0] sm:$0xff]
      %v209 = vld [vmem:[%s165 + $0xf8] sm:$0xff]
      %v210 = vld [vmem:[%s165 + $0x100] sm:$0xff]
      %v211 = vld [vmem:[%s165 + $0x108] sm:$0xff]
      %v212 = vld [vmem:[%s165 + $0x110] sm:$0xff]
      %v213 = vld [vmem:[%s165 + $0x118] sm:$0xff]
      %v214 = vld [vmem:[%s165 + $0x120] sm:$0xff]
      %v215 = vld [vmem:[%s165 + $0x128] sm:$0xff]
      %v216 = vld [vmem:[%s165 + $0x130] sm:$0xff]
      %v217 = vld [vmem:[%s165 + $0x138] sm:$0xff]
      %v218 = vld [vmem:[%s165 + $0x140] sm:$0xff]
      %v219 = vld [vmem:[%s165 + $0x148] sm:$0xff]
      %v220 = vld [vmem:[%s165 + $0x150] sm:$0xff]
      %v221 = vld [vmem:[%s165 + $0x158] sm:$0xff]
      %v222 = vld [vmem:[%s165 + $0x160] sm:$0xff]
      %v223 = vld [vmem:[%s165 + $0x168] sm:$0xff]
      %v224 = vld [vmem:[%s165 + $0x170] sm:$0xff]
      %v225 = vld [vmem:[%s165 + $0x178] sm:$0xff]
      %v226 = vld [vmem:[%s165 + $0x180] sm:$0xff]
      %v227 = vld [vmem:[%s165 + $0x188] sm:$0xff]
      %v228 = vld [vmem:[%s165 + $0x190] sm:$0xff]
      %v229 = vld [vmem:[%s165 + $0x198] sm:$0xff]
      %v230 = vld [vmem:[%s165 + $0x1a0] sm:$0x33]
      %v231 = vld [vmem:[%s165 + $0x1a8] sm:$0x33]
      %v232 = vld [vmem:[%s165 + $0x1b0] sm:$0x33]
      %v233 = vld [vmem:[%s165 + $0x1b8] sm:$0x33]
      %s234 = scalar_lea.vmem %s165, 448
      %v235 = vld [vmem:[%s234] sm:$0xff]
      %v236 = vld [vmem:[%s234 + $0x8] sm:$0xff]
      %v237 = vld [vmem:[%s234 + $0x10] sm:$0xff]
      %v238 = vld [vmem:[%s234 + $0x18] sm:$0xff]
      %v239 = vld [vmem:[%s234 + $0x20] sm:$0xff]
      %v240 = vld [vmem:[%s234 + $0x28] sm:$0xff]
      %v241 = vld [vmem:[%s234 + $0x30] sm:$0xff]
      %v242 = vld [vmem:[%s234 + $0x38] sm:$0xff]
      %v243 = vld [vmem:[%s234 + $0x40] sm:$0xff]
      %v244 = vld [vmem:[%s234 + $0x48] sm:$0xff]
      %v245 = vld [vmem:[%s234 + $0x50] sm:$0xff]
      %v246 = vld [vmem:[%s234 + $0x58] sm:$0xff]
      %v247 = vld [vmem:[%s234 + $0x60] sm:$0xff]
      %v248 = vld [vmem:[%s234 + $0x68] sm:$0xff]
      %v249 = vld [vmem:[%s234 + $0x70] sm:$0xff]
      %v250 = vld [vmem:[%s234 + $0x78] sm:$0xff]
      %v251 = vld [vmem:[%s234 + $0x80] sm:$0xff]
      %v252 = vld [vmem:[%s234 + $0x88] sm:$0xff]
      %v253 = vld [vmem:[%s234 + $0x90] sm:$0xff]
      %v254 = vld [vmem:[%s234 + $0x98] sm:$0xff]
      %v255 = vld [vmem:[%s234 + $0xa0] sm:$0xff]
      %v256 = vld [vmem:[%s234 + $0xa8] sm:$0xff]
      %v257 = vld [vmem:[%s234 + $0xb0] sm:$0xff]
      %v258 = vld [vmem:[%s234 + $0xb8] sm:$0xff]
      %v259 = vld [vmem:[%s234 + $0xc0] sm:$0xff]
      %v260 = vld [vmem:[%s234 + $0xc8] sm:$0xff]
      %v261 = vld [vmem:[%s234 + $0xd0] sm:$0xff]
      %v262 = vld [vmem:[%s234 + $0xd8] sm:$0xff]
      %v263 = vld [vmem:[%s234 + $0xe0] sm:$0xff]
      %v264 = vld [vmem:[%s234 + $0xe8] sm:$0xff]
      %v265 = vld [vmem:[%s234 + $0xf0] sm:$0xff]
      %v266 = vld [vmem:[%s234 + $0xf8] sm:$0xff]
      %v267 = vld [vmem:[%s234 + $0x100] sm:$0xff]
      %v268 = vld [vmem:[%s234 + $0x108] sm:$0xff]
      %v269 = vld [vmem:[%s234 + $0x110] sm:$0xff]
      %v270 = vld [vmem:[%s234 + $0x118] sm:$0xff]
      %v271 = vld [vmem:[%s234 + $0x120] sm:$0xff]
      %v272 = vld [vmem:[%s234 + $0x128] sm:$0xff]
      %v273 = vld [vmem:[%s234 + $0x130] sm:$0xff]
      %v274 = vld [vmem:[%s234 + $0x138] sm:$0xff]
      %v275 = vld [vmem:[%s234 + $0x140] sm:$0xff]
      %v276 = vld [vmem:[%s234 + $0x148] sm:$0xff]
      %v277 = vld [vmem:[%s234 + $0x150] sm:$0xff]
      %v278 = vld [vmem:[%s234 + $0x158] sm:$0xff]
      %v279 = vld [vmem:[%s234 + $0x160] sm:$0xff]
      %v280 = vld [vmem:[%s234 + $0x168] sm:$0xff]
      %v281 = vld [vmem:[%s234 + $0x170] sm:$0xff]
      %v282 = vld [vmem:[%s234 + $0x178] sm:$0xff]
      %v283 = vld [vmem:[%s234 + $0x180] sm:$0xff]
      %v284 = vld [vmem:[%s234 + $0x188] sm:$0xff]
      %v285 = vld [vmem:[%s234 + $0x190] sm:$0xff]
      %v286 = vld [vmem:[%s234 + $0x198] sm:$0xff]
      %v287 = vld [vmem:[%s234 + $0x1a0] sm:$0x33]
      %v288 = vld [vmem:[%s234 + $0x1a8] sm:$0x33]
      %v289 = vld [vmem:[%s234 + $0x1b0] sm:$0x33]
      %v290 = vld [vmem:[%s234 + $0x1b8] sm:$0x33]
      %v347 = vunpack.c.l.b16 %v235
      %v348 = vunpack.c.h.b16 %v235
      %v349 = vunpack.c.l.b16 %v236
      %v350 = vunpack.c.h.b16 %v236
      %v351 = vunpack.c.l.b16 %v237
      %v352 = vunpack.c.h.b16 %v237
      %v353 = vunpack.c.l.b16 %v238
      %v354 = vunpack.c.h.b16 %v238
      %v355 = vunpack.c.l.b16 %v239
      %v356 = vunpack.c.h.b16 %v239
      %v357 = vunpack.c.l.b16 %v240
      %v358 = vunpack.c.h.b16 %v240
      %v359 = vunpack.c.l.b16 %v241
      %v360 = vunpack.c.h.b16 %v241
      %v361 = vunpack.c.l.b16 %v242
      %v362 = vunpack.c.h.b16 %v242
      %v363 = vunpack.c.l.b16 %v243
      %v364 = vunpack.c.h.b16 %v243
      %v365 = vunpack.c.l.b16 %v244
      %v366 = vunpack.c.h.b16 %v244
      %v367 = vunpack.c.l.b16 %v245
      %v368 = vunpack.c.h.b16 %v245
      %v369 = vunpack.c.l.b16 %v246
      %v370 = vunpack.c.h.b16 %v246
      %v371 = vunpack.c.l.b16 %v247
      %v372 = vunpack.c.h.b16 %v247
      %v373 = vunpack.c.l.b16 %v248
      %v374 = vunpack.c.h.b16 %v248
      %v375 = vunpack.c.l.b16 %v249
      %v376 = vunpack.c.h.b16 %v249
      %v377 = vunpack.c.l.b16 %v250
      %v378 = vunpack.c.h.b16 %v250
      %v379 = vunpack.c.l.b16 %v251
      %v380 = vunpack.c.h.b16 %v251
      %v381 = vunpack.c.l.b16 %v252
      %v382 = vunpack.c.h.b16 %v252
      %v383 = vunpack.c.l.b16 %v253
      %v384 = vunpack.c.h.b16 %v253
      %v385 = vunpack.c.l.b16 %v254
      %v386 = vunpack.c.h.b16 %v254
      %v387 = vunpack.c.l.b16 %v255
      %v388 = vunpack.c.h.b16 %v255
      %v389 = vunpack.c.l.b16 %v256
      %v390 = vunpack.c.h.b16 %v256
      %v391 = vunpack.c.l.b16 %v257
      %v392 = vunpack.c.h.b16 %v257
      %v393 = vunpack.c.l.b16 %v258
      %v394 = vunpack.c.h.b16 %v258
      %v395 = vunpack.c.l.b16 %v259
      %v396 = vunpack.c.h.b16 %v259
      %v397 = vunpack.c.l.b16 %v260
      %v398 = vunpack.c.h.b16 %v260
      %v399 = vunpack.c.l.b16 %v261
      %v400 = vunpack.c.h.b16 %v261
      %v401 = vunpack.c.l.b16 %v262
      %v402 = vunpack.c.h.b16 %v262
      %v403 = vunpack.c.l.b16 %v263
      %v404 = vunpack.c.h.b16 %v263
      %v405 = vunpack.c.l.b16 %v264
      %v406 = vunpack.c.h.b16 %v264
      %v407 = vunpack.c.l.b16 %v265
      %v408 = vunpack.c.h.b16 %v265
      %v409 = vunpack.c.l.b16 %v266
      %v410 = vunpack.c.h.b16 %v266
      %v411 = vunpack.c.l.b16 %v267
      %v412 = vunpack.c.h.b16 %v267
      %v413 = vunpack.c.l.b16 %v268
      %v414 = vunpack.c.h.b16 %v268
      %v415 = vunpack.c.l.b16 %v269
      %v416 = vunpack.c.h.b16 %v269
      %v417 = vunpack.c.l.b16 %v270
      %v418 = vunpack.c.h.b16 %v270
      %v419 = vunpack.c.l.b16 %v271
      %v420 = vunpack.c.h.b16 %v271
      %v421 = vunpack.c.l.b16 %v272
      %v422 = vunpack.c.h.b16 %v272
      %v423 = vunpack.c.l.b16 %v273
      %v424 = vunpack.c.h.b16 %v273
      %v425 = vunpack.c.l.b16 %v274
      %v426 = vunpack.c.h.b16 %v274
      %v427 = vunpack.c.l.b16 %v275
      %v428 = vunpack.c.h.b16 %v275
      %v429 = vunpack.c.l.b16 %v276
      %v430 = vunpack.c.h.b16 %v276
      %v431 = vunpack.c.l.b16 %v277
      %v432 = vunpack.c.h.b16 %v277
      %v433 = vunpack.c.l.b16 %v278
      %v434 = vunpack.c.h.b16 %v278
      %v435 = vunpack.c.l.b16 %v279
      %v436 = vunpack.c.h.b16 %v279
      %v437 = vunpack.c.l.b16 %v280
      %v438 = vunpack.c.h.b16 %v280
      %v439 = vunpack.c.l.b16 %v281
      %v440 = vunpack.c.h.b16 %v281
      %v441 = vunpack.c.l.b16 %v282
      %v442 = vunpack.c.h.b16 %v282
      %v443 = vunpack.c.l.b16 %v283
      %v444 = vunpack.c.h.b16 %v283
      %v445 = vunpack.c.l.b16 %v284
      %v446 = vunpack.c.h.b16 %v284
      %v447 = vunpack.c.l.b16 %v285
      %v448 = vunpack.c.h.b16 %v285
      %v449 = vunpack.c.l.b16 %v286
      %v450 = vunpack.c.h.b16 %v286
      %v451 = vunpack.c.l.b16 %v287
      %v452 = vunpack.c.h.b16 %v287
      %v453 = vunpack.c.l.b16 %v288
      %v454 = vunpack.c.h.b16 %v288
      %v455 = vunpack.c.l.b16 %v289
      %v456 = vunpack.c.h.b16 %v289
      %v457 = vunpack.c.l.b16 %v290
      %v458 = vunpack.c.h.b16 %v290
      %v459 = vpack.c.b16 %v355, %v347
      %v460 = vpack.c.b16 %v356, %v348
      %v461 = vpack.c.b16 %v357, %v349
      %v462 = vpack.c.b16 %v358, %v350
      %v463 = vpack.c.b16 %v359, %v351
      %v464 = vpack.c.b16 %v360, %v352
      %v465 = vpack.c.b16 %v361, %v353
      %v466 = vpack.c.b16 %v362, %v354
      %v467 = vpack.c.b16 %v371, %v363
      %v468 = vpack.c.b16 %v372, %v364
      %v469 = vpack.c.b16 %v373, %v365
      %v470 = vpack.c.b16 %v374, %v366
      %v471 = vpack.c.b16 %v375, %v367
      %v472 = vpack.c.b16 %v376, %v368
      %v473 = vpack.c.b16 %v377, %v369
      %v474 = vpack.c.b16 %v378, %v370
      %v475 = vpack.c.b16 %v387, %v379
      %v476 = vpack.c.b16 %v388, %v380
      %v477 = vpack.c.b16 %v389, %v381
      %v478 = vpack.c.b16 %v390, %v382
      %v479 = vpack.c.b16 %v391, %v383
      %v480 = vpack.c.b16 %v392, %v384
      %v481 = vpack.c.b16 %v393, %v385
      %v482 = vpack.c.b16 %v394, %v386
      %v483 = vpack.c.b16 %v403, %v395
      %v484 = vpack.c.b16 %v404, %v396
      %v485 = vpack.c.b16 %v405, %v397
      %v486 = vpack.c.b16 %v406, %v398
      %v487 = vpack.c.b16 %v407, %v399
      %v488 = vpack.c.b16 %v408, %v400
      %v489 = vpack.c.b16 %v409, %v401
      %v490 = vpack.c.b16 %v410, %v402
      %v491 = vpack.c.b16 %v419, %v411
      %v492 = vpack.c.b16 %v420, %v412
      %v493 = vpack.c.b16 %v421, %v413
      %v494 = vpack.c.b16 %v422, %v414
      %v495 = vpack.c.b16 %v423, %v415
      %v496 = vpack.c.b16 %v424, %v416
      %v497 = vpack.c.b16 %v425, %v417
      %v498 = vpack.c.b16 %v426, %v418
      %v499 = vpack.c.b16 %v435, %v427
      %v500 = vpack.c.b16 %v436, %v428
      %v501 = vpack.c.b16 %v437, %v429
      %v502 = vpack.c.b16 %v438, %v430
      %v503 = vpack.c.b16 %v439, %v431
      %v504 = vpack.c.b16 %v440, %v432
      %v505 = vpack.c.b16 %v441, %v433
      %v506 = vpack.c.b16 %v442, %v434
      %v507 = vpack.c.b16 %v451, %v443
      %v508 = vpack.c.b16 %v452, %v444
      %v509 = vpack.c.b16 %v453, %v445
      %v510 = vpack.c.b16 %v454, %v446
      %v511 = vpack.c.b16 %v455, %v447
      %v512 = vpack.c.b16 %v456, %v448
      %v513 = vpack.c.b16 %v457, %v449
      %v514 = vpack.c.b16 %v458, %v450
      %vm563 = vcmask 883712
      %v565 = vsel %vm563, %v175, 0
      %vm567 = vcmask 1045504
      %v569 = vsel %vm567, %v507, 0
      %v572 = vsel %vm567, %v508, 0
      %v575 = vsel %vm567, %v509, 0
      %v578 = vsel %vm567, %v510, 0
      %v581 = vsel %vm567, %v511, 0
      %v584 = vsel %vm567, %v512, 0
      %v587 = vsel %vm567, %v513, 0
      %v590 = vsel %vm567, %v514, 0
      %592 = vmatprep.subr.bf16.mxu0 %v460
      %593 = vmatpush1.bf16.msra.mxu0 %v459
      %594 = vmatprep.subr.bf16.mxu0 %v468
      %595 = vmatpush1.bf16.msra.mxu0 %v467
      %596 = vmatprep.subr.bf16.mxu0 %v476
      %597 = vmatpush1.bf16.msra.mxu0 %v475
      %598 = vmatprep.subr.bf16.mxu0 %v484
      %599 = vmatpush1.bf16.msra.mxu0 %v483
      %600 = vmatprep.subr.bf16.mxu0 %v492
      %601 = vmatpush1.bf16.msra.mxu0 %v491
      %602 = vmatprep.subr.bf16.mxu0 %v500
      %603 = vmatpush1.bf16.msra.mxu0 %v499
      %604 = vmatprep.subr.bf16.mxu0 %v572
      %605 = vmatpush1.bf16.msra.mxu0 %v569
      %606 = vmatprep.subr.bf16.mxu0 0
      %607 = vmatpush1.bf16.msra.mxu0 0
      %608 = vmatprep.subr.bf16.mxu0 0
      %609 = vmatpush1.bf16.msra.mxu0 0
      %610 = vmatprep.subr.bf16.mxu0 0
      %611 = vmatpush1.bf16.msra.mxu0 0
      %612 = vmatprep.subr.bf16.mxu0 0
      %613 = vmatpush1.bf16.msra.mxu0 0
      %614 = vmatprep.subr.bf16.mxu0 0
      %615 = vmatpush1.bf16.msra.mxu0 0
      %616 = vmatprep.subr.bf16.mxu0 0
      %617 = vmatpush1.bf16.msra.mxu0 0
      %618 = vmatprep.subr.bf16.mxu0 0
      %619 = vmatpush1.bf16.msra.mxu0 0
      %620 = vmatprep.subr.bf16.mxu0 0
      %621 = vmatpush1.bf16.msra.mxu0 0
      %622 = vmatprep.subr.bf16.mxu0 0
      %623 = vmatpush1.bf16.msra.mxu0 0
      %624 = vmatprep.mubr.bf16.mxu0 0
      %625 = vmatmul.mubr.bf16.gmra.mrb[0].mxu0 %v565
      %v626 = vpop.f32.mrb[0].mxu0
      %v627 = vadd.f32 0.0, %v626
      %v628 = vpop.f32.mrb[0].mxu0
      %v629 = vadd.f32 0.0, %v628
      %v630 = vpop.f32.mrb[0].mxu0
      %v631 = vpop.f32.mrb[0].mxu0
      %632 = vdwg.mxu0
      %633 = vmatprep.subr.bf16.mxu0 %v462
      %634 = vmatpush1.bf16.msra.mxu0 %v461
      %635 = vmatprep.subr.bf16.mxu0 %v470
      %636 = vmatpush1.bf16.msra.mxu0 %v469
      %637 = vmatprep.subr.bf16.mxu0 %v478
      %638 = vmatpush1.bf16.msra.mxu0 %v477
      %639 = vmatprep.subr.bf16.mxu0 %v486
      %640 = vmatpush1.bf16.msra.mxu0 %v485
      %641 = vmatprep.subr.bf16.mxu0 %v494
      %642 = vmatpush1.bf16.msra.mxu0 %v493
      %643 = vmatprep.subr.bf16.mxu0 %v502
      %644 = vmatpush1.bf16.msra.mxu0 %v501
      %645 = vmatprep.subr.bf16.mxu0 %v578
      %646 = vmatpush1.bf16.msra.mxu0 %v575
      %647 = vmatprep.subr.bf16.mxu0 0
      %648 = vmatpush1.bf16.msra.mxu0 0
      %649 = vmatprep.subr.bf16.mxu0 0
      %650 = vmatpush1.bf16.msra.mxu0 0
      %651 = vmatprep.subr.bf16.mxu0 0
      %652 = vmatpush1.bf16.msra.mxu0 0
      %653 = vmatprep.subr.bf16.mxu0 0
      %654 = vmatpush1.bf16.msra.mxu0 0
      %655 = vmatprep.subr.bf16.mxu0 0
      %656 = vmatpush1.bf16.msra.mxu0 0
      %657 = vmatprep.subr.bf16.mxu0 0
      %658 = vmatpush1.bf16.msra.mxu0 0
      %659 = vmatprep.subr.bf16.mxu0 0
      %660 = vmatpush1.bf16.msra.mxu0 0
      %661 = vmatprep.subr.bf16.mxu0 0
      %662 = vmatpush1.bf16.msra.mxu0 0
      %663 = vmatprep.subr.bf16.mxu0 0
      %664 = vmatpush1.bf16.msra.mxu0 0
      %665 = vmatprep.mubr.bf16.mxu0 0
      %666 = vmatmul.mubr.bf16.gmra.mrb[0].mxu0 %v565
      %v667 = vpop.f32.mrb[0].mxu0
      %v668 = vadd.f32 0.0, %v667
      %v669 = vpop.f32.mrb[0].mxu0
      %v670 = vadd.f32 0.0, %v669
      %v671 = vpop.f32.mrb[0].mxu0
      %v672 = vpop.f32.mrb[0].mxu0
      %673 = vdwg.mxu0
      %674 = vmatprep.subr.bf16.mxu0 %v464
      %675 = vmatpush1.bf16.msra.mxu0 %v463
      %676 = vmatprep.subr.bf16.mxu0 %v472
      %677 = vmatpush1.bf16.msra.mxu0 %v471
      %678 = vmatprep.subr.bf16.mxu0 %v480
      %679 = vmatpush1.bf16.msra.mxu0 %v479
      %680 = vmatprep.subr.bf16.mxu0 %v488
      %681 = vmatpush1.bf16.msra.mxu0 %v487
      %682 = vmatprep.subr.bf16.mxu0 %v496
      %683 = vmatpush1.bf16.msra.mxu0 %v495
      %684 = vmatprep.subr.bf16.mxu0 %v504
      %685 = vmatpush1.bf16.msra.mxu0 %v503
      %686 = vmatprep.subr.bf16.mxu0 %v584
      %687 = vmatpush1.bf16.msra.mxu0 %v581
      %688 = vmatprep.subr.bf16.mxu0 0
      %689 = vmatpush1.bf16.msra.mxu0 0
      %690 = vmatprep.subr.bf16.mxu0 0
      %691 = vmatpush1.bf16.msra.mxu0 0
      %692 = vmatprep.subr.bf16.mxu0 0
      %693 = vmatpush1.bf16.msra.mxu0 0
      %694 = vmatprep.subr.bf16.mxu0 0
      %695 = vmatpush1.bf16.msra.mxu0 0
      %696 = vmatprep.subr.bf16.mxu0 0
      %697 = vmatpush1.bf16.msra.mxu0 0
      %698 = vmatprep.subr.bf16.mxu0 0
      %699 = vmatpush1.bf16.msra.mxu0 0
      %700 = vmatprep.subr.bf16.mxu0 0
      %701 = vmatpush1.bf16.msra.mxu0 0
      %702 = vmatprep.subr.bf16.mxu0 0
      %703 = vmatpush1.bf16.msra.mxu0 0
      %704 = vmatprep.subr.bf16.mxu0 0
      %705 = vmatpush1.bf16.msra.mxu0 0
      %706 = vmatprep.mubr.bf16.mxu0 0
      %707 = vmatmul.mubr.bf16.gmra.mrb[0].mxu0 %v565
      %v708 = vpop.f32.mrb[0].mxu0
      %v709 = vadd.f32 0.0, %v708
      %v710 = vpop.f32.mrb[0].mxu0
      %v711 = vadd.f32 0.0, %v710
      %v712 = vpop.f32.mrb[0].mxu0
      %v713 = vpop.f32.mrb[0].mxu0
      %714 = vdwg.mxu0
      %715 = vmatprep.subr.bf16.mxu0 %v466
      %716 = vmatpush1.bf16.msra.mxu0 %v465
      %717 = vmatprep.subr.bf16.mxu0 %v474
      %718 = vmatpush1.bf16.msra.mxu0 %v473
      %719 = vmatprep.subr.bf16.mxu0 %v482
      %720 = vmatpush1.bf16.msra.mxu0 %v481
      %721 = vmatprep.subr.bf16.mxu0 %v490
      %722 = vmatpush1.bf16.msra.mxu0 %v489
      %723 = vmatprep.subr.bf16.mxu0 %v498
      %724 = vmatpush1.bf16.msra.mxu0 %v497
      %725 = vmatprep.subr.bf16.mxu0 %v506
      %726 = vmatpush1.bf16.msra.mxu0 %v505
      %727 = vmatprep.subr.bf16.mxu0 %v590
      %728 = vmatpush1.bf16.msra.mxu0 %v587
      %729 = vmatprep.subr.bf16.mxu0 0
      %730 = vmatpush1.bf16.msra.mxu0 0
      %731 = vmatprep.subr.bf16.mxu0 0
      %732 = vmatpush1.bf16.msra.mxu0 0
      %733 = vmatprep.subr.bf16.mxu0 0
      %734 = vmatpush1.bf16.msra.mxu0 0
      %735 = vmatprep.subr.bf16.mxu0 0
      %736 = vmatpush1.bf16.msra.mxu0 0
      %737 = vmatprep.subr.bf16.mxu0 0
      %738 = vmatpush1.bf16.msra.mxu0 0
      %739 = vmatprep.subr.bf16.mxu0 0
      %740 = vmatpush1.bf16.msra.mxu0 0
      %741 = vmatprep.subr.bf16.mxu0 0
      %742 = vmatpush1.bf16.msra.mxu0 0
      %743 = vmatprep.subr.bf16.mxu0 0
      %744 = vmatpush1.bf16.msra.mxu0 0
      %745 = vmatprep.subr.bf16.mxu0 0
      %746 = vmatpush1.bf16.msra.mxu0 0
      %747 = vmatprep.mubr.bf16.mxu0 0
      %748 = vmatmul.mubr.bf16.gmra.mrb[0].mxu0 %v565
      %v749 = vpop.f32.mrb[0].mxu0
      %v750 = vadd.f32 0.0, %v749
      %v751 = vpop.f32.mrb[0].mxu0
      %v752 = vadd.f32 0.0, %v751
      %v753 = vpop.f32.mrb[0].mxu0
      %v754 = vpop.f32.mrb[0].mxu0
      %755 = vdwg.mxu0
      %v812 = vunpack.c.l.b16 %v178
      %v813 = vunpack.c.h.b16 %v178
      %v814 = vunpack.c.l.b16 %v179
      %v815 = vunpack.c.h.b16 %v179
      %v816 = vunpack.c.l.b16 %v180
      %v817 = vunpack.c.h.b16 %v180
      %v818 = vunpack.c.l.b16 %v181
      %v819 = vunpack.c.h.b16 %v181
      %v820 = vunpack.c.l.b16 %v182
      %v821 = vunpack.c.h.b16 %v182
      %v822 = vunpack.c.l.b16 %v183
      %v823 = vunpack.c.h.b16 %v183
      %v824 = vunpack.c.l.b16 %v184
      %v825 = vunpack.c.h.b16 %v184
      %v826 = vunpack.c.l.b16 %v185
      %v827 = vunpack.c.h.b16 %v185
      %v828 = vunpack.c.l.b16 %v186
      %v829 = vunpack.c.h.b16 %v186
      %v830 = vunpack.c.l.b16 %v187
      %v831 = vunpack.c.h.b16 %v187
      %v832 = vunpack.c.l.b16 %v188
      %v833 = vunpack.c.h.b16 %v188
      %v834 = vunpack.c.l.b16 %v189
      %v835 = vunpack.c.h.b16 %v189
      %v836 = vunpack.c.l.b16 %v190
      %v837 = vunpack.c.h.b16 %v190
      %v838 = vunpack.c.l.b16 %v191
      %v839 = vunpack.c.h.b16 %v191
      %v840 = vunpack.c.l.b16 %v192
      %v841 = vunpack.c.h.b16 %v192
      %v842 = vunpack.c.l.b16 %v193
      %v843 = vunpack.c.h.b16 %v193
      %v844 = vunpack.c.l.b16 %v194
      %v845 = vunpack.c.h.b16 %v194
      %v846 = vunpack.c.l.b16 %v195
      %v847 = vunpack.c.h.b16 %v195
      %v848 = vunpack.c.l.b16 %v196
      %v849 = vunpack.c.h.b16 %v196
      %v850 = vunpack.c.l.b16 %v197
      %v851 = vunpack.c.h.b16 %v197
      %v852 = vunpack.c.l.b16 %v198
      %v853 = vunpack.c.h.b16 %v198
      %v854 = vunpack.c.l.b16 %v199
      %v855 = vunpack.c.h.b16 %v199
      %v856 = vunpack.c.l.b16 %v200
      %v857 = vunpack.c.h.b16 %v200
      %v858 = vunpack.c.l.b16 %v201
      %v859 = vunpack.c.h.b16 %v201
      %v860 = vunpack.c.l.b16 %v202
      %v861 = vunpack.c.h.b16 %v202
      %v862 = vunpack.c.l.b16 %v203
      %v863 = vunpack.c.h.b16 %v203
      %v864 = vunpack.c.l.b16 %v204
      %v865 = vunpack.c.h.b16 %v204
      %v866 = vunpack.c.l.b16 %v205
      %v867 = vunpack.c.h.b16 %v205
      %v868 = vunpack.c.l.b16 %v206
      %v869 = vunpack.c.h.b16 %v206
      %v870 = vunpack.c.l.b16 %v207
      %v871 = vunpack.c.h.b16 %v207
      %v872 = vunpack.c.l.b16 %v208
      %v873 = vunpack.c.h.b16 %v208
      %v874 = vunpack.c.l.b16 %v209
      %v875 = vunpack.c.h.b16 %v209
      %v876 = vunpack.c.l.b16 %v210
      %v877 = vunpack.c.h.b16 %v210
      %v878 = vunpack.c.l.b16 %v211
      %v879 = vunpack.c.h.b16 %v211
      %v880 = vunpack.c.l.b16 %v212
      %v881 = vunpack.c.h.b16 %v212
      %v882 = vunpack.c.l.b16 %v213
      %v883 = vunpack.c.h.b16 %v213
      %v884 = vunpack.c.l.b16 %v214
      %v885 = vunpack.c.h.b16 %v214
      %v886 = vunpack.c.l.b16 %v215
      %v887 = vunpack.c.h.b16 %v215
      %v888 = vunpack.c.l.b16 %v216
      %v889 = vunpack.c.h.b16 %v216
      %v890 = vunpack.c.l.b16 %v217
      %v891 = vunpack.c.h.b16 %v217
      %v892 = vunpack.c.l.b16 %v218
      %v893 = vunpack.c.h.b16 %v218
      %v894 = vunpack.c.l.b16 %v219
      %v895 = vunpack.c.h.b16 %v219
      %v896 = vunpack.c.l.b16 %v220
      %v897 = vunpack.c.h.b16 %v220
      %v898 = vunpack.c.l.b16 %v221
      %v899 = vunpack.c.h.b16 %v221
      %v900 = vunpack.c.l.b16 %v222
      %v901 = vunpack.c.h.b16 %v222
      %v902 = vunpack.c.l.b16 %v223
      %v903 = vunpack.c.h.b16 %v223
      %v904 = vunpack.c.l.b16 %v224
      %v905 = vunpack.c.h.b16 %v224
      %v906 = vunpack.c.l.b16 %v225
      %v907 = vunpack.c.h.b16 %v225
      %v908 = vunpack.c.l.b16 %v226
      %v909 = vunpack.c.h.b16 %v226
      %v910 = vunpack.c.l.b16 %v227
      %v911 = vunpack.c.h.b16 %v227
      %v912 = vunpack.c.l.b16 %v228
      %v913 = vunpack.c.h.b16 %v228
      %v914 = vunpack.c.l.b16 %v229
      %v915 = vunpack.c.h.b16 %v229
      %v916 = vunpack.c.l.b16 %v230
      %v917 = vunpack.c.h.b16 %v230
      %v918 = vunpack.c.l.b16 %v231
      %v919 = vunpack.c.h.b16 %v231
      %v920 = vunpack.c.l.b16 %v232
      %v921 = vunpack.c.h.b16 %v232
      %v922 = vunpack.c.l.b16 %v233
      %v923 = vunpack.c.h.b16 %v233
      %v924 = vpack.c.b16 %v820, %v812
      %v925 = vpack.c.b16 %v821, %v813
      %v926 = vpack.c.b16 %v822, %v814
      %v927 = vpack.c.b16 %v823, %v815
      %v928 = vpack.c.b16 %v824, %v816
      %v929 = vpack.c.b16 %v825, %v817
      %v930 = vpack.c.b16 %v826, %v818
      %v931 = vpack.c.b16 %v827, %v819
      %v932 = vpack.c.b16 %v836, %v828
      %v933 = vpack.c.b16 %v837, %v829
      %v934 = vpack.c.b16 %v838, %v830
      %v935 = vpack.c.b16 %v839, %v831
      %v936 = vpack.c.b16 %v840, %v832
      %v937 = vpack.c.b16 %v841, %v833
      %v938 = vpack.c.b16 %v842, %v834
      %v939 = vpack.c.b16 %v843, %v835
      %v940 = vpack.c.b16 %v852, %v844
      %v941 = vpack.c.b16 %v853, %v845
      %v942 = vpack.c.b16 %v854, %v846
      %v943 = vpack.c.b16 %v855, %v847
      %v944 = vpack.c.b16 %v856, %v848
      %v945 = vpack.c.b16 %v857, %v849
      %v946 = vpack.c.b16 %v858, %v850
      %v947 = vpack.c.b16 %v859, %v851
      %v948 = vpack.c.b16 %v868, %v860
      %v949 = vpack.c.b16 %v869, %v861
      %v950 = vpack.c.b16 %v870, %v862
      %v951 = vpack.c.b16 %v871, %v863
      %v952 = vpack.c.b16 %v872, %v864
      %v953 = vpack.c.b16 %v873, %v865
      %v954 = vpack.c.b16 %v874, %v866
      %v955 = vpack.c.b16 %v875, %v867
      %v956 = vpack.c.b16 %v884, %v876
      %v957 = vpack.c.b16 %v885, %v877
      %v958 = vpack.c.b16 %v886, %v878
      %v959 = vpack.c.b16 %v887, %v879
      %v960 = vpack.c.b16 %v888, %v880
      %v961 = vpack.c.b16 %v889, %v881
      %v962 = vpack.c.b16 %v890, %v882
      %v963 = vpack.c.b16 %v891, %v883
      %v964 = vpack.c.b16 %v900, %v892
      %v965 = vpack.c.b16 %v901, %v893
      %v966 = vpack.c.b16 %v902, %v894
      %v967 = vpack.c.b16 %v903, %v895
      %v968 = vpack.c.b16 %v904, %v896
      %v969 = vpack.c.b16 %v905, %v897
      %v970 = vpack.c.b16 %v906, %v898
      %v971 = vpack.c.b16 %v907, %v899
      %v972 = vpack.c.b16 %v916, %v908
      %v973 = vpack.c.b16 %v917, %v909
      %v974 = vpack.c.b16 %v918, %v910
      %v975 = vpack.c.b16 %v919, %v911
      %v976 = vpack.c.b16 %v920, %v912
      %v977 = vpack.c.b16 %v921, %v913
      %v978 = vpack.c.b16 %v922, %v914
      %v979 = vpack.c.b16 %v923, %v915
      %v1029 = vsel %vm563, %v173, 0
      %v1032 = vsel %vm567, %v972, 0
      %v1035 = vsel %vm567, %v973, 0
      %v1038 = vsel %vm567, %v974, 0
      %v1041 = vsel %vm567, %v975, 0
      %v1044 = vsel %vm567, %v976, 0
      %v1047 = vsel %vm567, %v977, 0
      %v1050 = vsel %vm567, %v978, 0
      %v1053 = vsel %vm567, %v979, 0
      %1055 = vmatprep.subr.bf16.mxu0 %v925
      %1056 = vmatpush1.bf16.msra.mxu0 %v924
      %1057 = vmatprep.subr.bf16.mxu0 %v933
      %1058 = vmatpush1.bf16.msra.mxu0 %v932
      %1059 = vmatprep.subr.bf16.mxu0 %v941
      %1060 = vmatpush1.bf16.msra.mxu0 %v940
      %1061 = vmatprep.subr.bf16.mxu0 %v949
      %1062 = vmatpush1.bf16.msra.mxu0 %v948
      %1063 = vmatprep.subr.bf16.mxu0 %v957
      %1064 = vmatpush1.bf16.msra.mxu0 %v956
      %1065 = vmatprep.subr.bf16.mxu0 %v965
      %1066 = vmatpush1.bf16.msra.mxu0 %v964
      %1067 = vmatprep.subr.bf16.mxu0 %v1035
      %1068 = vmatpush1.bf16.msra.mxu0 %v1032
      %1069 = vmatprep.subr.bf16.mxu0 0
      %1070 = vmatpush1.bf16.msra.mxu0 0
      %1071 = vmatprep.subr.bf16.mxu0 0
      %1072 = vmatpush1.bf16.msra.mxu0 0
      %1073 = vmatprep.subr.bf16.mxu0 0
      %1074 = vmatpush1.bf16.msra.mxu0 0
      %1075 = vmatprep.subr.bf16.mxu0 0
      %1076 = vmatpush1.bf16.msra.mxu0 0
      %1077 = vmatprep.subr.bf16.mxu0 0
      %1078 = vmatpush1.bf16.msra.mxu0 0
      %1079 = vmatprep.subr.bf16.mxu0 0
      %1080 = vmatpush1.bf16.msra.mxu0 0
      %1081 = vmatprep.subr.bf16.mxu0 0
      %1082 = vmatpush1.bf16.msra.mxu0 0
      %1083 = vmatprep.subr.bf16.mxu0 0
      %1084 = vmatpush1.bf16.msra.mxu0 0
      %1085 = vmatprep.subr.bf16.mxu0 0
      %1086 = vmatpush1.bf16.msra.mxu0 0
      %1087 = vmatprep.mubr.bf16.mxu0 0
      %1088 = vmatmul.mubr.bf16.gmra.mrb[0].mxu0 %v1029
      %v1089 = vpop.f32.mrb[0].mxu0
      %v1090 = vadd.f32 %v627, %v1089
      %v1091 = vpop.f32.mrb[0].mxu0
      %v1092 = vadd.f32 %v629, %v1091
      %v1093 = vpop.f32.mrb[0].mxu0
      %v1094 = vpop.f32.mrb[0].mxu0
      %1095 = vdwg.mxu0
      %1096 = vmatprep.subr.bf16.mxu0 %v927
      %1097 = vmatpush1.bf16.msra.mxu0 %v926
      %1098 = vmatprep.subr.bf16.mxu0 %v935
      %1099 = vmatpush1.bf16.msra.mxu0 %v934
      %1100 = vmatprep.subr.bf16.mxu0 %v943
      %1101 = vmatpush1.bf16.msra.mxu0 %v942
      %1102 = vmatprep.subr.bf16.mxu0 %v951
      %1103 = vmatpush1.bf16.msra.mxu0 %v950
      %1104 = vmatprep.subr.bf16.mxu0 %v959
      %1105 = vmatpush1.bf16.msra.mxu0 %v958
      %1106 = vmatprep.subr.bf16.mxu0 %v967
      %1107 = vmatpush1.bf16.msra.mxu0 %v966
      %1108 = vmatprep.subr.bf16.mxu0 %v1041
      %1109 = vmatpush1.bf16.msra.mxu0 %v1038
      %1110 = vmatprep.subr.bf16.mxu0 0
      %1111 = vmatpush1.bf16.msra.mxu0 0
      %1112 = vmatprep.subr.bf16.mxu0 0
      %1113 = vmatpush1.bf16.msra.mxu0 0
      %1114 = vmatprep.subr.bf16.mxu0 0
      %1115 = vmatpush1.bf16.msra.mxu0 0
      %1116 = vmatprep.subr.bf16.mxu0 0
      %1117 = vmatpush1.bf16.msra.mxu0 0
      %1118 = vmatprep.subr.bf16.mxu0 0
      %1119 = vmatpush1.bf16.msra.mxu0 0
      %1120 = vmatprep.subr.bf16.mxu0 0
      %1121 = vmatpush1.bf16.msra.mxu0 0
      %1122 = vmatprep.subr.bf16.mxu0 0
      %1123 = vmatpush1.bf16.msra.mxu0 0
      %1124 = vmatprep.subr.bf16.mxu0 0
      %1125 = vmatpush1.bf16.msra.mxu0 0
      %1126 = vmatprep.subr.bf16.mxu0 0
      %1127 = vmatpush1.bf16.msra.mxu0 0
      %1128 = vmatprep.mubr.bf16.mxu0 0
      %1129 = vmatmul.mubr.bf16.gmra.mrb[0].mxu0 %v1029
      %v1130 = vpop.f32.mrb[0].mxu0
      %v1131 = vadd.f32 %v668, %v1130
      %v1132 = vpop.f32.mrb[0].mxu0
      %v1133 = vadd.f32 %v670, %v1132
      %v1134 = vpop.f32.mrb[0].mxu0
      %v1135 = vpop.f32.mrb[0].mxu0
      %1136 = vdwg.mxu0
      %1137 = vmatprep.subr.bf16.mxu0 %v929
      %1138 = vmatpush1.bf16.msra.mxu0 %v928
      %1139 = vmatprep.subr.bf16.mxu0 %v937
      %1140 = vmatpush1.bf16.msra.mxu0 %v936
      %1141 = vmatprep.subr.bf16.mxu0 %v945
      %1142 = vmatpush1.bf16.msra.mxu0 %v944
      %1143 = vmatprep.subr.bf16.mxu0 %v953
      %1144 = vmatpush1.bf16.msra.mxu0 %v952
      %1145 = vmatprep.subr.bf16.mxu0 %v961
      %1146 = vmatpush1.bf16.msra.mxu0 %v960
      %1147 = vmatprep.subr.bf16.mxu0 %v969
      %1148 = vmatpush1.bf16.msra.mxu0 %v968
      %1149 = vmatprep.subr.bf16.mxu0 %v1047
      %1150 = vmatpush1.bf16.msra.mxu0 %v1044
      %1151 = vmatprep.subr.bf16.mxu0 0
      %1152 = vmatpush1.bf16.msra.mxu0 0
      %1153 = vmatprep.subr.bf16.mxu0 0
      %1154 = vmatpush1.bf16.msra.mxu0 0
      %1155 = vmatprep.subr.bf16.mxu0 0
      %1156 = vmatpush1.bf16.msra.mxu0 0
      %1157 = vmatprep.subr.bf16.mxu0 0
      %1158 = vmatpush1.bf16.msra.mxu0 0
      %1159 = vmatprep.subr.bf16.mxu0 0
      %1160 = vmatpush1.bf16.msra.mxu0 0
      %1161 = vmatprep.subr.bf16.mxu0 0
      %1162 = vmatpush1.bf16.msra.mxu0 0
      %1163 = vmatprep.subr.bf16.mxu0 0
      %1164 = vmatpush1.bf16.msra.mxu0 0
      %1165 = vmatprep.subr.bf16.mxu0 0
      %1166 = vmatpush1.bf16.msra.mxu0 0
      %1167 = vmatprep.subr.bf16.mxu0 0
      %1168 = vmatpush1.bf16.msra.mxu0 0
      %1169 = vmatprep.mubr.bf16.mxu0 0
      %1170 = vmatmul.mubr.bf16.gmra.mrb[0].mxu0 %v1029
      %v1171 = vpop.f32.mrb[0].mxu0
      %v1172 = vadd.f32 %v709, %v1171
      %v1173 = vpop.f32.mrb[0].mxu0
      %v1174 = vadd.f32 %v711, %v1173
      %v1175 = vpop.f32.mrb[0].mxu0
      %v1176 = vpop.f32.mrb[0].mxu0
      %1177 = vdwg.mxu0
      %1178 = vmatprep.subr.bf16.mxu0 %v931
      %1179 = vmatpush1.bf16.msra.mxu0 %v930
      %1180 = vmatprep.subr.bf16.mxu0 %v939
      %1181 = vmatpush1.bf16.msra.mxu0 %v938
      %1182 = vmatprep.subr.bf16.mxu0 %v947
      %1183 = vmatpush1.bf16.msra.mxu0 %v946
      %1184 = vmatprep.subr.bf16.mxu0 %v955
      %1185 = vmatpush1.bf16.msra.mxu0 %v954
      %1186 = vmatprep.subr.bf16.mxu0 %v963
      %1187 = vmatpush1.bf16.msra.mxu0 %v962
      %1188 = vmatprep.subr.bf16.mxu0 %v971
      %1189 = vmatpush1.bf16.msra.mxu0 %v970
      %1190 = vmatprep.subr.bf16.mxu0 %v1053
      %1191 = vmatpush1.bf16.msra.mxu0 %v1050
      %1192 = vmatprep.subr.bf16.mxu0 0
      %1193 = vmatpush1.bf16.msra.mxu0 0
      %1194 = vmatprep.subr.bf16.mxu0 0
      %1195 = vmatpush1.bf16.msra.mxu0 0
      %1196 = vmatprep.subr.bf16.mxu0 0
      %1197 = vmatpush1.bf16.msra.mxu0 0
      %1198 = vmatprep.subr.bf16.mxu0 0
      %1199 = vmatpush1.bf16.msra.mxu0 0
      %1200 = vmatprep.subr.bf16.mxu0 0
      %1201 = vmatpush1.bf16.msra.mxu0 0
      %1202 = vmatprep.subr.bf16.mxu0 0
      %1203 = vmatpush1.bf16.msra.mxu0 0
      %1204 = vmatprep.subr.bf16.mxu0 0
      %1205 = vmatpush1.bf16.msra.mxu0 0
      %1206 = vmatprep.subr.bf16.mxu0 0
      %1207 = vmatpush1.bf16.msra.mxu0 0
      %1208 = vmatprep.subr.bf16.mxu0 0
      %1209 = vmatpush1.bf16.msra.mxu0 0
      %1210 = vmatprep.mubr.bf16.mxu0 0
      %1211 = vmatmul.mubr.bf16.gmra.mrb[0].mxu0 %v1029
      %v1212 = vpop.f32.mrb[0].mxu0
      %v1213 = vadd.f32 %v750, %v1212
      %v1214 = vpop.f32.mrb[0].mxu0
      %v1215 = vadd.f32 %v752, %v1214
      %v1216 = vpop.f32.mrb[0].mxu0
      %v1217 = vpop.f32.mrb[0].mxu0
      %1218 = vdwg.mxu0
      %s1219 = scalar_lea.vmem %s165, 896
      %v1220 = vld [vmem:[%s1219] sm:$0xff]
      %v1221 = vld [vmem:[%s1219 + $0x8] sm:$0xff]
      %v1222 = vld [vmem:[%s1219 + $0x10] sm:$0xff]
      %v1223 = vld [vmem:[%s1219 + $0x18] sm:$0xff]
      %v1224 = vld [vmem:[%s1219 + $0x20] sm:$0xff]
      %v1225 = vld [vmem:[%s1219 + $0x28] sm:$0xff]
      %v1226 = vld [vmem:[%s1219 + $0x30] sm:$0xff]
      %v1227 = vld [vmem:[%s1219 + $0x38] sm:$0xff]
      %v1228 = vld [vmem:[%s1219 + $0x40] sm:$0xff]
      %v1229 = vld [vmem:[%s1219 + $0x48] sm:$0xff]
      %v1230 = vld [vmem:[%s1219 + $0x50] sm:$0xff]
      %v1231 = vld [vmem:[%s1219 + $0x58] sm:$0xff]
      %v1232 = vld [vmem:[%s1219 + $0x60] sm:$0xff]
      %v1233 = vld [vmem:[%s1219 + $0x68] sm:$0xff]
      %v1234 = vld [vmem:[%s1219 + $0x70] sm:$0xff]
      %v1235 = vld [vmem:[%s1219 + $0x78] sm:$0xff]
      %v1236 = vld [vmem:[%s1219 + $0x80] sm:$0xff]
      %v1237 = vld [vmem:[%s1219 + $0x88] sm:$0xff]
      %v1238 = vld [vmem:[%s1219 + $0x90] sm:$0xff]
      %v1239 = vld [vmem:[%s1219 + $0x98] sm:$0xff]
      %v1240 = vld [vmem:[%s1219 + $0xa0] sm:$0xff]
      %v1241 = vld [vmem:[%s1219 + $0xa8] sm:$0xff]
      %v1242 = vld [vmem:[%s1219 + $0xb0] sm:$0xff]
      %v1243 = vld [vmem:[%s1219 + $0xb8] sm:$0xff]
      %v1244 = vld [vmem:[%s1219 + $0xc0] sm:$0xff]
      %v1245 = vld [vmem:[%s1219 + $0xc8] sm:$0xff]
      %v1246 = vld [vmem:[%s1219 + $0xd0] sm:$0xff]
      %v1247 = vld [vmem:[%s1219 + $0xd8] sm:$0xff]
      %v1248 = vld [vmem:[%s1219 + $0xe0] sm:$0xff]
      %v1249 = vld [vmem:[%s1219 + $0xe8] sm:$0xff]
      %v1250 = vld [vmem:[%s1219 + $0xf0] sm:$0xff]
      %v1251 = vld [vmem:[%s1219 + $0xf8] sm:$0xff]
      %v1252 = vld [vmem:[%s1219 + $0x100] sm:$0xff]
      %v1253 = vld [vmem:[%s1219 + $0x108] sm:$0xff]
      %v1254 = vld [vmem:[%s1219 + $0x110] sm:$0xff]
      %v1255 = vld [vmem:[%s1219 + $0x118] sm:$0xff]
      %v1256 = vld [vmem:[%s1219 + $0x120] sm:$0xff]
      %v1257 = vld [vmem:[%s1219 + $0x128] sm:$0xff]
      %v1258 = vld [vmem:[%s1219 + $0x130] sm:$0xff]
      %v1259 = vld [vmem:[%s1219 + $0x138] sm:$0xff]
      %v1260 = vld [vmem:[%s1219 + $0x140] sm:$0xff]
      %v1261 = vld [vmem:[%s1219 + $0x148] sm:$0xff]
      %v1262 = vld [vmem:[%s1219 + $0x150] sm:$0xff]
      %v1263 = vld [vmem:[%s1219 + $0x158] sm:$0xff]
      %v1264 = vld [vmem:[%s1219 + $0x160] sm:$0xff]
      %v1265 = vld [vmem:[%s1219 + $0x168] sm:$0xff]
      %v1266 = vld [vmem:[%s1219 + $0x170] sm:$0xff]
      %v1267 = vld [vmem:[%s1219 + $0x178] sm:$0xff]
      %v1268 = vld [vmem:[%s1219 + $0x180] sm:$0xff]
      %v1269 = vld [vmem:[%s1219 + $0x188] sm:$0xff]
      %v1270 = vld [vmem:[%s1219 + $0x190] sm:$0xff]
      %v1271 = vld [vmem:[%s1219 + $0x198] sm:$0xff]
      %v1272 = vld [vmem:[%s1219 + $0x1a0] sm:$0x33]
      %v1273 = vld [vmem:[%s1219 + $0x1a8] sm:$0x33]
      %v1274 = vld [vmem:[%s1219 + $0x1b0] sm:$0x33]
      %v1275 = vld [vmem:[%s1219 + $0x1b8] sm:$0x33]
      %v1332 = vunpack.c.l.b16 %v1220
      %v1333 = vunpack.c.h.b16 %v1220
      %v1334 = vunpack.c.l.b16 %v1221
      %v1335 = vunpack.c.h.b16 %v1221
      %v1336 = vunpack.c.l.b16 %v1222
      %v1337 = vunpack.c.h.b16 %v1222
      %v1338 = vunpack.c.l.b16 %v1223
      %v1339 = vunpack.c.h.b16 %v1223
      %v1340 = vunpack.c.l.b16 %v1224
      %v1341 = vunpack.c.h.b16 %v1224
      %v1342 = vunpack.c.l.b16 %v1225
      %v1343 = vunpack.c.h.b16 %v1225
      %v1344 = vunpack.c.l.b16 %v1226
      %v1345 = vunpack.c.h.b16 %v1226
      %v1346 = vunpack.c.l.b16 %v1227
      %v1347 = vunpack.c.h.b16 %v1227
      %v1348 = vunpack.c.l.b16 %v1228
      %v1349 = vunpack.c.h.b16 %v1228
      %v1350 = vunpack.c.l.b16 %v1229
      %v1351 = vunpack.c.h.b16 %v1229
      %v1352 = vunpack.c.l.b16 %v1230
      %v1353 = vunpack.c.h.b16 %v1230
      %v1354 = vunpack.c.l.b16 %v1231
      %v1355 = vunpack.c.h.b16 %v1231
      %v1356 = vunpack.c.l.b16 %v1232
      %v1357 = vunpack.c.h.b16 %v1232
      %v1358 = vunpack.c.l.b16 %v1233
      %v1359 = vunpack.c.h.b16 %v1233
      %v1360 = vunpack.c.l.b16 %v1234
      %v1361 = vunpack.c.h.b16 %v1234
      %v1362 = vunpack.c.l.b16 %v1235
      %v1363 = vunpack.c.h.b16 %v1235
      %v1364 = vunpack.c.l.b16 %v1236
      %v1365 = vunpack.c.h.b16 %v1236
      %v1366 = vunpack.c.l.b16 %v1237
      %v1367 = vunpack.c.h.b16 %v1237
      %v1368 = vunpack.c.l.b16 %v1238
      %v1369 = vunpack.c.h.b16 %v1238
      %v1370 = vunpack.c.l.b16 %v1239
      %v1371 = vunpack.c.h.b16 %v1239
      %v1372 = vunpack.c.l.b16 %v1240
      %v1373 = vunpack.c.h.b16 %v1240
      %v1374 = vunpack.c.l.b16 %v1241
      %v1375 = vunpack.c.h.b16 %v1241
      %v1376 = vunpack.c.l.b16 %v1242
      %v1377 = vunpack.c.h.b16 %v1242
      %v1378 = vunpack.c.l.b16 %v1243
      %v1379 = vunpack.c.h.b16 %v1243
      %v1380 = vunpack.c.l.b16 %v1244
      %v1381 = vunpack.c.h.b16 %v1244
      %v1382 = vunpack.c.l.b16 %v1245
      %v1383 = vunpack.c.h.b16 %v1245
      %v1384 = vunpack.c.l.b16 %v1246
      %v1385 = vunpack.c.h.b16 %v1246
      %v1386 = vunpack.c.l.b16 %v1247
      %v1387 = vunpack.c.h.b16 %v1247
      %v1388 = vunpack.c.l.b16 %v1248
      %v1389 = vunpack.c.h.b16 %v1248
      %v1390 = vunpack.c.l.b16 %v1249
      %v1391 = vunpack.c.h.b16 %v1249
      %v1392 = vunpack.c.l.b16 %v1250
      %v1393 = vunpack.c.h.b16 %v1250
      %v1394 = vunpack.c.l.b16 %v1251
      %v1395 = vunpack.c.h.b16 %v1251
      %v1396 = vunpack.c.l.b16 %v1252
      %v1397 = vunpack.c.h.b16 %v1252
      %v1398 = vunpack.c.l.b16 %v1253
      %v1399 = vunpack.c.h.b16 %v1253
      %v1400 = vunpack.c.l.b16 %v1254
      %v1401 = vunpack.c.h.b16 %v1254
      %v1402 = vunpack.c.l.b16 %v1255
      %v1403 = vunpack.c.h.b16 %v1255
      %v1404 = vunpack.c.l.b16 %v1256
      %v1405 = vunpack.c.h.b16 %v1256
      %v1406 = vunpack.c.l.b16 %v1257
      %v1407 = vunpack.c.h.b16 %v1257
      %v1408 = vunpack.c.l.b16 %v1258
      %v1409 = vunpack.c.h.b16 %v1258
      %v1410 = vunpack.c.l.b16 %v1259
      %v1411 = vunpack.c.h.b16 %v1259
      %v1412 = vunpack.c.l.b16 %v1260
      %v1413 = vunpack.c.h.b16 %v1260
      %v1414 = vunpack.c.l.b16 %v1261
      %v1415 = vunpack.c.h.b16 %v1261
      %v1416 = vunpack.c.l.b16 %v1262
      %v1417 = vunpack.c.h.b16 %v1262
      %v1418 = vunpack.c.l.b16 %v1263
      %v1419 = vunpack.c.h.b16 %v1263
      %v1420 = vunpack.c.l.b16 %v1264
      %v1421 = vunpack.c.h.b16 %v1264
      %v1422 = vunpack.c.l.b16 %v1265
      %v1423 = vunpack.c.h.b16 %v1265
      %v1424 = vunpack.c.l.b16 %v1266
      %v1425 = vunpack.c.h.b16 %v1266
      %v1426 = vunpack.c.l.b16 %v1267
      %v1427 = vunpack.c.h.b16 %v1267
      %v1428 = vunpack.c.l.b16 %v1268
      %v1429 = vunpack.c.h.b16 %v1268
      %v1430 = vunpack.c.l.b16 %v1269
      %v1431 = vunpack.c.h.b16 %v1269
      %v1432 = vunpack.c.l.b16 %v1270
      %v1433 = vunpack.c.h.b16 %v1270
      %v1434 = vunpack.c.l.b16 %v1271
      %v1435 = vunpack.c.h.b16 %v1271
      %v1436 = vunpack.c.l.b16 %v1272
      %v1437 = vunpack.c.h.b16 %v1272
      %v1438 = vunpack.c.l.b16 %v1273
      %v1439 = vunpack.c.h.b16 %v1273
      %v1440 = vunpack.c.l.b16 %v1274
      %v1441 = vunpack.c.h.b16 %v1274
      %v1442 = vunpack.c.l.b16 %v1275
      %v1443 = vunpack.c.h.b16 %v1275
      %v1444 = vpack.c.b16 %v1340, %v1332
      %v1445 = vpack.c.b16 %v1341, %v1333
      %v1446 = vpack.c.b16 %v1342, %v1334
      %v1447 = vpack.c.b16 %v1343, %v1335
      %v1448 = vpack.c.b16 %v1344, %v1336
      %v1449 = vpack.c.b16 %v1345, %v1337
      %v1450 = vpack.c.b16 %v1346, %v1338
      %v1451 = vpack.c.b16 %v1347, %v1339
      %v1452 = vpack.c.b16 %v1356, %v1348
      %v1453 = vpack.c.b16 %v1357, %v1349
      %v1454 = vpack.c.b16 %v1358, %v1350
      %v1455 = vpack.c.b16 %v1359, %v1351
      %v1456 = vpack.c.b16 %v1360, %v1352
      %v1457 = vpack.c.b16 %v1361, %v1353
      %v1458 = vpack.c.b16 %v1362, %v1354
      %v1459 = vpack.c.b16 %v1363, %v1355
      %v1460 = vpack.c.b16 %v1372, %v1364
      %v1461 = vpack.c.b16 %v1373, %v1365
      %v1462 = vpack.c.b16 %v1374, %v1366
      %v1463 = vpack.c.b16 %v1375, %v1367
      %v1464 = vpack.c.b16 %v1376, %v1368
      %v1465 = vpack.c.b16 %v1377, %v1369
      %v1466 = vpack.c.b16 %v1378, %v1370
      %v1467 = vpack.c.b16 %v1379, %v1371
      %v1468 = vpack.c.b16 %v1388, %v1380
      %v1469 = vpack.c.b16 %v1389, %v1381
      %v1470 = vpack.c.b16 %v1390, %v1382
      %v1471 = vpack.c.b16 %v1391, %v1383
      %v1472 = vpack.c.b16 %v1392, %v1384
      %v1473 = vpack.c.b16 %v1393, %v1385
      %v1474 = vpack.c.b16 %v1394, %v1386
      %v1475 = vpack.c.b16 %v1395, %v1387
      %v1476 = vpack.c.b16 %v1404, %v1396
      %v1477 = vpack.c.b16 %v1405, %v1397
      %v1478 = vpack.c.b16 %v1406, %v1398
      %v1479 = vpack.c.b16 %v1407, %v1399
      %v1480 = vpack.c.b16 %v1408, %v1400
      %v1481 = vpack.c.b16 %v1409, %v1401
      %v1482 = vpack.c.b16 %v1410, %v1402
      %v1483 = vpack.c.b16 %v1411, %v1403
      %v1484 = vpack.c.b16 %v1420, %v1412
      %v1485 = vpack.c.b16 %v1421, %v1413
      %v1486 = vpack.c.b16 %v1422, %v1414
      %v1487 = vpack.c.b16 %v1423, %v1415
      %v1488 = vpack.c.b16 %v1424, %v1416
      %v1489 = vpack.c.b16 %v1425, %v1417
      %v1490 = vpack.c.b16 %v1426, %v1418
      %v1491 = vpack.c.b16 %v1427, %v1419
      %v1492 = vpack.c.b16 %v1436, %v1428
      %v1493 = vpack.c.b16 %v1437, %v1429
      %v1494 = vpack.c.b16 %v1438, %v1430
      %v1495 = vpack.c.b16 %v1439, %v1431
      %v1496 = vpack.c.b16 %v1440, %v1432
      %v1497 = vpack.c.b16 %v1441, %v1433
      %v1498 = vpack.c.b16 %v1442, %v1434
      %v1499 = vpack.c.b16 %v1443, %v1435
      %v1549 = vsel %vm563, %v177, 0
      %v1552 = vsel %vm567, %v1492, 0
      %v1555 = vsel %vm567, %v1493, 0
      %v1558 = vsel %vm567, %v1494, 0
      %v1561 = vsel %vm567, %v1495, 0
      %v1564 = vsel %vm567, %v1496, 0
      %v1567 = vsel %vm567, %v1497, 0
      %v1570 = vsel %vm567, %v1498, 0
      %v1573 = vsel %vm567, %v1499, 0
      %1575 = vmatprep.subr.bf16.mxu0 %v1445
      %1576 = vmatpush1.bf16.msra.mxu0 %v1444
      %1577 = vmatprep.subr.bf16.mxu0 %v1453
      %1578 = vmatpush1.bf16.msra.mxu0 %v1452
      %1579 = vmatprep.subr.bf16.mxu0 %v1461
      %1580 = vmatpush1.bf16.msra.mxu0 %v1460
      %1581 = vmatprep.subr.bf16.mxu0 %v1469
      %1582 = vmatpush1.bf16.msra.mxu0 %v1468
      %1583 = vmatprep.subr.bf16.mxu0 %v1477
      %1584 = vmatpush1.bf16.msra.mxu0 %v1476
      %1585 = vmatprep.subr.bf16.mxu0 %v1485
      %1586 = vmatpush1.bf16.msra.mxu0 %v1484
      %1587 = vmatprep.subr.bf16.mxu0 %v1555
      %1588 = vmatpush1.bf16.msra.mxu0 %v1552
      %1589 = vmatprep.subr.bf16.mxu0 0
      %1590 = vmatpush1.bf16.msra.mxu0 0
      %1591 = vmatprep.subr.bf16.mxu0 0
      %1592 = vmatpush1.bf16.msra.mxu0 0
      %1593 = vmatprep.subr.bf16.mxu0 0
      %1594 = vmatpush1.bf16.msra.mxu0 0
      %1595 = vmatprep.subr.bf16.mxu0 0
      %1596 = vmatpush1.bf16.msra.mxu0 0
      %1597 = vmatprep.subr.bf16.mxu0 0
      %1598 = vmatpush1.bf16.msra.mxu0 0
      %1599 = vmatprep.subr.bf16.mxu0 0
      %1600 = vmatpush1.bf16.msra.mxu0 0
      %1601 = vmatprep.subr.bf16.mxu0 0
      %1602 = vmatpush1.bf16.msra.mxu0 0
      %1603 = vmatprep.subr.bf16.mxu0 0
      %1604 = vmatpush1.bf16.msra.mxu0 0
      %1605 = vmatprep.subr.bf16.mxu0 0
      %1606 = vmatpush1.bf16.msra.mxu0 0
      %1607 = vmatprep.mubr.bf16.mxu0 0
      %1608 = vmatmul.mubr.bf16.gmra.mrb[0].mxu0 %v1549
      %v1609 = vpop.f32.mrb[0].mxu0
      %v1610 = vadd.f32 0.0, %v1609
      %v1611 = vpop.f32.mrb[0].mxu0
      %v1612 = vadd.f32 0.0, %v1611
      %v1613 = vpop.f32.mrb[0].mxu0
      %v1614 = vpop.f32.mrb[0].mxu0
      %1615 = vdwg.mxu0
      %1616 = vmatprep.subr.bf16.mxu0 %v1447
      %1617 = vmatpush1.bf16.msra.mxu0 %v1446
      %1618 = vmatprep.subr.bf16.mxu0 %v1455
      %1619 = vmatpush1.bf16.msra.mxu0 %v1454
      %1620 = vmatprep.subr.bf16.mxu0 %v1463
      %1621 = vmatpush1.bf16.msra.mxu0 %v1462
      %1622 = vmatprep.subr.bf16.mxu0 %v1471
      %1623 = vmatpush1.bf16.msra.mxu0 %v1470
      %1624 = vmatprep.subr.bf16.mxu0 %v1479
      %1625 = vmatpush1.bf16.msra.mxu0 %v1478
      %1626 = vmatprep.subr.bf16.mxu0 %v1487
      %1627 = vmatpush1.bf16.msra.mxu0 %v1486
      %1628 = vmatprep.subr.bf16.mxu0 %v1561
      %1629 = vmatpush1.bf16.msra.mxu0 %v1558
      %1630 = vmatprep.subr.bf16.mxu0 0
      %1631 = vmatpush1.bf16.msra.mxu0 0
      %1632 = vmatprep.subr.bf16.mxu0 0
      %1633 = vmatpush1.bf16.msra.mxu0 0
      %1634 = vmatprep.subr.bf16.mxu0 0
      %1635 = vmatpush1.bf16.msra.mxu0 0
      %1636 = vmatprep.subr.bf16.mxu0 0
      %1637 = vmatpush1.bf16.msra.mxu0 0
      %1638 = vmatprep.subr.bf16.mxu0 0
      %1639 = vmatpush1.bf16.msra.mxu0 0
      %1640 = vmatprep.subr.bf16.mxu0 0
      %1641 = vmatpush1.bf16.msra.mxu0 0
      %1642 = vmatprep.subr.bf16.mxu0 0
      %1643 = vmatpush1.bf16.msra.mxu0 0
      %1644 = vmatprep.subr.bf16.mxu0 0
      %1645 = vmatpush1.bf16.msra.mxu0 0
      %1646 = vmatprep.subr.bf16.mxu0 0
      %1647 = vmatpush1.bf16.msra.mxu0 0
      %1648 = vmatprep.mubr.bf16.mxu0 0
      %1649 = vmatmul.mubr.bf16.gmra.mrb[0].mxu0 %v1549
      %v1650 = vpop.f32.mrb[0].mxu0
      %v1651 = vadd.f32 0.0, %v1650
      %v1652 = vpop.f32.mrb[0].mxu0
      %v1653 = vadd.f32 0.0, %v1652
      %v1654 = vpop.f32.mrb[0].mxu0
      %v1655 = vpop.f32.mrb[0].mxu0
      %1656 = vdwg.mxu0
      %1657 = vmatprep.subr.bf16.mxu0 %v1449
      %1658 = vmatpush1.bf16.msra.mxu0 %v1448
      %1659 = vmatprep.subr.bf16.mxu0 %v1457
      %1660 = vmatpush1.bf16.msra.mxu0 %v1456
      %1661 = vmatprep.subr.bf16.mxu0 %v1465
      %1662 = vmatpush1.bf16.msra.mxu0 %v1464
      %1663 = vmatprep.subr.bf16.mxu0 %v1473
      %1664 = vmatpush1.bf16.msra.mxu0 %v1472
      %1665 = vmatprep.subr.bf16.mxu0 %v1481
      %1666 = vmatpush1.bf16.msra.mxu0 %v1480
      %1667 = vmatprep.subr.bf16.mxu0 %v1489
      %1668 = vmatpush1.bf16.msra.mxu0 %v1488
      %1669 = vmatprep.subr.bf16.mxu0 %v1567
      %1670 = vmatpush1.bf16.msra.mxu0 %v1564
      %1671 = vmatprep.subr.bf16.mxu0 0
      %1672 = vmatpush1.bf16.msra.mxu0 0
      %1673 = vmatprep.subr.bf16.mxu0 0
      %1674 = vmatpush1.bf16.msra.mxu0 0
      %1675 = vmatprep.subr.bf16.mxu0 0
      %1676 = vmatpush1.bf16.msra.mxu0 0
      %1677 = vmatprep.subr.bf16.mxu0 0
      %1678 = vmatpush1.bf16.msra.mxu0 0
      %1679 = vmatprep.subr.bf16.mxu0 0
      %1680 = vmatpush1.bf16.msra.mxu0 0
      %1681 = vmatprep.subr.bf16.mxu0 0
      %1682 = vmatpush1.bf16.msra.mxu0 0
      %1683 = vmatprep.subr.bf16.mxu0 0
      %1684 = vmatpush1.bf16.msra.mxu0 0
      %1685 = vmatprep.subr.bf16.mxu0 0
      %1686 = vmatpush1.bf16.msra.mxu0 0
      %1687 = vmatprep.subr.bf16.mxu0 0
      %1688 = vmatpush1.bf16.msra.mxu0 0
      %1689 = vmatprep.mubr.bf16.mxu0 0
      %1690 = vmatmul.mubr.bf16.gmra.mrb[0].mxu0 %v1549
      %v1691 = vpop.f32.mrb[0].mxu0
      %v1692 = vadd.f32 0.0, %v1691
      %v1693 = vpop.f32.mrb[0].mxu0
      %v1694 = vadd.f32 0.0, %v1693
      %v1695 = vpop.f32.mrb[0].mxu0
      %v1696 = vpop.f32.mrb[0].mxu0
      %1697 = vdwg.mxu0
      %1698 = vmatprep.subr.bf16.mxu0 %v1451
      %1699 = vmatpush1.bf16.msra.mxu0 %v1450
      %1700 = vmatprep.subr.bf16.mxu0 %v1459
      %1701 = vmatpush1.bf16.msra.mxu0 %v1458
      %1702 = vmatprep.subr.bf16.mxu0 %v1467
      %1703 = vmatpush1.bf16.msra.mxu0 %v1466
      %1704 = vmatprep.subr.bf16.mxu0 %v1475
      %1705 = vmatpush1.bf16.msra.mxu0 %v1474
      %1706 = vmatprep.subr.bf16.mxu0 %v1483
      %1707 = vmatpush1.bf16.msra.mxu0 %v1482
      %1708 = vmatprep.subr.bf16.mxu0 %v1491
      %1709 = vmatpush1.bf16.msra.mxu0 %v1490
      %1710 = vmatprep.subr.bf16.mxu0 %v1573
      %1711 = vmatpush1.bf16.msra.mxu0 %v1570
      %1712 = vmatprep.subr.bf16.mxu0 0
      %1713 = vmatpush1.bf16.msra.mxu0 0
      %1714 = vmatprep.subr.bf16.mxu0 0
      %1715 = vmatpush1.bf16.msra.mxu0 0
      %1716 = vmatprep.subr.bf16.mxu0 0
      %1717 = vmatpush1.bf16.msra.mxu0 0
      %1718 = vmatprep.subr.bf16.mxu0 0
      %1719 = vmatpush1.bf16.msra.mxu0 0
      %1720 = vmatprep.subr.bf16.mxu0 0
      %1721 = vmatpush1.bf16.msra.mxu0 0
      %1722 = vmatprep.subr.bf16.mxu0 0
      %1723 = vmatpush1.bf16.msra.mxu0 0
      %1724 = vmatprep.subr.bf16.mxu0 0
      %1725 = vmatpush1.bf16.msra.mxu0 0
      %1726 = vmatprep.subr.bf16.mxu0 0
      %1727 = vmatpush1.bf16.msra.mxu0 0
      %1728 = vmatprep.subr.bf16.mxu0 0
      %1729 = vmatpush1.bf16.msra.mxu0 0
      %1730 = vmatprep.mubr.bf16.mxu0 0
      %1731 = vmatmul.mubr.bf16.gmra.mrb[0].mxu0 %v1549
      %v1732 = vpop.f32.mrb[0].mxu0
      %v1733 = vadd.f32 0.0, %v1732
      %v1734 = vpop.f32.mrb[0].mxu0
      %v1735 = vadd.f32 0.0, %v1734
      %v1736 = vpop.f32.mrb[0].mxu0
      %v1737 = vpop.f32.mrb[0].mxu0
      %1738 = vdwg.mxu0
      %v1739 = vadd.f32 %v1090, %v1610
      %v1740 = vadd.f32 %v1092, %v1612
      %v1741 = vadd.f32 %v1131, %v1651
      %v1742 = vadd.f32 %v1133, %v1653
      %v1743 = vadd.f32 %v1172, %v1692
      %v1744 = vadd.f32 %v1174, %v1694
      %v1745 = vadd.f32 %v1213, %v1733
      %v1746 = vadd.f32 %v1215, %v1735
      %1748 = vset.pattern.permute.xlu0 0
      %1749 = vperm.xlu0 %1748, %v172
      %v1750 = vpop.permute.xlu0 %1749
      %v1752 = vadd.f32 %v1739, %v1750
      %v1753 = vadd.f32 %v1740, %v1750
      %v1754 = vadd.f32 %v1741, %v1750
      %v1755 = vadd.f32 %v1742, %v1750
      %v1756 = vadd.f32 %v1743, %v1750
      %v1757 = vadd.f32 %v1744, %v1750
      %v1758 = vadd.f32 %v1745, %v1750
      %v1759 = vadd.f32 %v1746, %v1750
      %1760 = vst [vmem:[%s170] sm:$0xff] %v1752
      %1761 = vst [vmem:[%s170 + $0x8] sm:$0xff] %v1753
      %1762 = vst [vmem:[%s170 + $0x10] sm:$0xff] %v1754
      %1763 = vst [vmem:[%s170 + $0x18] sm:$0xff] %v1755
      %1764 = vst [vmem:[%s170 + $0x20] sm:$0xff] %v1756
      %1765 = vst [vmem:[%s170 + $0x28] sm:$0xff] %v1757
      %1766 = vst [vmem:[%s170 + $0x30] sm:$0xff] %v1758
      %1767 = vst [vmem:[%s170 + $0x38] sm:$0xff] %v1759
      %v1768 = vld [vmem:[%s234] sm:$0xff]
      %v1769 = vld [vmem:[%s234 + $0x8] sm:$0xff]
      %v1770 = vld [vmem:[%s234 + $0x10] sm:$0xff]
      %v1771 = vld [vmem:[%s234 + $0x18] sm:$0xff]
      %v1772 = vld [vmem:[%s234 + $0x20] sm:$0xff]
      %v1773 = vld [vmem:[%s234 + $0x28] sm:$0xff]
      %v1774 = vld [vmem:[%s234 + $0x30] sm:$0xff]
      %v1775 = vld [vmem:[%s234 + $0x38] sm:$0xff]
      %v1776 = vld [vmem:[%s234 + $0x40] sm:$0xff]
      %v1777 = vld [vmem:[%s234 + $0x48] sm:$0xff]
      %v1778 = vld [vmem:[%s234 + $0x50] sm:$0xff]
      %v1779 = vld [vmem:[%s234 + $0x58] sm:$0xff]
      %v1780 = vld [vmem:[%s234 + $0x60] sm:$0xff]
      %v1781 = vld [vmem:[%s234 + $0x68] sm:$0xff]
      %v1782 = vld [vmem:[%s234 + $0x70] sm:$0xff]
      %v1783 = vld [vmem:[%s234 + $0x78] sm:$0xff]
      %v1784 = vld [vmem:[%s234 + $0x80] sm:$0xff]
      %v1785 = vld [vmem:[%s234 + $0x88] sm:$0xff]
      %v1786 = vld [vmem:[%s234 + $0x90] sm:$0xff]
      %v1787 = vld [vmem:[%s234 + $0x98] sm:$0xff]
      %v1788 = vld [vmem:[%s234 + $0xa0] sm:$0xff]
      %v1789 = vld [vmem:[%s234 + $0xa8] sm:$0xff]
      %v1790 = vld [vmem:[%s234 + $0xb0] sm:$0xff]
      %v1791 = vld [vmem:[%s234 + $0xb8] sm:$0xff]
      %v1792 = vld [vmem:[%s234 + $0xc0] sm:$0xff]
      %v1793 = vld [vmem:[%s234 + $0xc8] sm:$0xff]
      %v1794 = vld [vmem:[%s234 + $0xd0] sm:$0xff]
      %v1795 = vld [vmem:[%s234 + $0xd8] sm:$0xff]
      %v1796 = vld [vmem:[%s234 + $0xe0] sm:$0xff]
      %v1797 = vld [vmem:[%s234 + $0xe8] sm:$0xff]
      %v1798 = vld [vmem:[%s234 + $0xf0] sm:$0xff]
      %v1799 = vld [vmem:[%s234 + $0xf8] sm:$0xff]
      %v1800 = vld [vmem:[%s234 + $0x100] sm:$0xff]
      %v1801 = vld [vmem:[%s234 + $0x108] sm:$0xff]
      %v1802 = vld [vmem:[%s234 + $0x110] sm:$0xff]
      %v1803 = vld [vmem:[%s234 + $0x118] sm:$0xff]
      %v1804 = vld [vmem:[%s234 + $0x120] sm:$0xff]
      %v1805 = vld [vmem:[%s234 + $0x128] sm:$0xff]
      %v1806 = vld [vmem:[%s234 + $0x130] sm:$0xff]
      %v1807 = vld [vmem:[%s234 + $0x138] sm:$0xff]
      %v1808 = vld [vmem:[%s234 + $0x140] sm:$0xff]
      %v1809 = vld [vmem:[%s234 + $0x148] sm:$0xff]
      %v1810 = vld [vmem:[%s234 + $0x150] sm:$0xff]
      %v1811 = vld [vmem:[%s234 + $0x158] sm:$0xff]
      %v1812 = vld [vmem:[%s234 + $0x160] sm:$0xff]
      %v1813 = vld [vmem:[%s234 + $0x168] sm:$0xff]
      %v1814 = vld [vmem:[%s234 + $0x170] sm:$0xff]
      %v1815 = vld [vmem:[%s234 + $0x178] sm:$0xff]
      %v1816 = vld [vmem:[%s234 + $0x180] sm:$0xff]
      %v1817 = vld [vmem:[%s234 + $0x188] sm:$0xff]
      %v1818 = vld [vmem:[%s234 + $0x190] sm:$0xff]
      %v1819 = vld [vmem:[%s234 + $0x198] sm:$0xff]
      %v1820 = vld [vmem:[%s234 + $0x1a0] sm:$0x33]
      %v1821 = vld [vmem:[%s234 + $0x1a8] sm:$0x33]
      %v1822 = vld [vmem:[%s234 + $0x1b0] sm:$0x33]
      %v1823 = vld [vmem:[%s234 + $0x1b8] sm:$0x33]
      %v1824 = vld [vmem:[%s1219] sm:$0xff]
      %v1825 = vld [vmem:[%s1219 + $0x8] sm:$0xff]
      %v1826 = vld [vmem:[%s1219 + $0x10] sm:$0xff]
      %v1827 = vld [vmem:[%s1219 + $0x18] sm:$0xff]
      %v1828 = vld [vmem:[%s1219 + $0x20] sm:$0xff]
      %v1829 = vld [vmem:[%s1219 + $0x28] sm:$0xff]
      %v1830 = vld [vmem:[%s1219 + $0x30] sm:$0xff]
      %v1831 = vld [vmem:[%s1219 + $0x38] sm:$0xff]
      %v1832 = vld [vmem:[%s1219 + $0x40] sm:$0xff]
      %v1833 = vld [vmem:[%s1219 + $0x48] sm:$0xff]
      %v1834 = vld [vmem:[%s1219 + $0x50] sm:$0xff]
      %v1835 = vld [vmem:[%s1219 + $0x58] sm:$0xff]
      %v1836 = vld [vmem:[%s1219 + $0x60] sm:$0xff]
      %v1837 = vld [vmem:[%s1219 + $0x68] sm:$0xff]
      %v1838 = vld [vmem:[%s1219 + $0x70] sm:$0xff]
      %v1839 = vld [vmem:[%s1219 + $0x78] sm:$0xff]
      %v1840 = vld [vmem:[%s1219 + $0x80] sm:$0xff]
      %v1841 = vld [vmem:[%s1219 + $0x88] sm:$0xff]
      %v1842 = vld [vmem:[%s1219 + $0x90] sm:$0xff]
      %v1843 = vld [vmem:[%s1219 + $0x98] sm:$0xff]
      %v1844 = vld [vmem:[%s1219 + $0xa0] sm:$0xff]
      %v1845 = vld [vmem:[%s1219 + $0xa8] sm:$0xff]
      %v1846 = vld [vmem:[%s1219 + $0xb0] sm:$0xff]
      %v1847 = vld [vmem:[%s1219 + $0xb8] sm:$0xff]
      %v1848 = vld [vmem:[%s1219 + $0xc0] sm:$0xff]
      %v1849 = vld [vmem:[%s1219 + $0xc8] sm:$0xff]
      %v1850 = vld [vmem:[%s1219 + $0xd0] sm:$0xff]
      %v1851 = vld [vmem:[%s1219 + $0xd8] sm:$0xff]
      %v1852 = vld [vmem:[%s1219 + $0xe0] sm:$0xff]
      %v1853 = vld [vmem:[%s1219 + $0xe8] sm:$0xff]
      %v1854 = vld [vmem:[%s1219 + $0xf0] sm:$0xff]
      %v1855 = vld [vmem:[%s1219 + $0xf8] sm:$0xff]
      %v1856 = vld [vmem:[%s1219 + $0x100] sm:$0xff]
      %v1857 = vld [vmem:[%s1219 + $0x108] sm:$0xff]
      %v1858 = vld [vmem:[%s1219 + $0x110] sm:$0xff]
      %v1859 = vld [vmem:[%s1219 + $0x118] sm:$0xff]
      %v1860 = vld [vmem:[%s1219 + $0x120] sm:$0xff]
      %v1861 = vld [vmem:[%s1219 + $0x128] sm:$0xff]
      %v1862 = vld [vmem:[%s1219 + $0x130] sm:$0xff]
      %v1863 = vld [vmem:[%s1219 + $0x138] sm:$0xff]
      %v1864 = vld [vmem:[%s1219 + $0x140] sm:$0xff]
      %v1865 = vld [vmem:[%s1219 + $0x148] sm:$0xff]
      %v1866 = vld [vmem:[%s1219 + $0x150] sm:$0xff]
      %v1867 = vld [vmem:[%s1219 + $0x158] sm:$0xff]
      %v1868 = vld [vmem:[%s1219 + $0x160] sm:$0xff]
      %v1869 = vld [vmem:[%s1219 + $0x168] sm:$0xff]
      %v1870 = vld [vmem:[%s1219 + $0x170] sm:$0xff]
      %v1871 = vld [vmem:[%s1219 + $0x178] sm:$0xff]
      %v1872 = vld [vmem:[%s1219 + $0x180] sm:$0xff]
      %v1873 = vld [vmem:[%s1219 + $0x188] sm:$0xff]
      %v1874 = vld [vmem:[%s1219 + $0x190] sm:$0xff]
      %v1875 = vld [vmem:[%s1219 + $0x198] sm:$0xff]
      %v1876 = vld [vmem:[%s1219 + $0x1a0] sm:$0x33]
      %v1877 = vld [vmem:[%s1219 + $0x1a8] sm:$0x33]
      %v1878 = vld [vmem:[%s1219 + $0x1b0] sm:$0x33]
      %v1879 = vld [vmem:[%s1219 + $0x1b8] sm:$0x33]
      %v1936 = vunpack.c.l.b16 %v1824
      %v1937 = vunpack.c.h.b16 %v1824
      %v1938 = vunpack.c.l.b16 %v1825
      %v1939 = vunpack.c.h.b16 %v1825
      %v1940 = vunpack.c.l.b16 %v1826
      %v1941 = vunpack.c.h.b16 %v1826
      %v1942 = vunpack.c.l.b16 %v1827
      %v1943 = vunpack.c.h.b16 %v1827
      %v1944 = vunpack.c.l.b16 %v1828
      %v1945 = vunpack.c.h.b16 %v1828
      %v1946 = vunpack.c.l.b16 %v1829
      %v1947 = vunpack.c.h.b16 %v1829
      %v1948 = vunpack.c.l.b16 %v1830
      %v1949 = vunpack.c.h.b16 %v1830
      %v1950 = vunpack.c.l.b16 %v1831
      %v1951 = vunpack.c.h.b16 %v1831
      %v1952 = vunpack.c.l.b16 %v1832
      %v1953 = vunpack.c.h.b16 %v1832
      %v1954 = vunpack.c.l.b16 %v1833
      %v1955 = vunpack.c.h.b16 %v1833
      %v1956 = vunpack.c.l.b16 %v1834
      %v1957 = vunpack.c.h.b16 %v1834
      %v1958 = vunpack.c.l.b16 %v1835
      %v1959 = vunpack.c.h.b16 %v1835
      %v1960 = vunpack.c.l.b16 %v1836
      %v1961 = vunpack.c.h.b16 %v1836
      %v1962 = vunpack.c.l.b16 %v1837
      %v1963 = vunpack.c.h.b16 %v1837
      %v1964 = vunpack.c.l.b16 %v1838
      %v1965 = vunpack.c.h.b16 %v1838
      %v1966 = vunpack.c.l.b16 %v1839
      %v1967 = vunpack.c.h.b16 %v1839
      %v1968 = vunpack.c.l.b16 %v1840
      %v1969 = vunpack.c.h.b16 %v1840
      %v1970 = vunpack.c.l.b16 %v1841
      %v1971 = vunpack.c.h.b16 %v1841
      %v1972 = vunpack.c.l.b16 %v1842
      %v1973 = vunpack.c.h.b16 %v1842
      %v1974 = vunpack.c.l.b16 %v1843
      %v1975 = vunpack.c.h.b16 %v1843
      %v1976 = vunpack.c.l.b16 %v1844
      %v1977 = vunpack.c.h.b16 %v1844
      %v1978 = vunpack.c.l.b16 %v1845
      %v1979 = vunpack.c.h.b16 %v1845
      %v1980 = vunpack.c.l.b16 %v1846
      %v1981 = vunpack.c.h.b16 %v1846
      %v1982 = vunpack.c.l.b16 %v1847
      %v1983 = vunpack.c.h.b16 %v1847
      %v1984 = vunpack.c.l.b16 %v1848
      %v1985 = vunpack.c.h.b16 %v1848
      %v1986 = vunpack.c.l.b16 %v1849
      %v1987 = vunpack.c.h.b16 %v1849
      %v1988 = vunpack.c.l.b16 %v1850
      %v1989 = vunpack.c.h.b16 %v1850
      %v1990 = vunpack.c.l.b16 %v1851
      %v1991 = vunpack.c.h.b16 %v1851
      %v1992 = vunpack.c.l.b16 %v1852
      %v1993 = vunpack.c.h.b16 %v1852
      %v1994 = vunpack.c.l.b16 %v1853
      %v1995 = vunpack.c.h.b16 %v1853
      %v1996 = vunpack.c.l.b16 %v1854
      %v1997 = vunpack.c.h.b16 %v1854
      %v1998 = vunpack.c.l.b16 %v1855
      %v1999 = vunpack.c.h.b16 %v1855
      %v2000 = vunpack.c.l.b16 %v1856
      %v2001 = vunpack.c.h.b16 %v1856
      %v2002 = vunpack.c.l.b16 %v1857
      %v2003 = vunpack.c.h.b16 %v1857
      %v2004 = vunpack.c.l.b16 %v1858
      %v2005 = vunpack.c.h.b16 %v1858
      %v2006 = vunpack.c.l.b16 %v1859
      %v2007 = vunpack.c.h.b16 %v1859
      %v2008 = vunpack.c.l.b16 %v1860
      %v2009 = vunpack.c.h.b16 %v1860
      %v2010 = vunpack.c.l.b16 %v1861
      %v2011 = vunpack.c.h.b16 %v1861
      %v2012 = vunpack.c.l.b16 %v1862
      %v2013 = vunpack.c.h.b16 %v1862
      %v2014 = vunpack.c.l.b16 %v1863
      %v2015 = vunpack.c.h.b16 %v1863
      %v2016 = vunpack.c.l.b16 %v1864
      %v2017 = vunpack.c.h.b16 %v1864
      %v2018 = vunpack.c.l.b16 %v1865
      %v2019 = vunpack.c.h.b16 %v1865
      %v2020 = vunpack.c.l.b16 %v1866
      %v2021 = vunpack.c.h.b16 %v1866
      %v2022 = vunpack.c.l.b16 %v1867
      %v2023 = vunpack.c.h.b16 %v1867
      %v2024 = vunpack.c.l.b16 %v1868
      %v2025 = vunpack.c.h.b16 %v1868
      %v2026 = vunpack.c.l.b16 %v1869
      %v2027 = vunpack.c.h.b16 %v1869
      %v2028 = vunpack.c.l.b16 %v1870
      %v2029 = vunpack.c.h.b16 %v1870
      %v2030 = vunpack.c.l.b16 %v1871
      %v2031 = vunpack.c.h.b16 %v1871
      %v2032 = vunpack.c.l.b16 %v1872
      %v2033 = vunpack.c.h.b16 %v1872
      %v2034 = vunpack.c.l.b16 %v1873
      %v2035 = vunpack.c.h.b16 %v1873
      %v2036 = vunpack.c.l.b16 %v1874
      %v2037 = vunpack.c.h.b16 %v1874
      %v2038 = vunpack.c.l.b16 %v1875
      %v2039 = vunpack.c.h.b16 %v1875
      %v2040 = vunpack.c.l.b16 %v1876
      %v2041 = vunpack.c.h.b16 %v1876
      %v2042 = vunpack.c.l.b16 %v1877
      %v2043 = vunpack.c.h.b16 %v1877
      %v2044 = vunpack.c.l.b16 %v1878
      %v2045 = vunpack.c.h.b16 %v1878
      %v2046 = vunpack.c.l.b16 %v1879
      %v2047 = vunpack.c.h.b16 %v1879
      %v2048 = vpack.c.b16 %v1944, %v1936
      %v2049 = vpack.c.b16 %v1945, %v1937
      %v2050 = vpack.c.b16 %v1946, %v1938
      %v2051 = vpack.c.b16 %v1947, %v1939
      %v2052 = vpack.c.b16 %v1948, %v1940
      %v2053 = vpack.c.b16 %v1949, %v1941
      %v2054 = vpack.c.b16 %v1950, %v1942
      %v2055 = vpack.c.b16 %v1951, %v1943
      %v2056 = vpack.c.b16 %v1960, %v1952
      %v2057 = vpack.c.b16 %v1961, %v1953
      %v2058 = vpack.c.b16 %v1962, %v1954
      %v2059 = vpack.c.b16 %v1963, %v1955
      %v2060 = vpack.c.b16 %v1964, %v1956
      %v2061 = vpack.c.b16 %v1965, %v1957
      %v2062 = vpack.c.b16 %v1966, %v1958
      %v2063 = vpack.c.b16 %v1967, %v1959
      %v2064 = vpack.c.b16 %v1976, %v1968
      %v2065 = vpack.c.b16 %v1977, %v1969
      %v2066 = vpack.c.b16 %v1978, %v1970
      %v2067 = vpack.c.b16 %v1979, %v1971
      %v2068 = vpack.c.b16 %v1980, %v1972
      %v2069 = vpack.c.b16 %v1981, %v1973
      %v2070 = vpack.c.b16 %v1982, %v1974
      %v2071 = vpack.c.b16 %v1983, %v1975
      %v2072 = vpack.c.b16 %v1992, %v1984
      %v2073 = vpack.c.b16 %v1993, %v1985
      %v2074 = vpack.c.b16 %v1994, %v1986
      %v2075 = vpack.c.b16 %v1995, %v1987
      %v2076 = vpack.c.b16 %v1996, %v1988
      %v2077 = vpack.c.b16 %v1997, %v1989
      %v2078 = vpack.c.b16 %v1998, %v1990
      %v2079 = vpack.c.b16 %v1999, %v1991
      %v2080 = vpack.c.b16 %v2008, %v2000
      %v2081 = vpack.c.b16 %v2009, %v2001
      %v2082 = vpack.c.b16 %v2010, %v2002
      %v2083 = vpack.c.b16 %v2011, %v2003
      %v2084 = vpack.c.b16 %v2012, %v2004
      %v2085 = vpack.c.b16 %v2013, %v2005
      %v2086 = vpack.c.b16 %v2014, %v2006
      %v2087 = vpack.c.b16 %v2015, %v2007
      %v2088 = vpack.c.b16 %v2024, %v2016
      %v2089 = vpack.c.b16 %v2025, %v2017
      %v2090 = vpack.c.b16 %v2026, %v2018
      %v2091 = vpack.c.b16 %v2027, %v2019
      %v2092 = vpack.c.b16 %v2028, %v2020
      %v2093 = vpack.c.b16 %v2029, %v2021
      %v2094 = vpack.c.b16 %v2030, %v2022
      %v2095 = vpack.c.b16 %v2031, %v2023
      %v2096 = vpack.c.b16 %v2040, %v2032
      %v2097 = vpack.c.b16 %v2041, %v2033
      %v2098 = vpack.c.b16 %v2042, %v2034
      %v2099 = vpack.c.b16 %v2043, %v2035
      %v2100 = vpack.c.b16 %v2044, %v2036
      %v2101 = vpack.c.b16 %v2045, %v2037
      %v2102 = vpack.c.b16 %v2046, %v2038
      %v2103 = vpack.c.b16 %v2047, %v2039
      %v2153 = vsel %vm567, %v2096, 0
      %v2156 = vsel %vm567, %v2097, 0
      %v2159 = vsel %vm567, %v2098, 0
      %v2162 = vsel %vm567, %v2099, 0
      %v2165 = vsel %vm567, %v2100, 0
      %v2168 = vsel %vm567, %v2101, 0
      %v2171 = vsel %vm567, %v2102, 0
      %v2174 = vsel %vm567, %v2103, 0
      %2176 = vmatprep.subr.bf16.mxu0 %v2049
      %2177 = vmatpush1.bf16.msra.mxu0 %v2048
      %2178 = vmatprep.subr.bf16.mxu0 %v2057
      %2179 = vmatpush1.bf16.msra.mxu0 %v2056
      %2180 = vmatprep.subr.bf16.mxu0 %v2065
      %2181 = vmatpush1.bf16.msra.mxu0 %v2064
      %2182 = vmatprep.subr.bf16.mxu0 %v2073
      %2183 = vmatpush1.bf16.msra.mxu0 %v2072
      %2184 = vmatprep.subr.bf16.mxu0 %v2081
      %2185 = vmatpush1.bf16.msra.mxu0 %v2080
      %2186 = vmatprep.subr.bf16.mxu0 %v2089
      %2187 = vmatpush1.bf16.msra.mxu0 %v2088
      %2188 = vmatprep.subr.bf16.mxu0 %v2156
      %2189 = vmatpush1.bf16.msra.mxu0 %v2153
      %2190 = vmatprep.subr.bf16.mxu0 0
      %2191 = vmatpush1.bf16.msra.mxu0 0
      %2192 = vmatprep.subr.bf16.mxu0 0
      %2193 = vmatpush1.bf16.msra.mxu0 0
      %2194 = vmatprep.subr.bf16.mxu0 0
      %2195 = vmatpush1.bf16.msra.mxu0 0
      %2196 = vmatprep.subr.bf16.mxu0 0
      %2197 = vmatpush1.bf16.msra.mxu0 0
      %2198 = vmatprep.subr.bf16.mxu0 0
      %2199 = vmatpush1.bf16.msra.mxu0 0
      %2200 = vmatprep.subr.bf16.mxu0 0
      %2201 = vmatpush1.bf16.msra.mxu0 0
      %2202 = vmatprep.subr.bf16.mxu0 0
      %2203 = vmatpush1.bf16.msra.mxu0 0
      %2204 = vmatprep.subr.bf16.mxu0 0
      %2205 = vmatpush1.bf16.msra.mxu0 0
      %2206 = vmatprep.subr.bf16.mxu0 0
      %2207 = vmatpush1.bf16.msra.mxu0 0
      %2208 = vmatprep.mubr.bf16.mxu0 0
      %2209 = vmatmul.mubr.bf16.gmra.mrb[0].mxu0 %v565
      %v2210 = vpop.f32.mrb[0].mxu0
      %v2211 = vadd.f32 0.0, %v2210
      %v2212 = vpop.f32.mrb[0].mxu0
      %v2213 = vadd.f32 0.0, %v2212
      %v2214 = vpop.f32.mrb[0].mxu0
      %v2215 = vpop.f32.mrb[0].mxu0
      %2216 = vdwg.mxu0
      %2217 = vmatprep.subr.bf16.mxu0 %v2051
      %2218 = vmatpush1.bf16.msra.mxu0 %v2050
      %2219 = vmatprep.subr.bf16.mxu0 %v2059
      %2220 = vmatpush1.bf16.msra.mxu0 %v2058
      %2221 = vmatprep.subr.bf16.mxu0 %v2067
      %2222 = vmatpush1.bf16.msra.mxu0 %v2066
      %2223 = vmatprep.subr.bf16.mxu0 %v2075
      %2224 = vmatpush1.bf16.msra.mxu0 %v2074
      %2225 = vmatprep.subr.bf16.mxu0 %v2083
      %2226 = vmatpush1.bf16.msra.mxu0 %v2082
      %2227 = vmatprep.subr.bf16.mxu0 %v2091
      %2228 = vmatpush1.bf16.msra.mxu0 %v2090
      %2229 = vmatprep.subr.bf16.mxu0 %v2162
      %2230 = vmatpush1.bf16.msra.mxu0 %v2159
      %2231 = vmatprep.subr.bf16.mxu0 0
      %2232 = vmatpush1.bf16.msra.mxu0 0
      %2233 = vmatprep.subr.bf16.mxu0 0
      %2234 = vmatpush1.bf16.msra.mxu0 0
      %2235 = vmatprep.subr.bf16.mxu0 0
      %2236 = vmatpush1.bf16.msra.mxu0 0
      %2237 = vmatprep.subr.bf16.mxu0 0
      %2238 = vmatpush1.bf16.msra.mxu0 0
      %2239 = vmatprep.subr.bf16.mxu0 0
      %2240 = vmatpush1.bf16.msra.mxu0 0
      %2241 = vmatprep.subr.bf16.mxu0 0
      %2242 = vmatpush1.bf16.msra.mxu0 0
      %2243 = vmatprep.subr.bf16.mxu0 0
      %2244 = vmatpush1.bf16.msra.mxu0 0
      %2245 = vmatprep.subr.bf16.mxu0 0
      %2246 = vmatpush1.bf16.msra.mxu0 0
      %2247 = vmatprep.subr.bf16.mxu0 0
      %2248 = vmatpush1.bf16.msra.mxu0 0
      %2249 = vmatprep.mubr.bf16.mxu0 0
      %2250 = vmatmul.mubr.bf16.gmra.mrb[0].mxu0 %v565
      %v2251 = vpop.f32.mrb[0].mxu0
      %v2252 = vadd.f32 0.0, %v2251
      %v2253 = vpop.f32.mrb[0].mxu0
      %v2254 = vadd.f32 0.0, %v2253
      %v2255 = vpop.f32.mrb[0].mxu0
      %v2256 = vpop.f32.mrb[0].mxu0
      %2257 = vdwg.mxu0
      %2258 = vmatprep.subr.bf16.mxu0 %v2053
      %2259 = vmatpush1.bf16.msra.mxu0 %v2052
      %2260 = vmatprep.subr.bf16.mxu0 %v2061
      %2261 = vmatpush1.bf16.msra.mxu0 %v2060
      %2262 = vmatprep.subr.bf16.mxu0 %v2069
      %2263 = vmatpush1.bf16.msra.mxu0 %v2068
      %2264 = vmatprep.subr.bf16.mxu0 %v2077
      %2265 = vmatpush1.bf16.msra.mxu0 %v2076
      %2266 = vmatprep.subr.bf16.mxu0 %v2085
      %2267 = vmatpush1.bf16.msra.mxu0 %v2084
      %2268 = vmatprep.subr.bf16.mxu0 %v2093
      %2269 = vmatpush1.bf16.msra.mxu0 %v2092
      %2270 = vmatprep.subr.bf16.mxu0 %v2168
      %2271 = vmatpush1.bf16.msra.mxu0 %v2165
      %2272 = vmatprep.subr.bf16.mxu0 0
      %2273 = vmatpush1.bf16.msra.mxu0 0
      %2274 = vmatprep.subr.bf16.mxu0 0
      %2275 = vmatpush1.bf16.msra.mxu0 0
      %2276 = vmatprep.subr.bf16.mxu0 0
      %2277 = vmatpush1.bf16.msra.mxu0 0
      %2278 = vmatprep.subr.bf16.mxu0 0
      %2279 = vmatpush1.bf16.msra.mxu0 0
      %2280 = vmatprep.subr.bf16.mxu0 0
      %2281 = vmatpush1.bf16.msra.mxu0 0
      %2282 = vmatprep.subr.bf16.mxu0 0
      %2283 = vmatpush1.bf16.msra.mxu0 0
      %2284 = vmatprep.subr.bf16.mxu0 0
      %2285 = vmatpush1.bf16.msra.mxu0 0
      %2286 = vmatprep.subr.bf16.mxu0 0
      %2287 = vmatpush1.bf16.msra.mxu0 0
      %2288 = vmatprep.subr.bf16.mxu0 0
      %2289 = vmatpush1.bf16.msra.mxu0 0
      %2290 = vmatprep.mubr.bf16.mxu0 0
      %2291 = vmatmul.mubr.bf16.gmra.mrb[0].mxu0 %v565
      %v2292 = vpop.f32.mrb[0].mxu0
      %v2293 = vadd.f32 0.0, %v2292
      %v2294 = vpop.f32.mrb[0].mxu0
      %v2295 = vadd.f32 0.0, %v2294
      %v2296 = vpop.f32.mrb[0].mxu0
      %v2297 = vpop.f32.mrb[0].mxu0
      %2298 = vdwg.mxu0
      %2299 = vmatprep.subr.bf16.mxu0 %v2055
      %2300 = vmatpush1.bf16.msra.mxu0 %v2054
      %2301 = vmatprep.subr.bf16.mxu0 %v2063
      %2302 = vmatpush1.bf16.msra.mxu0 %v2062
      %2303 = vmatprep.subr.bf16.mxu0 %v2071
      %2304 = vmatpush1.bf16.msra.mxu0 %v2070
      %2305 = vmatprep.subr.bf16.mxu0 %v2079
      %2306 = vmatpush1.bf16.msra.mxu0 %v2078
      %2307 = vmatprep.subr.bf16.mxu0 %v2087
      %2308 = vmatpush1.bf16.msra.mxu0 %v2086
      %2309 = vmatprep.subr.bf16.mxu0 %v2095
      %2310 = vmatpush1.bf16.msra.mxu0 %v2094
      %2311 = vmatprep.subr.bf16.mxu0 %v2174
      %2312 = vmatpush1.bf16.msra.mxu0 %v2171
      %2313 = vmatprep.subr.bf16.mxu0 0
      %2314 = vmatpush1.bf16.msra.mxu0 0
      %2315 = vmatprep.subr.bf16.mxu0 0
      %2316 = vmatpush1.bf16.msra.mxu0 0
      %2317 = vmatprep.subr.bf16.mxu0 0
      %2318 = vmatpush1.bf16.msra.mxu0 0
      %2319 = vmatprep.subr.bf16.mxu0 0
      %2320 = vmatpush1.bf16.msra.mxu0 0
      %2321 = vmatprep.subr.bf16.mxu0 0
      %2322 = vmatpush1.bf16.msra.mxu0 0
      %2323 = vmatprep.subr.bf16.mxu0 0
      %2324 = vmatpush1.bf16.msra.mxu0 0
      %2325 = vmatprep.subr.bf16.mxu0 0
      %2326 = vmatpush1.bf16.msra.mxu0 0
      %2327 = vmatprep.subr.bf16.mxu0 0
      %2328 = vmatpush1.bf16.msra.mxu0 0
      %2329 = vmatprep.subr.bf16.mxu0 0
      %2330 = vmatpush1.bf16.msra.mxu0 0
      %2331 = vmatprep.mubr.bf16.mxu0 0
      %2332 = vmatmul.mubr.bf16.gmra.mrb[0].mxu0 %v565
      %v2333 = vpop.f32.mrb[0].mxu0
      %v2334 = vadd.f32 0.0, %v2333
      %v2335 = vpop.f32.mrb[0].mxu0
      %v2336 = vadd.f32 0.0, %v2335
      %v2337 = vpop.f32.mrb[0].mxu0
      %v2338 = vpop.f32.mrb[0].mxu0
      %2339 = vdwg.mxu0
      %v2396 = vunpack.c.l.b16 %v1768
      %v2397 = vunpack.c.h.b16 %v1768
      %v2398 = vunpack.c.l.b16 %v1769
      %v2399 = vunpack.c.h.b16 %v1769
      %v2400 = vunpack.c.l.b16 %v1770
      %v2401 = vunpack.c.h.b16 %v1770
      %v2402 = vunpack.c.l.b16 %v1771
      %v2403 = vunpack.c.h.b16 %v1771
      %v2404 = vunpack.c.l.b16 %v1772
      %v2405 = vunpack.c.h.b16 %v1772
      %v2406 = vunpack.c.l.b16 %v1773
      %v2407 = vunpack.c.h.b16 %v1773
      %v2408 = vunpack.c.l.b16 %v1774
      %v2409 = vunpack.c.h.b16 %v1774
      %v2410 = vunpack.c.l.b16 %v1775
      %v2411 = vunpack.c.h.b16 %v1775
      %v2412 = vunpack.c.l.b16 %v1776
      %v2413 = vunpack.c.h.b16 %v1776
      %v2414 = vunpack.c.l.b16 %v1777
      %v2415 = vunpack.c.h.b16 %v1777
      %v2416 = vunpack.c.l.b16 %v1778
      %v2417 = vunpack.c.h.b16 %v1778
      %v2418 = vunpack.c.l.b16 %v1779
      %v2419 = vunpack.c.h.b16 %v1779
      %v2420 = vunpack.c.l.b16 %v1780
      %v2421 = vunpack.c.h.b16 %v1780
      %v2422 = vunpack.c.l.b16 %v1781
      %v2423 = vunpack.c.h.b16 %v1781
      %v2424 = vunpack.c.l.b16 %v1782
      %v2425 = vunpack.c.h.b16 %v1782
      %v2426 = vunpack.c.l.b16 %v1783
      %v2427 = vunpack.c.h.b16 %v1783
      %v2428 = vunpack.c.l.b16 %v1784
      %v2429 = vunpack.c.h.b16 %v1784
      %v2430 = vunpack.c.l.b16 %v1785
      %v2431 = vunpack.c.h.b16 %v1785
      %v2432 = vunpack.c.l.b16 %v1786
      %v2433 = vunpack.c.h.b16 %v1786
      %v2434 = vunpack.c.l.b16 %v1787
      %v2435 = vunpack.c.h.b16 %v1787
      %v2436 = vunpack.c.l.b16 %v1788
      %v2437 = vunpack.c.h.b16 %v1788
      %v2438 = vunpack.c.l.b16 %v1789
      %v2439 = vunpack.c.h.b16 %v1789
      %v2440 = vunpack.c.l.b16 %v1790
      %v2441 = vunpack.c.h.b16 %v1790
      %v2442 = vunpack.c.l.b16 %v1791
      %v2443 = vunpack.c.h.b16 %v1791
      %v2444 = vunpack.c.l.b16 %v1792
      %v2445 = vunpack.c.h.b16 %v1792
      %v2446 = vunpack.c.l.b16 %v1793
      %v2447 = vunpack.c.h.b16 %v1793
      %v2448 = vunpack.c.l.b16 %v1794
      %v2449 = vunpack.c.h.b16 %v1794
      %v2450 = vunpack.c.l.b16 %v1795
      %v2451 = vunpack.c.h.b16 %v1795
      %v2452 = vunpack.c.l.b16 %v1796
      %v2453 = vunpack.c.h.b16 %v1796
      %v2454 = vunpack.c.l.b16 %v1797
      %v2455 = vunpack.c.h.b16 %v1797
      %v2456 = vunpack.c.l.b16 %v1798
      %v2457 = vunpack.c.h.b16 %v1798
      %v2458 = vunpack.c.l.b16 %v1799
      %v2459 = vunpack.c.h.b16 %v1799
      %v2460 = vunpack.c.l.b16 %v1800
      %v2461 = vunpack.c.h.b16 %v1800
      %v2462 = vunpack.c.l.b16 %v1801
      %v2463 = vunpack.c.h.b16 %v1801
      %v2464 = vunpack.c.l.b16 %v1802
      %v2465 = vunpack.c.h.b16 %v1802
      %v2466 = vunpack.c.l.b16 %v1803
      %v2467 = vunpack.c.h.b16 %v1803
      %v2468 = vunpack.c.l.b16 %v1804
      %v2469 = vunpack.c.h.b16 %v1804
      %v2470 = vunpack.c.l.b16 %v1805
      %v2471 = vunpack.c.h.b16 %v1805
      %v2472 = vunpack.c.l.b16 %v1806
      %v2473 = vunpack.c.h.b16 %v1806
      %v2474 = vunpack.c.l.b16 %v1807
      %v2475 = vunpack.c.h.b16 %v1807
      %v2476 = vunpack.c.l.b16 %v1808
      %v2477 = vunpack.c.h.b16 %v1808
      %v2478 = vunpack.c.l.b16 %v1809
      %v2479 = vunpack.c.h.b16 %v1809
      %v2480 = vunpack.c.l.b16 %v1810
      %v2481 = vunpack.c.h.b16 %v1810
      %v2482 = vunpack.c.l.b16 %v1811
      %v2483 = vunpack.c.h.b16 %v1811
      %v2484 = vunpack.c.l.b16 %v1812
      %v2485 = vunpack.c.h.b16 %v1812
      %v2486 = vunpack.c.l.b16 %v1813
      %v2487 = vunpack.c.h.b16 %v1813
      %v2488 = vunpack.c.l.b16 %v1814
      %v2489 = vunpack.c.h.b16 %v1814
      %v2490 = vunpack.c.l.b16 %v1815
      %v2491 = vunpack.c.h.b16 %v1815
      %v2492 = vunpack.c.l.b16 %v1816
      %v2493 = vunpack.c.h.b16 %v1816
      %v2494 = vunpack.c.l.b16 %v1817
      %v2495 = vunpack.c.h.b16 %v1817
      %v2496 = vunpack.c.l.b16 %v1818
      %v2497 = vunpack.c.h.b16 %v1818
      %v2498 = vunpack.c.l.b16 %v1819
      %v2499 = vunpack.c.h.b16 %v1819
      %v2500 = vunpack.c.l.b16 %v1820
      %v2501 = vunpack.c.h.b16 %v1820
      %v2502 = vunpack.c.l.b16 %v1821
      %v2503 = vunpack.c.h.b16 %v1821
      %v2504 = vunpack.c.l.b16 %v1822
      %v2505 = vunpack.c.h.b16 %v1822
      %v2506 = vunpack.c.l.b16 %v1823
      %v2507 = vunpack.c.h.b16 %v1823
      %v2508 = vpack.c.b16 %v2404, %v2396
      %v2509 = vpack.c.b16 %v2405, %v2397
      %v2510 = vpack.c.b16 %v2406, %v2398
      %v2511 = vpack.c.b16 %v2407, %v2399
      %v2512 = vpack.c.b16 %v2408, %v2400
      %v2513 = vpack.c.b16 %v2409, %v2401
      %v2514 = vpack.c.b16 %v2410, %v2402
      %v2515 = vpack.c.b16 %v2411, %v2403
      %v2516 = vpack.c.b16 %v2420, %v2412
      %v2517 = vpack.c.b16 %v2421, %v2413
      %v2518 = vpack.c.b16 %v2422, %v2414
      %v2519 = vpack.c.b16 %v2423, %v2415
      %v2520 = vpack.c.b16 %v2424, %v2416
      %v2521 = vpack.c.b16 %v2425, %v2417
      %v2522 = vpack.c.b16 %v2426, %v2418
      %v2523 = vpack.c.b16 %v2427, %v2419
      %v2524 = vpack.c.b16 %v2436, %v2428
      %v2525 = vpack.c.b16 %v2437, %v2429
      %v2526 = vpack.c.b16 %v2438, %v2430
      %v2527 = vpack.c.b16 %v2439, %v2431
      %v2528 = vpack.c.b16 %v2440, %v2432
      %v2529 = vpack.c.b16 %v2441, %v2433
      %v2530 = vpack.c.b16 %v2442, %v2434
      %v2531 = vpack.c.b16 %v2443, %v2435
      %v2532 = vpack.c.b16 %v2452, %v2444
      %v2533 = vpack.c.b16 %v2453, %v2445
      %v2534 = vpack.c.b16 %v2454, %v2446
      %v2535 = vpack.c.b16 %v2455, %v2447
      %v2536 = vpack.c.b16 %v2456, %v2448
      %v2537 = vpack.c.b16 %v2457, %v2449
      %v2538 = vpack.c.b16 %v2458, %v2450
      %v2539 = vpack.c.b16 %v2459, %v2451
      %v2540 = vpack.c.b16 %v2468, %v2460
      %v2541 = vpack.c.b16 %v2469, %v2461
      %v2542 = vpack.c.b16 %v2470, %v2462
      %v2543 = vpack.c.b16 %v2471, %v2463
      %v2544 = vpack.c.b16 %v2472, %v2464
      %v2545 = vpack.c.b16 %v2473, %v2465
      %v2546 = vpack.c.b16 %v2474, %v2466
      %v2547 = vpack.c.b16 %v2475, %v2467
      %v2548 = vpack.c.b16 %v2484, %v2476
      %v2549 = vpack.c.b16 %v2485, %v2477
      %v2550 = vpack.c.b16 %v2486, %v2478
      %v2551 = vpack.c.b16 %v2487, %v2479
      %v2552 = vpack.c.b16 %v2488, %v2480
      %v2553 = vpack.c.b16 %v2489, %v2481
      %v2554 = vpack.c.b16 %v2490, %v2482
      %v2555 = vpack.c.b16 %v2491, %v2483
      %v2556 = vpack.c.b16 %v2500, %v2492
      %v2557 = vpack.c.b16 %v2501, %v2493
      %v2558 = vpack.c.b16 %v2502, %v2494
      %v2559 = vpack.c.b16 %v2503, %v2495
      %v2560 = vpack.c.b16 %v2504, %v2496
      %v2561 = vpack.c.b16 %v2505, %v2497
      %v2562 = vpack.c.b16 %v2506, %v2498
      %v2563 = vpack.c.b16 %v2507, %v2499
      %v2613 = vsel %vm567, %v2556, 0
      %v2616 = vsel %vm567, %v2557, 0
      %v2619 = vsel %vm567, %v2558, 0
      %v2622 = vsel %vm567, %v2559, 0
      %v2625 = vsel %vm567, %v2560, 0
      %v2628 = vsel %vm567, %v2561, 0
      %v2631 = vsel %vm567, %v2562, 0
      %v2634 = vsel %vm567, %v2563, 0
      %2636 = vmatprep.subr.bf16.mxu0 %v2509
      %2637 = vmatpush1.bf16.msra.mxu0 %v2508
      %2638 = vmatprep.subr.bf16.mxu0 %v2517
      %2639 = vmatpush1.bf16.msra.mxu0 %v2516
      %2640 = vmatprep.subr.bf16.mxu0 %v2525
      %2641 = vmatpush1.bf16.msra.mxu0 %v2524
      %2642 = vmatprep.subr.bf16.mxu0 %v2533
      %2643 = vmatpush1.bf16.msra.mxu0 %v2532
      %2644 = vmatprep.subr.bf16.mxu0 %v2541
      %2645 = vmatpush1.bf16.msra.mxu0 %v2540
      %2646 = vmatprep.subr.bf16.mxu0 %v2549
      %2647 = vmatpush1.bf16.msra.mxu0 %v2548
      %2648 = vmatprep.subr.bf16.mxu0 %v2616
      %2649 = vmatpush1.bf16.msra.mxu0 %v2613
      %2650 = vmatprep.subr.bf16.mxu0 0
      %2651 = vmatpush1.bf16.msra.mxu0 0
      %2652 = vmatprep.subr.bf16.mxu0 0
      %2653 = vmatpush1.bf16.msra.mxu0 0
      %2654 = vmatprep.subr.bf16.mxu0 0
      %2655 = vmatpush1.bf16.msra.mxu0 0
      %2656 = vmatprep.subr.bf16.mxu0 0
      %2657 = vmatpush1.bf16.msra.mxu0 0
      %2658 = vmatprep.subr.bf16.mxu0 0
      %2659 = vmatpush1.bf16.msra.mxu0 0
      %2660 = vmatprep.subr.bf16.mxu0 0
      %2661 = vmatpush1.bf16.msra.mxu0 0
      %2662 = vmatprep.subr.bf16.mxu0 0
      %2663 = vmatpush1.bf16.msra.mxu0 0
      %2664 = vmatprep.subr.bf16.mxu0 0
      %2665 = vmatpush1.bf16.msra.mxu0 0
      %2666 = vmatprep.subr.bf16.mxu0 0
      %2667 = vmatpush1.bf16.msra.mxu0 0
      %2668 = vmatprep.mubr.bf16.mxu0 0
      %2669 = vmatmul.mubr.bf16.gmra.mrb[0].mxu0 %v1029
      %v2670 = vpop.f32.mrb[0].mxu0
      %v2671 = vadd.f32 %v2211, %v2670
      %v2672 = vpop.f32.mrb[0].mxu0
      %v2673 = vadd.f32 %v2213, %v2672
      %v2674 = vpop.f32.mrb[0].mxu0
      %v2675 = vpop.f32.mrb[0].mxu0
      %2676 = vdwg.mxu0
      %2677 = vmatprep.subr.bf16.mxu0 %v2511
      %2678 = vmatpush1.bf16.msra.mxu0 %v2510
      %2679 = vmatprep.subr.bf16.mxu0 %v2519
      %2680 = vmatpush1.bf16.msra.mxu0 %v2518
      %2681 = vmatprep.subr.bf16.mxu0 %v2527
      %2682 = vmatpush1.bf16.msra.mxu0 %v2526
      %2683 = vmatprep.subr.bf16.mxu0 %v2535
      %2684 = vmatpush1.bf16.msra.mxu0 %v2534
      %2685 = vmatprep.subr.bf16.mxu0 %v2543
      %2686 = vmatpush1.bf16.msra.mxu0 %v2542
      %2687 = vmatprep.subr.bf16.mxu0 %v2551
      %2688 = vmatpush1.bf16.msra.mxu0 %v2550
      %2689 = vmatprep.subr.bf16.mxu0 %v2622
      %2690 = vmatpush1.bf16.msra.mxu0 %v2619
      %2691 = vmatprep.subr.bf16.mxu0 0
      %2692 = vmatpush1.bf16.msra.mxu0 0
      %2693 = vmatprep.subr.bf16.mxu0 0
      %2694 = vmatpush1.bf16.msra.mxu0 0
      %2695 = vmatprep.subr.bf16.mxu0 0
      %2696 = vmatpush1.bf16.msra.mxu0 0
      %2697 = vmatprep.subr.bf16.mxu0 0
      %2698 = vmatpush1.bf16.msra.mxu0 0
      %2699 = vmatprep.subr.bf16.mxu0 0
      %2700 = vmatpush1.bf16.msra.mxu0 0
      %2701 = vmatprep.subr.bf16.mxu0 0
      %2702 = vmatpush1.bf16.msra.mxu0 0
      %2703 = vmatprep.subr.bf16.mxu0 0
      %2704 = vmatpush1.bf16.msra.mxu0 0
      %2705 = vmatprep.subr.bf16.mxu0 0
      %2706 = vmatpush1.bf16.msra.mxu0 0
      %2707 = vmatprep.subr.bf16.mxu0 0
      %2708 = vmatpush1.bf16.msra.mxu0 0
      %2709 = vmatprep.mubr.bf16.mxu0 0
      %2710 = vmatmul.mubr.bf16.gmra.mrb[0].mxu0 %v1029
      %v2711 = vpop.f32.mrb[0].mxu0
      %v2712 = vadd.f32 %v2252, %v2711
      %v2713 = vpop.f32.mrb[0].mxu0
      %v2714 = vadd.f32 %v2254, %v2713
      %v2715 = vpop.f32.mrb[0].mxu0
      %v2716 = vpop.f32.mrb[0].mxu0
      %2717 = vdwg.mxu0
      %2718 = vmatprep.subr.bf16.mxu0 %v2513
      %2719 = vmatpush1.bf16.msra.mxu0 %v2512
      %2720 = vmatprep.subr.bf16.mxu0 %v2521
      %2721 = vmatpush1.bf16.msra.mxu0 %v2520
      %2722 = vmatprep.subr.bf16.mxu0 %v2529
      %2723 = vmatpush1.bf16.msra.mxu0 %v2528
      %2724 = vmatprep.subr.bf16.mxu0 %v2537
      %2725 = vmatpush1.bf16.msra.mxu0 %v2536
      %2726 = vmatprep.subr.bf16.mxu0 %v2545
      %2727 = vmatpush1.bf16.msra.mxu0 %v2544
      %2728 = vmatprep.subr.bf16.mxu0 %v2553
      %2729 = vmatpush1.bf16.msra.mxu0 %v2552
      %2730 = vmatprep.subr.bf16.mxu0 %v2628
      %2731 = vmatpush1.bf16.msra.mxu0 %v2625
      %2732 = vmatprep.subr.bf16.mxu0 0
      %2733 = vmatpush1.bf16.msra.mxu0 0
      %2734 = vmatprep.subr.bf16.mxu0 0
      %2735 = vmatpush1.bf16.msra.mxu0 0
      %2736 = vmatprep.subr.bf16.mxu0 0
      %2737 = vmatpush1.bf16.msra.mxu0 0
      %2738 = vmatprep.subr.bf16.mxu0 0
      %2739 = vmatpush1.bf16.msra.mxu0 0
      %2740 = vmatprep.subr.bf16.mxu0 0
      %2741 = vmatpush1.bf16.msra.mxu0 0
      %2742 = vmatprep.subr.bf16.mxu0 0
      %2743 = vmatpush1.bf16.msra.mxu0 0
      %2744 = vmatprep.subr.bf16.mxu0 0
      %2745 = vmatpush1.bf16.msra.mxu0 0
      %2746 = vmatprep.subr.bf16.mxu0 0
      %2747 = vmatpush1.bf16.msra.mxu0 0
      %2748 = vmatprep.subr.bf16.mxu0 0
      %2749 = vmatpush1.bf16.msra.mxu0 0
      %2750 = vmatprep.mubr.bf16.mxu0 0
      %2751 = vmatmul.mubr.bf16.gmra.mrb[0].mxu0 %v1029
      %v2752 = vpop.f32.mrb[0].mxu0
      %v2753 = vadd.f32 %v2293, %v2752
      %v2754 = vpop.f32.mrb[0].mxu0
      %v2755 = vadd.f32 %v2295, %v2754
      %v2756 = vpop.f32.mrb[0].mxu0
      %v2757 = vpop.f32.mrb[0].mxu0
      %2758 = vdwg.mxu0
      %2759 = vmatprep.subr.bf16.mxu0 %v2515
      %2760 = vmatpush1.bf16.msra.mxu0 %v2514
      %2761 = vmatprep.subr.bf16.mxu0 %v2523
      %2762 = vmatpush1.bf16.msra.mxu0 %v2522
      %2763 = vmatprep.subr.bf16.mxu0 %v2531
      %2764 = vmatpush1.bf16.msra.mxu0 %v2530
      %2765 = vmatprep.subr.bf16.mxu0 %v2539
      %2766 = vmatpush1.bf16.msra.mxu0 %v2538
      %2767 = vmatprep.subr.bf16.mxu0 %v2547
      %2768 = vmatpush1.bf16.msra.mxu0 %v2546
      %2769 = vmatprep.subr.bf16.mxu0 %v2555
      %2770 = vmatpush1.bf16.msra.mxu0 %v2554
      %2771 = vmatprep.subr.bf16.mxu0 %v2634
      %2772 = vmatpush1.bf16.msra.mxu0 %v2631
      %2773 = vmatprep.subr.bf16.mxu0 0
      %2774 = vmatpush1.bf16.msra.mxu0 0
      %2775 = vmatprep.subr.bf16.mxu0 0
      %2776 = vmatpush1.bf16.msra.mxu0 0
      %2777 = vmatprep.subr.bf16.mxu0 0
      %2778 = vmatpush1.bf16.msra.mxu0 0
      %2779 = vmatprep.subr.bf16.mxu0 0
      %2780 = vmatpush1.bf16.msra.mxu0 0
      %2781 = vmatprep.subr.bf16.mxu0 0
      %2782 = vmatpush1.bf16.msra.mxu0 0
      %2783 = vmatprep.subr.bf16.mxu0 0
      %2784 = vmatpush1.bf16.msra.mxu0 0
      %2785 = vmatprep.subr.bf16.mxu0 0
      %2786 = vmatpush1.bf16.msra.mxu0 0
      %2787 = vmatprep.subr.bf16.mxu0 0
      %2788 = vmatpush1.bf16.msra.mxu0 0
      %2789 = vmatprep.subr.bf16.mxu0 0
      %2790 = vmatpush1.bf16.msra.mxu0 0
      %2791 = vmatprep.mubr.bf16.mxu0 0
      %2792 = vmatmul.mubr.bf16.gmra.mrb[0].mxu0 %v1029
      %v2793 = vpop.f32.mrb[0].mxu0
      %v2794 = vadd.f32 %v2334, %v2793
      %v2795 = vpop.f32.mrb[0].mxu0
      %v2796 = vadd.f32 %v2336, %v2795
      %v2797 = vpop.f32.mrb[0].mxu0
      %v2798 = vpop.f32.mrb[0].mxu0
      %2799 = vdwg.mxu0
      %s2800 = scalar_lea.vmem %s165, 1344
      %v2801 = vld [vmem:[%s2800] sm:$0xff]
      %v2802 = vld [vmem:[%s2800 + $0x8] sm:$0xff]
      %v2803 = vld [vmem:[%s2800 + $0x10] sm:$0xff]
      %v2804 = vld [vmem:[%s2800 + $0x18] sm:$0xff]
      %v2805 = vld [vmem:[%s2800 + $0x20] sm:$0xff]
      %v2806 = vld [vmem:[%s2800 + $0x28] sm:$0xff]
      %v2807 = vld [vmem:[%s2800 + $0x30] sm:$0xff]
      %v2808 = vld [vmem:[%s2800 + $0x38] sm:$0xff]
      %v2809 = vld [vmem:[%s2800 + $0x40] sm:$0xff]
      %v2810 = vld [vmem:[%s2800 + $0x48] sm:$0xff]
      %v2811 = vld [vmem:[%s2800 + $0x50] sm:$0xff]
      %v2812 = vld [vmem:[%s2800 + $0x58] sm:$0xff]
      %v2813 = vld [vmem:[%s2800 + $0x60] sm:$0xff]
      %v2814 = vld [vmem:[%s2800 + $0x68] sm:$0xff]
      %v2815 = vld [vmem:[%s2800 + $0x70] sm:$0xff]
      %v2816 = vld [vmem:[%s2800 + $0x78] sm:$0xff]
      %v2817 = vld [vmem:[%s2800 + $0x80] sm:$0xff]
      %v2818 = vld [vmem:[%s2800 + $0x88] sm:$0xff]
      %v2819 = vld [vmem:[%s2800 + $0x90] sm:$0xff]
      %v2820 = vld [vmem:[%s2800 + $0x98] sm:$0xff]
      %v2821 = vld [vmem:[%s2800 + $0xa0] sm:$0xff]
      %v2822 = vld [vmem:[%s2800 + $0xa8] sm:$0xff]
      %v2823 = vld [vmem:[%s2800 + $0xb0] sm:$0xff]
      %v2824 = vld [vmem:[%s2800 + $0xb8] sm:$0xff]
      %v2825 = vld [vmem:[%s2800 + $0xc0] sm:$0xff]
      %v2826 = vld [vmem:[%s2800 + $0xc8] sm:$0xff]
      %v2827 = vld [vmem:[%s2800 + $0xd0] sm:$0xff]
      %v2828 = vld [vmem:[%s2800 + $0xd8] sm:$0xff]
      %v2829 = vld [vmem:[%s2800 + $0xe0] sm:$0xff]
      %v2830 = vld [vmem:[%s2800 + $0xe8] sm:$0xff]
      %v2831 = vld [vmem:[%s2800 + $0xf0] sm:$0xff]
      %v2832 = vld [vmem:[%s2800 + $0xf8] sm:$0xff]
      %v2833 = vld [vmem:[%s2800 + $0x100] sm:$0xff]
      %v2834 = vld [vmem:[%s2800 + $0x108] sm:$0xff]
      %v2835 = vld [vmem:[%s2800 + $0x110] sm:$0xff]
      %v2836 = vld [vmem:[%s2800 + $0x118] sm:$0xff]
      %v2837 = vld [vmem:[%s2800 + $0x120] sm:$0xff]
      %v2838 = vld [vmem:[%s2800 + $0x128] sm:$0xff]
      %v2839 = vld [vmem:[%s2800 + $0x130] sm:$0xff]
      %v2840 = vld [vmem:[%s2800 + $0x138] sm:$0xff]
      %v2841 = vld [vmem:[%s2800 + $0x140] sm:$0xff]
      %v2842 = vld [vmem:[%s2800 + $0x148] sm:$0xff]
      %v2843 = vld [vmem:[%s2800 + $0x150] sm:$0xff]
      %v2844 = vld [vmem:[%s2800 + $0x158] sm:$0xff]
      %v2845 = vld [vmem:[%s2800 + $0x160] sm:$0xff]
      %v2846 = vld [vmem:[%s2800 + $0x168] sm:$0xff]
      %v2847 = vld [vmem:[%s2800 + $0x170] sm:$0xff]
      %v2848 = vld [vmem:[%s2800 + $0x178] sm:$0xff]
      %v2849 = vld [vmem:[%s2800 + $0x180] sm:$0xff]
      %v2850 = vld [vmem:[%s2800 + $0x188] sm:$0xff]
      %v2851 = vld [vmem:[%s2800 + $0x190] sm:$0xff]
      %v2852 = vld [vmem:[%s2800 + $0x198] sm:$0xff]
      %v2853 = vld [vmem:[%s2800 + $0x1a0] sm:$0x33]
      %v2854 = vld [vmem:[%s2800 + $0x1a8] sm:$0x33]
      %v2855 = vld [vmem:[%s2800 + $0x1b0] sm:$0x33]
      %v2856 = vld [vmem:[%s2800 + $0x1b8] sm:$0x33]
      %v2913 = vunpack.c.l.b16 %v2801
      %v2914 = vunpack.c.h.b16 %v2801
      %v2915 = vunpack.c.l.b16 %v2802
      %v2916 = vunpack.c.h.b16 %v2802
      %v2917 = vunpack.c.l.b16 %v2803
      %v2918 = vunpack.c.h.b16 %v2803
      %v2919 = vunpack.c.l.b16 %v2804
      %v2920 = vunpack.c.h.b16 %v2804
      %v2921 = vunpack.c.l.b16 %v2805
      %v2922 = vunpack.c.h.b16 %v2805
      %v2923 = vunpack.c.l.b16 %v2806
      %v2924 = vunpack.c.h.b16 %v2806
      %v2925 = vunpack.c.l.b16 %v2807
      %v2926 = vunpack.c.h.b16 %v2807
      %v2927 = vunpack.c.l.b16 %v2808
      %v2928 = vunpack.c.h.b16 %v2808
      %v2929 = vunpack.c.l.b16 %v2809
      %v2930 = vunpack.c.h.b16 %v2809
      %v2931 = vunpack.c.l.b16 %v2810
      %v2932 = vunpack.c.h.b16 %v2810
      %v2933 = vunpack.c.l.b16 %v2811
      %v2934 = vunpack.c.h.b16 %v2811
      %v2935 = vunpack.c.l.b16 %v2812
      %v2936 = vunpack.c.h.b16 %v2812
      %v2937 = vunpack.c.l.b16 %v2813
      %v2938 = vunpack.c.h.b16 %v2813
      %v2939 = vunpack.c.l.b16 %v2814
      %v2940 = vunpack.c.h.b16 %v2814
      %v2941 = vunpack.c.l.b16 %v2815
      %v2942 = vunpack.c.h.b16 %v2815
      %v2943 = vunpack.c.l.b16 %v2816
      %v2944 = vunpack.c.h.b16 %v2816
      %v2945 = vunpack.c.l.b16 %v2817
      %v2946 = vunpack.c.h.b16 %v2817
      %v2947 = vunpack.c.l.b16 %v2818
      %v2948 = vunpack.c.h.b16 %v2818
      %v2949 = vunpack.c.l.b16 %v2819
      %v2950 = vunpack.c.h.b16 %v2819
      %v2951 = vunpack.c.l.b16 %v2820
      %v2952 = vunpack.c.h.b16 %v2820
      %v2953 = vunpack.c.l.b16 %v2821
      %v2954 = vunpack.c.h.b16 %v2821
      %v2955 = vunpack.c.l.b16 %v2822
      %v2956 = vunpack.c.h.b16 %v2822
      %v2957 = vunpack.c.l.b16 %v2823
      %v2958 = vunpack.c.h.b16 %v2823
      %v2959 = vunpack.c.l.b16 %v2824
      %v2960 = vunpack.c.h.b16 %v2824
      %v2961 = vunpack.c.l.b16 %v2825
      %v2962 = vunpack.c.h.b16 %v2825
      %v2963 = vunpack.c.l.b16 %v2826
      %v2964 = vunpack.c.h.b16 %v2826
      %v2965 = vunpack.c.l.b16 %v2827
      %v2966 = vunpack.c.h.b16 %v2827
      %v2967 = vunpack.c.l.b16 %v2828
      %v2968 = vunpack.c.h.b16 %v2828
      %v2969 = vunpack.c.l.b16 %v2829
      %v2970 = vunpack.c.h.b16 %v2829
      %v2971 = vunpack.c.l.b16 %v2830
      %v2972 = vunpack.c.h.b16 %v2830
      %v2973 = vunpack.c.l.b16 %v2831
      %v2974 = vunpack.c.h.b16 %v2831
      %v2975 = vunpack.c.l.b16 %v2832
      %v2976 = vunpack.c.h.b16 %v2832
      %v2977 = vunpack.c.l.b16 %v2833
      %v2978 = vunpack.c.h.b16 %v2833
      %v2979 = vunpack.c.l.b16 %v2834
      %v2980 = vunpack.c.h.b16 %v2834
      %v2981 = vunpack.c.l.b16 %v2835
      %v2982 = vunpack.c.h.b16 %v2835
      %v2983 = vunpack.c.l.b16 %v2836
      %v2984 = vunpack.c.h.b16 %v2836
      %v2985 = vunpack.c.l.b16 %v2837
      %v2986 = vunpack.c.h.b16 %v2837
      %v2987 = vunpack.c.l.b16 %v2838
      %v2988 = vunpack.c.h.b16 %v2838
      %v2989 = vunpack.c.l.b16 %v2839
      %v2990 = vunpack.c.h.b16 %v2839
      %v2991 = vunpack.c.l.b16 %v2840
      %v2992 = vunpack.c.h.b16 %v2840
      %v2993 = vunpack.c.l.b16 %v2841
      %v2994 = vunpack.c.h.b16 %v2841
      %v2995 = vunpack.c.l.b16 %v2842
      %v2996 = vunpack.c.h.b16 %v2842
      %v2997 = vunpack.c.l.b16 %v2843
      %v2998 = vunpack.c.h.b16 %v2843
      %v2999 = vunpack.c.l.b16 %v2844
      %v3000 = vunpack.c.h.b16 %v2844
      %v3001 = vunpack.c.l.b16 %v2845
      %v3002 = vunpack.c.h.b16 %v2845
      %v3003 = vunpack.c.l.b16 %v2846
      %v3004 = vunpack.c.h.b16 %v2846
      %v3005 = vunpack.c.l.b16 %v2847
      %v3006 = vunpack.c.h.b16 %v2847
      %v3007 = vunpack.c.l.b16 %v2848
      %v3008 = vunpack.c.h.b16 %v2848
      %v3009 = vunpack.c.l.b16 %v2849
      %v3010 = vunpack.c.h.b16 %v2849
      %v3011 = vunpack.c.l.b16 %v2850
      %v3012 = vunpack.c.h.b16 %v2850
      %v3013 = vunpack.c.l.b16 %v2851
      %v3014 = vunpack.c.h.b16 %v2851
      %v3015 = vunpack.c.l.b16 %v2852
      %v3016 = vunpack.c.h.b16 %v2852
      %v3017 = vunpack.c.l.b16 %v2853
      %v3018 = vunpack.c.h.b16 %v2853
      %v3019 = vunpack.c.l.b16 %v2854
      %v3020 = vunpack.c.h.b16 %v2854
      %v3021 = vunpack.c.l.b16 %v2855
      %v3022 = vunpack.c.h.b16 %v2855
      %v3023 = vunpack.c.l.b16 %v2856
      %v3024 = vunpack.c.h.b16 %v2856
      %v3025 = vpack.c.b16 %v2921, %v2913
      %v3026 = vpack.c.b16 %v2922, %v2914
      %v3027 = vpack.c.b16 %v2923, %v2915
      %v3028 = vpack.c.b16 %v2924, %v2916
      %v3029 = vpack.c.b16 %v2925, %v2917
      %v3030 = vpack.c.b16 %v2926, %v2918
      %v3031 = vpack.c.b16 %v2927, %v2919
      %v3032 = vpack.c.b16 %v2928, %v2920
      %v3033 = vpack.c.b16 %v2937, %v2929
      %v3034 = vpack.c.b16 %v2938, %v2930
      %v3035 = vpack.c.b16 %v2939, %v2931
      %v3036 = vpack.c.b16 %v2940, %v2932
      %v3037 = vpack.c.b16 %v2941, %v2933
      %v3038 = vpack.c.b16 %v2942, %v2934
      %v3039 = vpack.c.b16 %v2943, %v2935
      %v3040 = vpack.c.b16 %v2944, %v2936
      %v3041 = vpack.c.b16 %v2953, %v2945
      %v3042 = vpack.c.b16 %v2954, %v2946
      %v3043 = vpack.c.b16 %v2955, %v2947
      %v3044 = vpack.c.b16 %v2956, %v2948
      %v3045 = vpack.c.b16 %v2957, %v2949
      %v3046 = vpack.c.b16 %v2958, %v2950
      %v3047 = vpack.c.b16 %v2959, %v2951
      %v3048 = vpack.c.b16 %v2960, %v2952
      %v3049 = vpack.c.b16 %v2969, %v2961
      %v3050 = vpack.c.b16 %v2970, %v2962
      %v3051 = vpack.c.b16 %v2971, %v2963
      %v3052 = vpack.c.b16 %v2972, %v2964
      %v3053 = vpack.c.b16 %v2973, %v2965
      %v3054 = vpack.c.b16 %v2974, %v2966
      %v3055 = vpack.c.b16 %v2975, %v2967
      %v3056 = vpack.c.b16 %v2976, %v2968
      %v3057 = vpack.c.b16 %v2985, %v2977
      %v3058 = vpack.c.b16 %v2986, %v2978
      %v3059 = vpack.c.b16 %v2987, %v2979
      %v3060 = vpack.c.b16 %v2988, %v2980
      %v3061 = vpack.c.b16 %v2989, %v2981
      %v3062 = vpack.c.b16 %v2990, %v2982
      %v3063 = vpack.c.b16 %v2991, %v2983
      %v3064 = vpack.c.b16 %v2992, %v2984
      %v3065 = vpack.c.b16 %v3001, %v2993
      %v3066 = vpack.c.b16 %v3002, %v2994
      %v3067 = vpack.c.b16 %v3003, %v2995
      %v3068 = vpack.c.b16 %v3004, %v2996
      %v3069 = vpack.c.b16 %v3005, %v2997
      %v3070 = vpack.c.b16 %v3006, %v2998
      %v3071 = vpack.c.b16 %v3007, %v2999
      %v3072 = vpack.c.b16 %v3008, %v3000
      %v3073 = vpack.c.b16 %v3017, %v3009
      %v3074 = vpack.c.b16 %v3018, %v3010
      %v3075 = vpack.c.b16 %v3019, %v3011
      %v3076 = vpack.c.b16 %v3020, %v3012
      %v3077 = vpack.c.b16 %v3021, %v3013
      %v3078 = vpack.c.b16 %v3022, %v3014
      %v3079 = vpack.c.b16 %v3023, %v3015
      %v3080 = vpack.c.b16 %v3024, %v3016
      %v3130 = vsel %vm567, %v3073, 0
      %v3133 = vsel %vm567, %v3074, 0
      %v3136 = vsel %vm567, %v3075, 0
      %v3139 = vsel %vm567, %v3076, 0
      %v3142 = vsel %vm567, %v3077, 0
      %v3145 = vsel %vm567, %v3078, 0
      %v3148 = vsel %vm567, %v3079, 0
      %v3151 = vsel %vm567, %v3080, 0
      %3153 = vmatprep.subr.bf16.mxu0 %v3026
      %3154 = vmatpush1.bf16.msra.mxu0 %v3025
      %3155 = vmatprep.subr.bf16.mxu0 %v3034
      %3156 = vmatpush1.bf16.msra.mxu0 %v3033
      %3157 = vmatprep.subr.bf16.mxu0 %v3042
      %3158 = vmatpush1.bf16.msra.mxu0 %v3041
      %3159 = vmatprep.subr.bf16.mxu0 %v3050
      %3160 = vmatpush1.bf16.msra.mxu0 %v3049
      %3161 = vmatprep.subr.bf16.mxu0 %v3058
      %3162 = vmatpush1.bf16.msra.mxu0 %v3057
      %3163 = vmatprep.subr.bf16.mxu0 %v3066
      %3164 = vmatpush1.bf16.msra.mxu0 %v3065
      %3165 = vmatprep.subr.bf16.mxu0 %v3133
      %3166 = vmatpush1.bf16.msra.mxu0 %v3130
      %3167 = vmatprep.subr.bf16.mxu0 0
      %3168 = vmatpush1.bf16.msra.mxu0 0
      %3169 = vmatprep.subr.bf16.mxu0 0
      %3170 = vmatpush1.bf16.msra.mxu0 0
      %3171 = vmatprep.subr.bf16.mxu0 0
      %3172 = vmatpush1.bf16.msra.mxu0 0
      %3173 = vmatprep.subr.bf16.mxu0 0
      %3174 = vmatpush1.bf16.msra.mxu0 0
      %3175 = vmatprep.subr.bf16.mxu0 0
      %3176 = vmatpush1.bf16.msra.mxu0 0
      %3177 = vmatprep.subr.bf16.mxu0 0
      %3178 = vmatpush1.bf16.msra.mxu0 0
      %3179 = vmatprep.subr.bf16.mxu0 0
      %3180 = vmatpush1.bf16.msra.mxu0 0
      %3181 = vmatprep.subr.bf16.mxu0 0
      %3182 = vmatpush1.bf16.msra.mxu0 0
      %3183 = vmatprep.subr.bf16.mxu0 0
      %3184 = vmatpush1.bf16.msra.mxu0 0
      %3185 = vmatprep.mubr.bf16.mxu0 0
      %3186 = vmatmul.mubr.bf16.gmra.mrb[0].mxu0 %v1549
      %v3187 = vpop.f32.mrb[0].mxu0
      %v3188 = vadd.f32 0.0, %v3187
      %v3189 = vpop.f32.mrb[0].mxu0
      %v3190 = vadd.f32 0.0, %v3189
      %v3191 = vpop.f32.mrb[0].mxu0
      %v3192 = vpop.f32.mrb[0].mxu0
      %3193 = vdwg.mxu0
      %3194 = vmatprep.subr.bf16.mxu0 %v3028
      %3195 = vmatpush1.bf16.msra.mxu0 %v3027
      %3196 = vmatprep.subr.bf16.mxu0 %v3036
      %3197 = vmatpush1.bf16.msra.mxu0 %v3035
      %3198 = vmatprep.subr.bf16.mxu0 %v3044
      %3199 = vmatpush1.bf16.msra.mxu0 %v3043
      %3200 = vmatprep.subr.bf16.mxu0 %v3052
      %3201 = vmatpush1.bf16.msra.mxu0 %v3051
      %3202 = vmatprep.subr.bf16.mxu0 %v3060
      %3203 = vmatpush1.bf16.msra.mxu0 %v3059
      %3204 = vmatprep.subr.bf16.mxu0 %v3068
      %3205 = vmatpush1.bf16.msra.mxu0 %v3067
      %3206 = vmatprep.subr.bf16.mxu0 %v3139
      %3207 = vmatpush1.bf16.msra.mxu0 %v3136
      %3208 = vmatprep.subr.bf16.mxu0 0
      %3209 = vmatpush1.bf16.msra.mxu0 0
      %3210 = vmatprep.subr.bf16.mxu0 0
      %3211 = vmatpush1.bf16.msra.mxu0 0
      %3212 = vmatprep.subr.bf16.mxu0 0
      %3213 = vmatpush1.bf16.msra.mxu0 0
      %3214 = vmatprep.subr.bf16.mxu0 0
      %3215 = vmatpush1.bf16.msra.mxu0 0
      %3216 = vmatprep.subr.bf16.mxu0 0
      %3217 = vmatpush1.bf16.msra.mxu0 0
      %3218 = vmatprep.subr.bf16.mxu0 0
      %3219 = vmatpush1.bf16.msra.mxu0 0
      %3220 = vmatprep.subr.bf16.mxu0 0
      %3221 = vmatpush1.bf16.msra.mxu0 0
      %3222 = vmatprep.subr.bf16.mxu0 0
      %3223 = vmatpush1.bf16.msra.mxu0 0
      %3224 = vmatprep.subr.bf16.mxu0 0
      %3225 = vmatpush1.bf16.msra.mxu0 0
      %3226 = vmatprep.mubr.bf16.mxu0 0
      %3227 = vmatmul.mubr.bf16.gmra.mrb[0].mxu0 %v1549
      %v3228 = vpop.f32.mrb[0].mxu0
      %v3229 = vadd.f32 0.0, %v3228
      %v3230 = vpop.f32.mrb[0].mxu0
      %v3231 = vadd.f32 0.0, %v3230
      %v3232 = vpop.f32.mrb[0].mxu0
      %v3233 = vpop.f32.mrb[0].mxu0
      %3234 = vdwg.mxu0
      %3235 = vmatprep.subr.bf16.mxu0 %v3030
      %3236 = vmatpush1.bf16.msra.mxu0 %v3029
      %3237 = vmatprep.subr.bf16.mxu0 %v3038
      %3238 = vmatpush1.bf16.msra.mxu0 %v3037
      %3239 = vmatprep.subr.bf16.mxu0 %v3046
      %3240 = vmatpush1.bf16.msra.mxu0 %v3045
      %3241 = vmatprep.subr.bf16.mxu0 %v3054
      %3242 = vmatpush1.bf16.msra.mxu0 %v3053
      %3243 = vmatprep.subr.bf16.mxu0 %v3062
      %3244 = vmatpush1.bf16.msra.mxu0 %v3061
      %3245 = vmatprep.subr.bf16.mxu0 %v3070
      %3246 = vmatpush1.bf16.msra.mxu0 %v3069
      %3247 = vmatprep.subr.bf16.mxu0 %v3145
      %3248 = vmatpush1.bf16.msra.mxu0 %v3142
      %3249 = vmatprep.subr.bf16.mxu0 0
      %3250 = vmatpush1.bf16.msra.mxu0 0
      %3251 = vmatprep.subr.bf16.mxu0 0
      %3252 = vmatpush1.bf16.msra.mxu0 0
      %3253 = vmatprep.subr.bf16.mxu0 0
      %3254 = vmatpush1.bf16.msra.mxu0 0
      %3255 = vmatprep.subr.bf16.mxu0 0
      %3256 = vmatpush1.bf16.msra.mxu0 0
      %3257 = vmatprep.subr.bf16.mxu0 0
      %3258 = vmatpush1.bf16.msra.mxu0 0
      %3259 = vmatprep.subr.bf16.mxu0 0
      %3260 = vmatpush1.bf16.msra.mxu0 0
      %3261 = vmatprep.subr.bf16.mxu0 0
      %3262 = vmatpush1.bf16.msra.mxu0 0
      %3263 = vmatprep.subr.bf16.mxu0 0
      %3264 = vmatpush1.bf16.msra.mxu0 0
      %3265 = vmatprep.subr.bf16.mxu0 0
      %3266 = vmatpush1.bf16.msra.mxu0 0
      %3267 = vmatprep.mubr.bf16.mxu0 0
      %3268 = vmatmul.mubr.bf16.gmra.mrb[0].mxu0 %v1549
      %v3269 = vpop.f32.mrb[0].mxu0
      %v3270 = vadd.f32 0.0, %v3269
      %v3271 = vpop.f32.mrb[0].mxu0
      %v3272 = vadd.f32 0.0, %v3271
      %v3273 = vpop.f32.mrb[0].mxu0
      %v3274 = vpop.f32.mrb[0].mxu0
      %3275 = vdwg.mxu0
      %3276 = vmatprep.subr.bf16.mxu0 %v3032
      %3277 = vmatpush1.bf16.msra.mxu0 %v3031
      %3278 = vmatprep.subr.bf16.mxu0 %v3040
      %3279 = vmatpush1.bf16.msra.mxu0 %v3039
      %3280 = vmatprep.subr.bf16.mxu0 %v3048
      %3281 = vmatpush1.bf16.msra.mxu0 %v3047
      %3282 = vmatprep.subr.bf16.mxu0 %v3056
      %3283 = vmatpush1.bf16.msra.mxu0 %v3055
      %3284 = vmatprep.subr.bf16.mxu0 %v3064
      %3285 = vmatpush1.bf16.msra.mxu0 %v3063
      %3286 = vmatprep.subr.bf16.mxu0 %v3072
      %3287 = vmatpush1.bf16.msra.mxu0 %v3071
      %3288 = vmatprep.subr.bf16.mxu0 %v3151
      %3289 = vmatpush1.bf16.msra.mxu0 %v3148
      %3290 = vmatprep.subr.bf16.mxu0 0
      %3291 = vmatpush1.bf16.msra.mxu0 0
      %3292 = vmatprep.subr.bf16.mxu0 0
      %3293 = vmatpush1.bf16.msra.mxu0 0
      %3294 = vmatprep.subr.bf16.mxu0 0
      %3295 = vmatpush1.bf16.msra.mxu0 0
      %3296 = vmatprep.subr.bf16.mxu0 0
      %3297 = vmatpush1.bf16.msra.mxu0 0
      %3298 = vmatprep.subr.bf16.mxu0 0
      %3299 = vmatpush1.bf16.msra.mxu0 0
      %3300 = vmatprep.subr.bf16.mxu0 0
      %3301 = vmatpush1.bf16.msra.mxu0 0
      %3302 = vmatprep.subr.bf16.mxu0 0
      %3303 = vmatpush1.bf16.msra.mxu0 0
      %3304 = vmatprep.subr.bf16.mxu0 0
      %3305 = vmatpush1.bf16.msra.mxu0 0
      %3306 = vmatprep.subr.bf16.mxu0 0
      %3307 = vmatpush1.bf16.msra.mxu0 0
      %3308 = vmatprep.mubr.bf16.mxu0 0
      %3309 = vmatmul.mubr.bf16.gmra.mrb[0].mxu0 %v1549
      %v3310 = vpop.f32.mrb[0].mxu0
      %v3311 = vadd.f32 0.0, %v3310
      %v3312 = vpop.f32.mrb[0].mxu0
      %v3313 = vadd.f32 0.0, %v3312
      %v3314 = vpop.f32.mrb[0].mxu0
      %v3315 = vpop.f32.mrb[0].mxu0
      %3316 = vdwg.mxu0
      %v3317 = vadd.f32 %v2671, %v3188
      %v3318 = vadd.f32 %v2673, %v3190
      %v3319 = vadd.f32 %v2712, %v3229
      %v3320 = vadd.f32 %v2714, %v3231
      %v3321 = vadd.f32 %v2753, %v3270
      %v3322 = vadd.f32 %v2755, %v3272
      %v3323 = vadd.f32 %v2794, %v3311
      %v3324 = vadd.f32 %v2796, %v3313
      %v3325 = vadd.f32 %v3317, %v1750
      %v3326 = vadd.f32 %v3318, %v1750
      %v3327 = vadd.f32 %v3319, %v1750
      %v3328 = vadd.f32 %v3320, %v1750
      %v3329 = vadd.f32 %v3321, %v1750
      %v3330 = vadd.f32 %v3322, %v1750
      %v3331 = vadd.f32 %v3323, %v1750
      %v3332 = vadd.f32 %v3324, %v1750
      %3333 = vst [vmem:[%s170 + $0x40] sm:$0xff] %v3325
      %3334 = vst [vmem:[%s170 + $0x48] sm:$0xff] %v3326
      %3335 = vst [vmem:[%s170 + $0x50] sm:$0xff] %v3327
      %3336 = vst [vmem:[%s170 + $0x58] sm:$0xff] %v3328
      %3337 = vst [vmem:[%s170 + $0x60] sm:$0xff] %v3329
      %3338 = vst [vmem:[%s170 + $0x68] sm:$0xff] %v3330
      %3339 = vst [vmem:[%s170 + $0x70] sm:$0xff] %v3331
      %3340 = vst [vmem:[%s170 + $0x78] sm:$0xff] %v3332
      %v3341 = vld [vmem:[%s1219] sm:$0xff]
      %v3342 = vld [vmem:[%s1219 + $0x8] sm:$0xff]
      %v3343 = vld [vmem:[%s1219 + $0x10] sm:$0xff]
      %v3344 = vld [vmem:[%s1219 + $0x18] sm:$0xff]
      %v3345 = vld [vmem:[%s1219 + $0x20] sm:$0xff]
      %v3346 = vld [vmem:[%s1219 + $0x28] sm:$0xff]
      %v3347 = vld [vmem:[%s1219 + $0x30] sm:$0xff]
      %v3348 = vld [vmem:[%s1219 + $0x38] sm:$0xff]
      %v3349 = vld [vmem:[%s1219 + $0x40] sm:$0xff]
      %v3350 = vld [vmem:[%s1219 + $0x48] sm:$0xff]
      %v3351 = vld [vmem:[%s1219 + $0x50] sm:$0xff]
      %v3352 = vld [vmem:[%s1219 + $0x58] sm:$0xff]
      %v3353 = vld [vmem:[%s1219 + $0x60] sm:$0xff]
      %v3354 = vld [vmem:[%s1219 + $0x68] sm:$0xff]
      %v3355 = vld [vmem:[%s1219 + $0x70] sm:$0xff]
      %v3356 = vld [vmem:[%s1219 + $0x78] sm:$0xff]
      %v3357 = vld [vmem:[%s1219 + $0x80] sm:$0xff]
      %v3358 = vld [vmem:[%s1219 + $0x88] sm:$0xff]
      %v3359 = vld [vmem:[%s1219 + $0x90] sm:$0xff]
      %v3360 = vld [vmem:[%s1219 + $0x98] sm:$0xff]
      %v3361 = vld [vmem:[%s1219 + $0xa0] sm:$0xff]
      %v3362 = vld [vmem:[%s1219 + $0xa8] sm:$0xff]
      %v3363 = vld [vmem:[%s1219 + $0xb0] sm:$0xff]
      %v3364 = vld [vmem:[%s1219 + $0xb8] sm:$0xff]
      %v3365 = vld [vmem:[%s1219 + $0xc0] sm:$0xff]
      %v3366 = vld [vmem:[%s1219 + $0xc8] sm:$0xff]
      %v3367 = vld [vmem:[%s1219 + $0xd0] sm:$0xff]
      %v3368 = vld [vmem:[%s1219 + $0xd8] sm:$0xff]
      %v3369 = vld [vmem:[%s1219 + $0xe0] sm:$0xff]
      %v3370 = vld [vmem:[%s1219 + $0xe8] sm:$0xff]
      %v3371 = vld [vmem:[%s1219 + $0xf0] sm:$0xff]
      %v3372 = vld [vmem:[%s1219 + $0xf8] sm:$0xff]
      %v3373 = vld [vmem:[%s1219 + $0x100] sm:$0xff]
      %v3374 = vld [vmem:[%s1219 + $0x108] sm:$0xff]
      %v3375 = vld [vmem:[%s1219 + $0x110] sm:$0xff]
      %v3376 = vld [vmem:[%s1219 + $0x118] sm:$0xff]
      %v3377 = vld [vmem:[%s1219 + $0x120] sm:$0xff]
      %v3378 = vld [vmem:[%s1219 + $0x128] sm:$0xff]
      %v3379 = vld [vmem:[%s1219 + $0x130] sm:$0xff]
      %v3380 = vld [vmem:[%s1219 + $0x138] sm:$0xff]
      %v3381 = vld [vmem:[%s1219 + $0x140] sm:$0xff]
      %v3382 = vld [vmem:[%s1219 + $0x148] sm:$0xff]
      %v3383 = vld [vmem:[%s1219 + $0x150] sm:$0xff]
      %v3384 = vld [vmem:[%s1219 + $0x158] sm:$0xff]
      %v3385 = vld [vmem:[%s1219 + $0x160] sm:$0xff]
      %v3386 = vld [vmem:[%s1219 + $0x168] sm:$0xff]
      %v3387 = vld [vmem:[%s1219 + $0x170] sm:$0xff]
      %v3388 = vld [vmem:[%s1219 + $0x178] sm:$0xff]
      %v3389 = vld [vmem:[%s1219 + $0x180] sm:$0xff]
      %v3390 = vld [vmem:[%s1219 + $0x188] sm:$0xff]
      %v3391 = vld [vmem:[%s1219 + $0x190] sm:$0xff]
      %v3392 = vld [vmem:[%s1219 + $0x198] sm:$0xff]
      %v3393 = vld [vmem:[%s1219 + $0x1a0] sm:$0x33]
      %v3394 = vld [vmem:[%s1219 + $0x1a8] sm:$0x33]
      %v3395 = vld [vmem:[%s1219 + $0x1b0] sm:$0x33]
      %v3396 = vld [vmem:[%s1219 + $0x1b8] sm:$0x33]
      %v3397 = vld [vmem:[%s2800] sm:$0xff]
      %v3398 = vld [vmem:[%s2800 + $0x8] sm:$0xff]
      %v3399 = vld [vmem:[%s2800 + $0x10] sm:$0xff]
      %v3400 = vld [vmem:[%s2800 + $0x18] sm:$0xff]
      %v3401 = vld [vmem:[%s2800 + $0x20] sm:$0xff]
      %v3402 = vld [vmem:[%s2800 + $0x28] sm:$0xff]
      %v3403 = vld [vmem:[%s2800 + $0x30] sm:$0xff]
      %v3404 = vld [vmem:[%s2800 + $0x38] sm:$0xff]
      %v3405 = vld [vmem:[%s2800 + $0x40] sm:$0xff]
      %v3406 = vld [vmem:[%s2800 + $0x48] sm:$0xff]
      %v3407 = vld [vmem:[%s2800 + $0x50] sm:$0xff]
      %v3408 = vld [vmem:[%s2800 + $0x58] sm:$0xff]
      %v3409 = vld [vmem:[%s2800 + $0x60] sm:$0xff]
      %v3410 = vld [vmem:[%s2800 + $0x68] sm:$0xff]
      %v3411 = vld [vmem:[%s2800 + $0x70] sm:$0xff]
      %v3412 = vld [vmem:[%s2800 + $0x78] sm:$0xff]
      %v3413 = vld [vmem:[%s2800 + $0x80] sm:$0xff]
      %v3414 = vld [vmem:[%s2800 + $0x88] sm:$0xff]
      %v3415 = vld [vmem:[%s2800 + $0x90] sm:$0xff]
      %v3416 = vld [vmem:[%s2800 + $0x98] sm:$0xff]
      %v3417 = vld [vmem:[%s2800 + $0xa0] sm:$0xff]
      %v3418 = vld [vmem:[%s2800 + $0xa8] sm:$0xff]
      %v3419 = vld [vmem:[%s2800 + $0xb0] sm:$0xff]
      %v3420 = vld [vmem:[%s2800 + $0xb8] sm:$0xff]
      %v3421 = vld [vmem:[%s2800 + $0xc0] sm:$0xff]
      %v3422 = vld [vmem:[%s2800 + $0xc8] sm:$0xff]
      %v3423 = vld [vmem:[%s2800 + $0xd0] sm:$0xff]
      %v3424 = vld [vmem:[%s2800 + $0xd8] sm:$0xff]
      %v3425 = vld [vmem:[%s2800 + $0xe0] sm:$0xff]
      %v3426 = vld [vmem:[%s2800 + $0xe8] sm:$0xff]
      %v3427 = vld [vmem:[%s2800 + $0xf0] sm:$0xff]
      %v3428 = vld [vmem:[%s2800 + $0xf8] sm:$0xff]
      %v3429 = vld [vmem:[%s2800 + $0x100] sm:$0xff]
      %v3430 = vld [vmem:[%s2800 + $0x108] sm:$0xff]
      %v3431 = vld [vmem:[%s2800 + $0x110] sm:$0xff]
      %v3432 = vld [vmem:[%s2800 + $0x118] sm:$0xff]
      %v3433 = vld [vmem:[%s2800 + $0x120] sm:$0xff]
      %v3434 = vld [vmem:[%s2800 + $0x128] sm:$0xff]
      %v3435 = vld [vmem:[%s2800 + $0x130] sm:$0xff]
      %v3436 = vld [vmem:[%s2800 + $0x138] sm:$0xff]
      %v3437 = vld [vmem:[%s2800 + $0x140] sm:$0xff]
      %v3438 = vld [vmem:[%s2800 + $0x148] sm:$0xff]
      %v3439 = vld [vmem:[%s2800 + $0x150] sm:$0xff]
      %v3440 = vld [vmem:[%s2800 + $0x158] sm:$0xff]
      %v3441 = vld [vmem:[%s2800 + $0x160] sm:$0xff]
      %v3442 = vld [vmem:[%s2800 + $0x168] sm:$0xff]
      %v3443 = vld [vmem:[%s2800 + $0x170] sm:$0xff]
      %v3444 = vld [vmem:[%s2800 + $0x178] sm:$0xff]
      %v3445 = vld [vmem:[%s2800 + $0x180] sm:$0xff]
      %v3446 = vld [vmem:[%s2800 + $0x188] sm:$0xff]
      %v3447 = vld [vmem:[%s2800 + $0x190] sm:$0xff]
      %v3448 = vld [vmem:[%s2800 + $0x198] sm:$0xff]
      %v3449 = vld [vmem:[%s2800 + $0x1a0] sm:$0x33]
      %v3450 = vld [vmem:[%s2800 + $0x1a8] sm:$0x33]
      %v3451 = vld [vmem:[%s2800 + $0x1b0] sm:$0x33]
      %v3452 = vld [vmem:[%s2800 + $0x1b8] sm:$0x33]
      %v3509 = vunpack.c.l.b16 %v3397
      %v3510 = vunpack.c.h.b16 %v3397
      %v3511 = vunpack.c.l.b16 %v3398
      %v3512 = vunpack.c.h.b16 %v3398
      %v3513 = vunpack.c.l.b16 %v3399
      %v3514 = vunpack.c.h.b16 %v3399
      %v3515 = vunpack.c.l.b16 %v3400
      %v3516 = vunpack.c.h.b16 %v3400
      %v3517 = vunpack.c.l.b16 %v3401
      %v3518 = vunpack.c.h.b16 %v3401
      %v3519 = vunpack.c.l.b16 %v3402
      %v3520 = vunpack.c.h.b16 %v3402
      %v3521 = vunpack.c.l.b16 %v3403
      %v3522 = vunpack.c.h.b16 %v3403
      %v3523 = vunpack.c.l.b16 %v3404
      %v3524 = vunpack.c.h.b16 %v3404
      %v3525 = vunpack.c.l.b16 %v3405
      %v3526 = vunpack.c.h.b16 %v3405
      %v3527 = vunpack.c.l.b16 %v3406
      %v3528 = vunpack.c.h.b16 %v3406
      %v3529 = vunpack.c.l.b16 %v3407
      %v3530 = vunpack.c.h.b16 %v3407
      %v3531 = vunpack.c.l.b16 %v3408
      %v3532 = vunpack.c.h.b16 %v3408
      %v3533 = vunpack.c.l.b16 %v3409
      %v3534 = vunpack.c.h.b16 %v3409
      %v3535 = vunpack.c.l.b16 %v3410
      %v3536 = vunpack.c.h.b16 %v3410
      %v3537 = vunpack.c.l.b16 %v3411
      %v3538 = vunpack.c.h.b16 %v3411
      %v3539 = vunpack.c.l.b16 %v3412
      %v3540 = vunpack.c.h.b16 %v3412
      %v3541 = vunpack.c.l.b16 %v3413
      %v3542 = vunpack.c.h.b16 %v3413
      %v3543 = vunpack.c.l.b16 %v3414
      %v3544 = vunpack.c.h.b16 %v3414
      %v3545 = vunpack.c.l.b16 %v3415
      %v3546 = vunpack.c.h.b16 %v3415
      %v3547 = vunpack.c.l.b16 %v3416
      %v3548 = vunpack.c.h.b16 %v3416
      %v3549 = vunpack.c.l.b16 %v3417
      %v3550 = vunpack.c.h.b16 %v3417
      %v3551 = vunpack.c.l.b16 %v3418
      %v3552 = vunpack.c.h.b16 %v3418
      %v3553 = vunpack.c.l.b16 %v3419
      %v3554 = vunpack.c.h.b16 %v3419
      %v3555 = vunpack.c.l.b16 %v3420
      %v3556 = vunpack.c.h.b16 %v3420
      %v3557 = vunpack.c.l.b16 %v3421
      %v3558 = vunpack.c.h.b16 %v3421
      %v3559 = vunpack.c.l.b16 %v3422
      %v3560 = vunpack.c.h.b16 %v3422
      %v3561 = vunpack.c.l.b16 %v3423
      %v3562 = vunpack.c.h.b16 %v3423
      %v3563 = vunpack.c.l.b16 %v3424
      %v3564 = vunpack.c.h.b16 %v3424
      %v3565 = vunpack.c.l.b16 %v3425
      %v3566 = vunpack.c.h.b16 %v3425
      %v3567 = vunpack.c.l.b16 %v3426
      %v3568 = vunpack.c.h.b16 %v3426
      %v3569 = vunpack.c.l.b16 %v3427
      %v3570 = vunpack.c.h.b16 %v3427
      %v3571 = vunpack.c.l.b16 %v3428
      %v3572 = vunpack.c.h.b16 %v3428
      %v3573 = vunpack.c.l.b16 %v3429
      %v3574 = vunpack.c.h.b16 %v3429
      %v3575 = vunpack.c.l.b16 %v3430
      %v3576 = vunpack.c.h.b16 %v3430
      %v3577 = vunpack.c.l.b16 %v3431
      %v3578 = vunpack.c.h.b16 %v3431
      %v3579 = vunpack.c.l.b16 %v3432
      %v3580 = vunpack.c.h.b16 %v3432
      %v3581 = vunpack.c.l.b16 %v3433
      %v3582 = vunpack.c.h.b16 %v3433
      %v3583 = vunpack.c.l.b16 %v3434
      %v3584 = vunpack.c.h.b16 %v3434
      %v3585 = vunpack.c.l.b16 %v3435
      %v3586 = vunpack.c.h.b16 %v3435
      %v3587 = vunpack.c.l.b16 %v3436
      %v3588 = vunpack.c.h.b16 %v3436
      %v3589 = vunpack.c.l.b16 %v3437
      %v3590 = vunpack.c.h.b16 %v3437
      %v3591 = vunpack.c.l.b16 %v3438
      %v3592 = vunpack.c.h.b16 %v3438
      %v3593 = vunpack.c.l.b16 %v3439
      %v3594 = vunpack.c.h.b16 %v3439
      %v3595 = vunpack.c.l.b16 %v3440
      %v3596 = vunpack.c.h.b16 %v3440
      %v3597 = vunpack.c.l.b16 %v3441
      %v3598 = vunpack.c.h.b16 %v3441
      %v3599 = vunpack.c.l.b16 %v3442
      %v3600 = vunpack.c.h.b16 %v3442
      %v3601 = vunpack.c.l.b16 %v3443
      %v3602 = vunpack.c.h.b16 %v3443
      %v3603 = vunpack.c.l.b16 %v3444
      %v3604 = vunpack.c.h.b16 %v3444
      %v3605 = vunpack.c.l.b16 %v3445
      %v3606 = vunpack.c.h.b16 %v3445
      %v3607 = vunpack.c.l.b16 %v3446
      %v3608 = vunpack.c.h.b16 %v3446
      %v3609 = vunpack.c.l.b16 %v3447
      %v3610 = vunpack.c.h.b16 %v3447
      %v3611 = vunpack.c.l.b16 %v3448
      %v3612 = vunpack.c.h.b16 %v3448
      %v3613 = vunpack.c.l.b16 %v3449
      %v3614 = vunpack.c.h.b16 %v3449
      %v3615 = vunpack.c.l.b16 %v3450
      %v3616 = vunpack.c.h.b16 %v3450
      %v3617 = vunpack.c.l.b16 %v3451
      %v3618 = vunpack.c.h.b16 %v3451
      %v3619 = vunpack.c.l.b16 %v3452
      %v3620 = vunpack.c.h.b16 %v3452
      %v3621 = vpack.c.b16 %v3517, %v3509
      %v3622 = vpack.c.b16 %v3518, %v3510
      %v3623 = vpack.c.b16 %v3519, %v3511
      %v3624 = vpack.c.b16 %v3520, %v3512
      %v3625 = vpack.c.b16 %v3521, %v3513
      %v3626 = vpack.c.b16 %v3522, %v3514
      %v3627 = vpack.c.b16 %v3523, %v3515
      %v3628 = vpack.c.b16 %v3524, %v3516
      %v3629 = vpack.c.b16 %v3533, %v3525
      %v3630 = vpack.c.b16 %v3534, %v3526
      %v3631 = vpack.c.b16 %v3535, %v3527
      %v3632 = vpack.c.b16 %v3536, %v3528
      %v3633 = vpack.c.b16 %v3537, %v3529
      %v3634 = vpack.c.b16 %v3538, %v3530
      %v3635 = vpack.c.b16 %v3539, %v3531
      %v3636 = vpack.c.b16 %v3540, %v3532
      %v3637 = vpack.c.b16 %v3549, %v3541
      %v3638 = vpack.c.b16 %v3550, %v3542
      %v3639 = vpack.c.b16 %v3551, %v3543
      %v3640 = vpack.c.b16 %v3552, %v3544
      %v3641 = vpack.c.b16 %v3553, %v3545
      %v3642 = vpack.c.b16 %v3554, %v3546
      %v3643 = vpack.c.b16 %v3555, %v3547
      %v3644 = vpack.c.b16 %v3556, %v3548
      %v3645 = vpack.c.b16 %v3565, %v3557
      %v3646 = vpack.c.b16 %v3566, %v3558
      %v3647 = vpack.c.b16 %v3567, %v3559
      %v3648 = vpack.c.b16 %v3568, %v3560
      %v3649 = vpack.c.b16 %v3569, %v3561
      %v3650 = vpack.c.b16 %v3570, %v3562
      %v3651 = vpack.c.b16 %v3571, %v3563
      %v3652 = vpack.c.b16 %v3572, %v3564
      %v3653 = vpack.c.b16 %v3581, %v3573
      %v3654 = vpack.c.b16 %v3582, %v3574
      %v3655 = vpack.c.b16 %v3583, %v3575
      %v3656 = vpack.c.b16 %v3584, %v3576
      %v3657 = vpack.c.b16 %v3585, %v3577
      %v3658 = vpack.c.b16 %v3586, %v3578
      %v3659 = vpack.c.b16 %v3587, %v3579
      %v3660 = vpack.c.b16 %v3588, %v3580
      %v3661 = vpack.c.b16 %v3597, %v3589
      %v3662 = vpack.c.b16 %v3598, %v3590
      %v3663 = vpack.c.b16 %v3599, %v3591
      %v3664 = vpack.c.b16 %v3600, %v3592
      %v3665 = vpack.c.b16 %v3601, %v3593
      %v3666 = vpack.c.b16 %v3602, %v3594
      %v3667 = vpack.c.b16 %v3603, %v3595
      %v3668 = vpack.c.b16 %v3604, %v3596
      %v3669 = vpack.c.b16 %v3613, %v3605
      %v3670 = vpack.c.b16 %v3614, %v3606
      %v3671 = vpack.c.b16 %v3615, %v3607
      %v3672 = vpack.c.b16 %v3616, %v3608
      %v3673 = vpack.c.b16 %v3617, %v3609
      %v3674 = vpack.c.b16 %v3618, %v3610
      %v3675 = vpack.c.b16 %v3619, %v3611
      %v3676 = vpack.c.b16 %v3620, %v3612
      %v3726 = vsel %vm567, %v3669, 0
      %v3729 = vsel %vm567, %v3670, 0
      %v3732 = vsel %vm567, %v3671, 0
      %v3735 = vsel %vm567, %v3672, 0
      %v3738 = vsel %vm567, %v3673, 0
      %v3741 = vsel %vm567, %v3674, 0
      %v3744 = vsel %vm567, %v3675, 0
      %v3747 = vsel %vm567, %v3676, 0
      %3749 = vmatprep.subr.bf16.mxu0 %v3622
      %3750 = vmatpush1.bf16.msra.mxu0 %v3621
      %3751 = vmatprep.subr.bf16.mxu0 %v3630
      %3752 = vmatpush1.bf16.msra.mxu0 %v3629
      %3753 = vmatprep.subr.bf16.mxu0 %v3638
      %3754 = vmatpush1.bf16.msra.mxu0 %v3637
      %3755 = vmatprep.subr.bf16.mxu0 %v3646
      %3756 = vmatpush1.bf16.msra.mxu0 %v3645
      %3757 = vmatprep.subr.bf16.mxu0 %v3654
      %3758 = vmatpush1.bf16.msra.mxu0 %v3653
      %3759 = vmatprep.subr.bf16.mxu0 %v3662
      %3760 = vmatpush1.bf16.msra.mxu0 %v3661
      %3761 = vmatprep.subr.bf16.mxu0 %v3729
      %3762 = vmatpush1.bf16.msra.mxu0 %v3726
      %3763 = vmatprep.subr.bf16.mxu0 0
      %3764 = vmatpush1.bf16.msra.mxu0 0
      %3765 = vmatprep.subr.bf16.mxu0 0
      %3766 = vmatpush1.bf16.msra.mxu0 0
      %3767 = vmatprep.subr.bf16.mxu0 0
      %3768 = vmatpush1.bf16.msra.mxu0 0
      %3769 = vmatprep.subr.bf16.mxu0 0
      %3770 = vmatpush1.bf16.msra.mxu0 0
      %3771 = vmatprep.subr.bf16.mxu0 0
      %3772 = vmatpush1.bf16.msra.mxu0 0
      %3773 = vmatprep.subr.bf16.mxu0 0
      %3774 = vmatpush1.bf16.msra.mxu0 0
      %3775 = vmatprep.subr.bf16.mxu0 0
      %3776 = vmatpush1.bf16.msra.mxu0 0
      %3777 = vmatprep.subr.bf16.mxu0 0
      %3778 = vmatpush1.bf16.msra.mxu0 0
      %3779 = vmatprep.subr.bf16.mxu0 0
      %3780 = vmatpush1.bf16.msra.mxu0 0
      %3781 = vmatprep.mubr.bf16.mxu0 0
      %3782 = vmatmul.mubr.bf16.gmra.mrb[0].mxu0 %v565
      %v3783 = vpop.f32.mrb[0].mxu0
      %v3784 = vadd.f32 0.0, %v3783
      %v3785 = vpop.f32.mrb[0].mxu0
      %v3786 = vadd.f32 0.0, %v3785
      %v3787 = vpop.f32.mrb[0].mxu0
      %v3788 = vpop.f32.mrb[0].mxu0
      %3789 = vdwg.mxu0
      %3790 = vmatprep.subr.bf16.mxu0 %v3624
      %3791 = vmatpush1.bf16.msra.mxu0 %v3623
      %3792 = vmatprep.subr.bf16.mxu0 %v3632
      %3793 = vmatpush1.bf16.msra.mxu0 %v3631
      %3794 = vmatprep.subr.bf16.mxu0 %v3640
      %3795 = vmatpush1.bf16.msra.mxu0 %v3639
      %3796 = vmatprep.subr.bf16.mxu0 %v3648
      %3797 = vmatpush1.bf16.msra.mxu0 %v3647
      %3798 = vmatprep.subr.bf16.mxu0 %v3656
      %3799 = vmatpush1.bf16.msra.mxu0 %v3655
      %3800 = vmatprep.subr.bf16.mxu0 %v3664
      %3801 = vmatpush1.bf16.msra.mxu0 %v3663
      %3802 = vmatprep.subr.bf16.mxu0 %v3735
      %3803 = vmatpush1.bf16.msra.mxu0 %v3732
      %3804 = vmatprep.subr.bf16.mxu0 0
      %3805 = vmatpush1.bf16.msra.mxu0 0
      %3806 = vmatprep.subr.bf16.mxu0 0
      %3807 = vmatpush1.bf16.msra.mxu0 0
      %3808 = vmatprep.subr.bf16.mxu0 0
      %3809 = vmatpush1.bf16.msra.mxu0 0
      %3810 = vmatprep.subr.bf16.mxu0 0
      %3811 = vmatpush1.bf16.msra.mxu0 0
      %3812 = vmatprep.subr.bf16.mxu0 0
      %3813 = vmatpush1.bf16.msra.mxu0 0
      %3814 = vmatprep.subr.bf16.mxu0 0
      %3815 = vmatpush1.bf16.msra.mxu0 0
      %3816 = vmatprep.subr.bf16.mxu0 0
      %3817 = vmatpush1.bf16.msra.mxu0 0
      %3818 = vmatprep.subr.bf16.mxu0 0
      %3819 = vmatpush1.bf16.msra.mxu0 0
      %3820 = vmatprep.subr.bf16.mxu0 0
      %3821 = vmatpush1.bf16.msra.mxu0 0
      %3822 = vmatprep.mubr.bf16.mxu0 0
      %3823 = vmatmul.mubr.bf16.gmra.mrb[0].mxu0 %v565
      %v3824 = vpop.f32.mrb[0].mxu0
      %v3825 = vadd.f32 0.0, %v3824
      %v3826 = vpop.f32.mrb[0].mxu0
      %v3827 = vadd.f32 0.0, %v3826
      %v3828 = vpop.f32.mrb[0].mxu0
      %v3829 = vpop.f32.mrb[0].mxu0
      %3830 = vdwg.mxu0
      %3831 = vmatprep.subr.bf16.mxu0 %v3626
      %3832 = vmatpush1.bf16.msra.mxu0 %v3625
      %3833 = vmatprep.subr.bf16.mxu0 %v3634
      %3834 = vmatpush1.bf16.msra.mxu0 %v3633
      %3835 = vmatprep.subr.bf16.mxu0 %v3642
      %3836 = vmatpush1.bf16.msra.mxu0 %v3641
      %3837 = vmatprep.subr.bf16.mxu0 %v3650
      %3838 = vmatpush1.bf16.msra.mxu0 %v3649
      %3839 = vmatprep.subr.bf16.mxu0 %v3658
      %3840 = vmatpush1.bf16.msra.mxu0 %v3657
      %3841 = vmatprep.subr.bf16.mxu0 %v3666
      %3842 = vmatpush1.bf16.msra.mxu0 %v3665
      %3843 = vmatprep.subr.bf16.mxu0 %v3741
      %3844 = vmatpush1.bf16.msra.mxu0 %v3738
      %3845 = vmatprep.subr.bf16.mxu0 0
      %3846 = vmatpush1.bf16.msra.mxu0 0
      %3847 = vmatprep.subr.bf16.mxu0 0
      %3848 = vmatpush1.bf16.msra.mxu0 0
      %3849 = vmatprep.subr.bf16.mxu0 0
      %3850 = vmatpush1.bf16.msra.mxu0 0
      %3851 = vmatprep.subr.bf16.mxu0 0
      %3852 = vmatpush1.bf16.msra.mxu0 0
      %3853 = vmatprep.subr.bf16.mxu0 0
      %3854 = vmatpush1.bf16.msra.mxu0 0
      %3855 = vmatprep.subr.bf16.mxu0 0
      %3856 = vmatpush1.bf16.msra.mxu0 0
      %3857 = vmatprep.subr.bf16.mxu0 0
      %3858 = vmatpush1.bf16.msra.mxu0 0
      %3859 = vmatprep.subr.bf16.mxu0 0
      %3860 = vmatpush1.bf16.msra.mxu0 0
      %3861 = vmatprep.subr.bf16.mxu0 0
      %3862 = vmatpush1.bf16.msra.mxu0 0
      %3863 = vmatprep.mubr.bf16.mxu0 0
      %3864 = vmatmul.mubr.bf16.gmra.mrb[0].mxu0 %v565
      %v3865 = vpop.f32.mrb[0].mxu0
      %v3866 = vadd.f32 0.0, %v3865
      %v3867 = vpop.f32.mrb[0].mxu0
      %v3868 = vadd.f32 0.0, %v3867
      %v3869 = vpop.f32.mrb[0].mxu0
      %v3870 = vpop.f32.mrb[0].mxu0
      %3871 = vdwg.mxu0
      %3872 = vmatprep.subr.bf16.mxu0 %v3628
      %3873 = vmatpush1.bf16.msra.mxu0 %v3627
      %3874 = vmatprep.subr.bf16.mxu0 %v3636
      %3875 = vmatpush1.bf16.msra.mxu0 %v3635
      %3876 = vmatprep.subr.bf16.mxu0 %v3644
      %3877 = vmatpush1.bf16.msra.mxu0 %v3643
      %3878 = vmatprep.subr.bf16.mxu0 %v3652
      %3879 = vmatpush1.bf16.msra.mxu0 %v3651
      %3880 = vmatprep.subr.bf16.mxu0 %v3660
      %3881 = vmatpush1.bf16.msra.mxu0 %v3659
      %3882 = vmatprep.subr.bf16.mxu0 %v3668
      %3883 = vmatpush1.bf16.msra.mxu0 %v3667
      %3884 = vmatprep.subr.bf16.mxu0 %v3747
      %3885 = vmatpush1.bf16.msra.mxu0 %v3744
      %3886 = vmatprep.subr.bf16.mxu0 0
      %3887 = vmatpush1.bf16.msra.mxu0 0
      %3888 = vmatprep.subr.bf16.mxu0 0
      %3889 = vmatpush1.bf16.msra.mxu0 0
      %3890 = vmatprep.subr.bf16.mxu0 0
      %3891 = vmatpush1.bf16.msra.mxu0 0
      %3892 = vmatprep.subr.bf16.mxu0 0
      %3893 = vmatpush1.bf16.msra.mxu0 0
      %3894 = vmatprep.subr.bf16.mxu0 0
      %3895 = vmatpush1.bf16.msra.mxu0 0
      %3896 = vmatprep.subr.bf16.mxu0 0
      %3897 = vmatpush1.bf16.msra.mxu0 0
      %3898 = vmatprep.subr.bf16.mxu0 0
      %3899 = vmatpush1.bf16.msra.mxu0 0
      %3900 = vmatprep.subr.bf16.mxu0 0
      %3901 = vmatpush1.bf16.msra.mxu0 0
      %3902 = vmatprep.subr.bf16.mxu0 0
      %3903 = vmatpush1.bf16.msra.mxu0 0
      %3904 = vmatprep.mubr.bf16.mxu0 0
      %3905 = vmatmul.mubr.bf16.gmra.mrb[0].mxu0 %v565
      %v3906 = vpop.f32.mrb[0].mxu0
      %v3907 = vadd.f32 0.0, %v3906
      %v3908 = vpop.f32.mrb[0].mxu0
      %v3909 = vadd.f32 0.0, %v3908
      %v3910 = vpop.f32.mrb[0].mxu0
      %v3911 = vpop.f32.mrb[0].mxu0
      %3912 = vdwg.mxu0
      %v3969 = vunpack.c.l.b16 %v3341
      %v3970 = vunpack.c.h.b16 %v3341
      %v3971 = vunpack.c.l.b16 %v3342
      %v3972 = vunpack.c.h.b16 %v3342
      %v3973 = vunpack.c.l.b16 %v3343
      %v3974 = vunpack.c.h.b16 %v3343
      %v3975 = vunpack.c.l.b16 %v3344
      %v3976 = vunpack.c.h.b16 %v3344
      %v3977 = vunpack.c.l.b16 %v3345
      %v3978 = vunpack.c.h.b16 %v3345
      %v3979 = vunpack.c.l.b16 %v3346
      %v3980 = vunpack.c.h.b16 %v3346
      %v3981 = vunpack.c.l.b16 %v3347
      %v3982 = vunpack.c.h.b16 %v3347
      %v3983 = vunpack.c.l.b16 %v3348
      %v3984 = vunpack.c.h.b16 %v3348
      %v3985 = vunpack.c.l.b16 %v3349
      %v3986 = vunpack.c.h.b16 %v3349
      %v3987 = vunpack.c.l.b16 %v3350
      %v3988 = vunpack.c.h.b16 %v3350
      %v3989 = vunpack.c.l.b16 %v3351
      %v3990 = vunpack.c.h.b16 %v3351
      %v3991 = vunpack.c.l.b16 %v3352
      %v3992 = vunpack.c.h.b16 %v3352
      %v3993 = vunpack.c.l.b16 %v3353
      %v3994 = vunpack.c.h.b16 %v3353
      %v3995 = vunpack.c.l.b16 %v3354
      %v3996 = vunpack.c.h.b16 %v3354
      %v3997 = vunpack.c.l.b16 %v3355
      %v3998 = vunpack.c.h.b16 %v3355
      %v3999 = vunpack.c.l.b16 %v3356
      %v4000 = vunpack.c.h.b16 %v3356
      %v4001 = vunpack.c.l.b16 %v3357
      %v4002 = vunpack.c.h.b16 %v3357
      %v4003 = vunpack.c.l.b16 %v3358
      %v4004 = vunpack.c.h.b16 %v3358
      %v4005 = vunpack.c.l.b16 %v3359
      %v4006 = vunpack.c.h.b16 %v3359
      %v4007 = vunpack.c.l.b16 %v3360
      %v4008 = vunpack.c.h.b16 %v3360
      %v4009 = vunpack.c.l.b16 %v3361
      %v4010 = vunpack.c.h.b16 %v3361
      %v4011 = vunpack.c.l.b16 %v3362
      %v4012 = vunpack.c.h.b16 %v3362
      %v4013 = vunpack.c.l.b16 %v3363
      %v4014 = vunpack.c.h.b16 %v3363
      %v4015 = vunpack.c.l.b16 %v3364
      %v4016 = vunpack.c.h.b16 %v3364
      %v4017 = vunpack.c.l.b16 %v3365
      %v4018 = vunpack.c.h.b16 %v3365
      %v4019 = vunpack.c.l.b16 %v3366
      %v4020 = vunpack.c.h.b16 %v3366
      %v4021 = vunpack.c.l.b16 %v3367
      %v4022 = vunpack.c.h.b16 %v3367
      %v4023 = vunpack.c.l.b16 %v3368
      %v4024 = vunpack.c.h.b16 %v3368
      %v4025 = vunpack.c.l.b16 %v3369
      %v4026 = vunpack.c.h.b16 %v3369
      %v4027 = vunpack.c.l.b16 %v3370
      %v4028 = vunpack.c.h.b16 %v3370
      %v4029 = vunpack.c.l.b16 %v3371
      %v4030 = vunpack.c.h.b16 %v3371
      %v4031 = vunpack.c.l.b16 %v3372
      %v4032 = vunpack.c.h.b16 %v3372
      %v4033 = vunpack.c.l.b16 %v3373
      %v4034 = vunpack.c.h.b16 %v3373
      %v4035 = vunpack.c.l.b16 %v3374
      %v4036 = vunpack.c.h.b16 %v3374
      %v4037 = vunpack.c.l.b16 %v3375
      %v4038 = vunpack.c.h.b16 %v3375
      %v4039 = vunpack.c.l.b16 %v3376
      %v4040 = vunpack.c.h.b16 %v3376
      %v4041 = vunpack.c.l.b16 %v3377
      %v4042 = vunpack.c.h.b16 %v3377
      %v4043 = vunpack.c.l.b16 %v3378
      %v4044 = vunpack.c.h.b16 %v3378
      %v4045 = vunpack.c.l.b16 %v3379
      %v4046 = vunpack.c.h.b16 %v3379
      %v4047 = vunpack.c.l.b16 %v3380
      %v4048 = vunpack.c.h.b16 %v3380
      %v4049 = vunpack.c.l.b16 %v3381
      %v4050 = vunpack.c.h.b16 %v3381
      %v4051 = vunpack.c.l.b16 %v3382
      %v4052 = vunpack.c.h.b16 %v3382
      %v4053 = vunpack.c.l.b16 %v3383
      %v4054 = vunpack.c.h.b16 %v3383
      %v4055 = vunpack.c.l.b16 %v3384
      %v4056 = vunpack.c.h.b16 %v3384
      %v4057 = vunpack.c.l.b16 %v3385
      %v4058 = vunpack.c.h.b16 %v3385
      %v4059 = vunpack.c.l.b16 %v3386
      %v4060 = vunpack.c.h.b16 %v3386
      %v4061 = vunpack.c.l.b16 %v3387
      %v4062 = vunpack.c.h.b16 %v3387
      %v4063 = vunpack.c.l.b16 %v3388
      %v4064 = vunpack.c.h.b16 %v3388
      %v4065 = vunpack.c.l.b16 %v3389
      %v4066 = vunpack.c.h.b16 %v3389
      %v4067 = vunpack.c.l.b16 %v3390
      %v4068 = vunpack.c.h.b16 %v3390
      %v4069 = vunpack.c.l.b16 %v3391
      %v4070 = vunpack.c.h.b16 %v3391
      %v4071 = vunpack.c.l.b16 %v3392
      %v4072 = vunpack.c.h.b16 %v3392
      %v4073 = vunpack.c.l.b16 %v3393
      %v4074 = vunpack.c.h.b16 %v3393
      %v4075 = vunpack.c.l.b16 %v3394
      %v4076 = vunpack.c.h.b16 %v3394
      %v4077 = vunpack.c.l.b16 %v3395
      %v4078 = vunpack.c.h.b16 %v3395
      %v4079 = vunpack.c.l.b16 %v3396
      %v4080 = vunpack.c.h.b16 %v3396
      %v4081 = vpack.c.b16 %v3977, %v3969
      %v4082 = vpack.c.b16 %v3978, %v3970
      %v4083 = vpack.c.b16 %v3979, %v3971
      %v4084 = vpack.c.b16 %v3980, %v3972
      %v4085 = vpack.c.b16 %v3981, %v3973
      %v4086 = vpack.c.b16 %v3982, %v3974
      %v4087 = vpack.c.b16 %v3983, %v3975
      %v4088 = vpack.c.b16 %v3984, %v3976
      %v4089 = vpack.c.b16 %v3993, %v3985
      %v4090 = vpack.c.b16 %v3994, %v3986
      %v4091 = vpack.c.b16 %v3995, %v3987
      %v4092 = vpack.c.b16 %v3996, %v3988
      %v4093 = vpack.c.b16 %v3997, %v3989
      %v4094 = vpack.c.b16 %v3998, %v3990
      %v4095 = vpack.c.b16 %v3999, %v3991
      %v4096 = vpack.c.b16 %v4000, %v3992
      %v4097 = vpack.c.b16 %v4009, %v4001
      %v4098 = vpack.c.b16 %v4010, %v4002
      %v4099 = vpack.c.b16 %v4011, %v4003
      %v4100 = vpack.c.b16 %v4012, %v4004
      %v4101 = vpack.c.b16 %v4013, %v4005
      %v4102 = vpack.c.b16 %v4014, %v4006
      %v4103 = vpack.c.b16 %v4015, %v4007
      %v4104 = vpack.c.b16 %v4016, %v4008
      %v4105 = vpack.c.b16 %v4025, %v4017
      %v4106 = vpack.c.b16 %v4026, %v4018
      %v4107 = vpack.c.b16 %v4027, %v4019
      %v4108 = vpack.c.b16 %v4028, %v4020
      %v4109 = vpack.c.b16 %v4029, %v4021
      %v4110 = vpack.c.b16 %v4030, %v4022
      %v4111 = vpack.c.b16 %v4031, %v4023
      %v4112 = vpack.c.b16 %v4032, %v4024
      %v4113 = vpack.c.b16 %v4041, %v4033
      %v4114 = vpack.c.b16 %v4042, %v4034
      %v4115 = vpack.c.b16 %v4043, %v4035
      %v4116 = vpack.c.b16 %v4044, %v4036
      %v4117 = vpack.c.b16 %v4045, %v4037
      %v4118 = vpack.c.b16 %v4046, %v4038
      %v4119 = vpack.c.b16 %v4047, %v4039
      %v4120 = vpack.c.b16 %v4048, %v4040
      %v4121 = vpack.c.b16 %v4057, %v4049
      %v4122 = vpack.c.b16 %v4058, %v4050
      %v4123 = vpack.c.b16 %v4059, %v4051
      %v4124 = vpack.c.b16 %v4060, %v4052
      %v4125 = vpack.c.b16 %v4061, %v4053
      %v4126 = vpack.c.b16 %v4062, %v4054
      %v4127 = vpack.c.b16 %v4063, %v4055
      %v4128 = vpack.c.b16 %v4064, %v4056
      %v4129 = vpack.c.b16 %v4073, %v4065
      %v4130 = vpack.c.b16 %v4074, %v4066
      %v4131 = vpack.c.b16 %v4075, %v4067
      %v4132 = vpack.c.b16 %v4076, %v4068
      %v4133 = vpack.c.b16 %v4077, %v4069
      %v4134 = vpack.c.b16 %v4078, %v4070
      %v4135 = vpack.c.b16 %v4079, %v4071
      %v4136 = vpack.c.b16 %v4080, %v4072
      %v4186 = vsel %vm567, %v4129, 0
      %v4189 = vsel %vm567, %v4130, 0
      %v4192 = vsel %vm567, %v4131, 0
      %v4195 = vsel %vm567, %v4132, 0
      %v4198 = vsel %vm567, %v4133, 0
      %v4201 = vsel %vm567, %v4134, 0
      %v4204 = vsel %vm567, %v4135, 0
      %v4207 = vsel %vm567, %v4136, 0
      %4209 = vmatprep.subr.bf16.mxu0 %v4082
      %4210 = vmatpush1.bf16.msra.mxu0 %v4081
      %4211 = vmatprep.subr.bf16.mxu0 %v4090
      %4212 = vmatpush1.bf16.msra.mxu0 %v4089
      %4213 = vmatprep.subr.bf16.mxu0 %v4098
      %4214 = vmatpush1.bf16.msra.mxu0 %v4097
      %4215 = vmatprep.subr.bf16.mxu0 %v4106
      %4216 = vmatpush1.bf16.msra.mxu0 %v4105
      %4217 = vmatprep.subr.bf16.mxu0 %v4114
      %4218 = vmatpush1.bf16.msra.mxu0 %v4113
      %4219 = vmatprep.subr.bf16.mxu0 %v4122
      %4220 = vmatpush1.bf16.msra.mxu0 %v4121
      %4221 = vmatprep.subr.bf16.mxu0 %v4189
      %4222 = vmatpush1.bf16.msra.mxu0 %v4186
      %4223 = vmatprep.subr.bf16.mxu0 0
      %4224 = vmatpush1.bf16.msra.mxu0 0
      %4225 = vmatprep.subr.bf16.mxu0 0
      %4226 = vmatpush1.bf16.msra.mxu0 0
      %4227 = vmatprep.subr.bf16.mxu0 0
      %4228 = vmatpush1.bf16.msra.mxu0 0
      %4229 = vmatprep.subr.bf16.mxu0 0
      %4230 = vmatpush1.bf16.msra.mxu0 0
      %4231 = vmatprep.subr.bf16.mxu0 0
      %4232 = vmatpush1.bf16.msra.mxu0 0
      %4233 = vmatprep.subr.bf16.mxu0 0
      %4234 = vmatpush1.bf16.msra.mxu0 0
      %4235 = vmatprep.subr.bf16.mxu0 0
      %4236 = vmatpush1.bf16.msra.mxu0 0
      %4237 = vmatprep.subr.bf16.mxu0 0
      %4238 = vmatpush1.bf16.msra.mxu0 0
      %4239 = vmatprep.subr.bf16.mxu0 0
      %4240 = vmatpush1.bf16.msra.mxu0 0
      %4241 = vmatprep.mubr.bf16.mxu0 0
      %4242 = vmatmul.mubr.bf16.gmra.mrb[0].mxu0 %v1029
      %v4243 = vpop.f32.mrb[0].mxu0
      %v4244 = vadd.f32 %v3784, %v4243
      %v4245 = vpop.f32.mrb[0].mxu0
      %v4246 = vadd.f32 %v3786, %v4245
      %v4247 = vpop.f32.mrb[0].mxu0
      %v4248 = vpop.f32.mrb[0].mxu0
      %4249 = vdwg.mxu0
      %4250 = vmatprep.subr.bf16.mxu0 %v4084
      %4251 = vmatpush1.bf16.msra.mxu0 %v4083
      %4252 = vmatprep.subr.bf16.mxu0 %v4092
      %4253 = vmatpush1.bf16.msra.mxu0 %v4091
      %4254 = vmatprep.subr.bf16.mxu0 %v4100
      %4255 = vmatpush1.bf16.msra.mxu0 %v4099
      %4256 = vmatprep.subr.bf16.mxu0 %v4108
      %4257 = vmatpush1.bf16.msra.mxu0 %v4107
      %4258 = vmatprep.subr.bf16.mxu0 %v4116
      %4259 = vmatpush1.bf16.msra.mxu0 %v4115
      %4260 = vmatprep.subr.bf16.mxu0 %v4124
      %4261 = vmatpush1.bf16.msra.mxu0 %v4123
      %4262 = vmatprep.subr.bf16.mxu0 %v4195
      %4263 = vmatpush1.bf16.msra.mxu0 %v4192
      %4264 = vmatprep.subr.bf16.mxu0 0
      %4265 = vmatpush1.bf16.msra.mxu0 0
      %4266 = vmatprep.subr.bf16.mxu0 0
      %4267 = vmatpush1.bf16.msra.mxu0 0
      %4268 = vmatprep.subr.bf16.mxu0 0
      %4269 = vmatpush1.bf16.msra.mxu0 0
      %4270 = vmatprep.subr.bf16.mxu0 0
      %4271 = vmatpush1.bf16.msra.mxu0 0
      %4272 = vmatprep.subr.bf16.mxu0 0
      %4273 = vmatpush1.bf16.msra.mxu0 0
      %4274 = vmatprep.subr.bf16.mxu0 0
      %4275 = vmatpush1.bf16.msra.mxu0 0
      %4276 = vmatprep.subr.bf16.mxu0 0
      %4277 = vmatpush1.bf16.msra.mxu0 0
      %4278 = vmatprep.subr.bf16.mxu0 0
      %4279 = vmatpush1.bf16.msra.mxu0 0
      %4280 = vmatprep.subr.bf16.mxu0 0
      %4281 = vmatpush1.bf16.msra.mxu0 0
      %4282 = vmatprep.mubr.bf16.mxu0 0
      %4283 = vmatmul.mubr.bf16.gmra.mrb[0].mxu0 %v1029
      %v4284 = vpop.f32.mrb[0].mxu0
      %v4285 = vadd.f32 %v3825, %v4284
      %v4286 = vpop.f32.mrb[0].mxu0
      %v4287 = vadd.f32 %v3827, %v4286
      %v4288 = vpop.f32.mrb[0].mxu0
      %v4289 = vpop.f32.mrb[0].mxu0
      %4290 = vdwg.mxu0
      %4291 = vmatprep.subr.bf16.mxu0 %v4086
      %4292 = vmatpush1.bf16.msra.mxu0 %v4085
      %4293 = vmatprep.subr.bf16.mxu0 %v4094
      %4294 = vmatpush1.bf16.msra.mxu0 %v4093
      %4295 = vmatprep.subr.bf16.mxu0 %v4102
      %4296 = vmatpush1.bf16.msra.mxu0 %v4101
      %4297 = vmatprep.subr.bf16.mxu0 %v4110
      %4298 = vmatpush1.bf16.msra.mxu0 %v4109
      %4299 = vmatprep.subr.bf16.mxu0 %v4118
      %4300 = vmatpush1.bf16.msra.mxu0 %v4117
      %4301 = vmatprep.subr.bf16.mxu0 %v4126
      %4302 = vmatpush1.bf16.msra.mxu0 %v4125
      %4303 = vmatprep.subr.bf16.mxu0 %v4201
      %4304 = vmatpush1.bf16.msra.mxu0 %v4198
      %4305 = vmatprep.subr.bf16.mxu0 0
      %4306 = vmatpush1.bf16.msra.mxu0 0
      %4307 = vmatprep.subr.bf16.mxu0 0
      %4308 = vmatpush1.bf16.msra.mxu0 0
      %4309 = vmatprep.subr.bf16.mxu0 0
      %4310 = vmatpush1.bf16.msra.mxu0 0
      %4311 = vmatprep.subr.bf16.mxu0 0
      %4312 = vmatpush1.bf16.msra.mxu0 0
      %4313 = vmatprep.subr.bf16.mxu0 0
      %4314 = vmatpush1.bf16.msra.mxu0 0
      %4315 = vmatprep.subr.bf16.mxu0 0
      %4316 = vmatpush1.bf16.msra.mxu0 0
      %4317 = vmatprep.subr.bf16.mxu0 0
      %4318 = vmatpush1.bf16.msra.mxu0 0
      %4319 = vmatprep.subr.bf16.mxu0 0
      %4320 = vmatpush1.bf16.msra.mxu0 0
      %4321 = vmatprep.subr.bf16.mxu0 0
      %4322 = vmatpush1.bf16.msra.mxu0 0
      %4323 = vmatprep.mubr.bf16.mxu0 0
      %4324 = vmatmul.mubr.bf16.gmra.mrb[0].mxu0 %v1029
      %v4325 = vpop.f32.mrb[0].mxu0
      %v4326 = vadd.f32 %v3866, %v4325
      %v4327 = vpop.f32.mrb[0].mxu0
      %v4328 = vadd.f32 %v3868, %v4327
      %v4329 = vpop.f32.mrb[0].mxu0
      %v4330 = vpop.f32.mrb[0].mxu0
      %4331 = vdwg.mxu0
      %4332 = vmatprep.subr.bf16.mxu0 %v4088
      %4333 = vmatpush1.bf16.msra.mxu0 %v4087
      %4334 = vmatprep.subr.bf16.mxu0 %v4096
      %4335 = vmatpush1.bf16.msra.mxu0 %v4095
      %4336 = vmatprep.subr.bf16.mxu0 %v4104
      %4337 = vmatpush1.bf16.msra.mxu0 %v4103
      %4338 = vmatprep.subr.bf16.mxu0 %v4112
      %4339 = vmatpush1.bf16.msra.mxu0 %v4111
      %4340 = vmatprep.subr.bf16.mxu0 %v4120
      %4341 = vmatpush1.bf16.msra.mxu0 %v4119
      %4342 = vmatprep.subr.bf16.mxu0 %v4128
      %4343 = vmatpush1.bf16.msra.mxu0 %v4127
      %4344 = vmatprep.subr.bf16.mxu0 %v4207
      %4345 = vmatpush1.bf16.msra.mxu0 %v4204
      %4346 = vmatprep.subr.bf16.mxu0 0
      %4347 = vmatpush1.bf16.msra.mxu0 0
      %4348 = vmatprep.subr.bf16.mxu0 0
      %4349 = vmatpush1.bf16.msra.mxu0 0
      %4350 = vmatprep.subr.bf16.mxu0 0
      %4351 = vmatpush1.bf16.msra.mxu0 0
      %4352 = vmatprep.subr.bf16.mxu0 0
      %4353 = vmatpush1.bf16.msra.mxu0 0
      %4354 = vmatprep.subr.bf16.mxu0 0
      %4355 = vmatpush1.bf16.msra.mxu0 0
      %4356 = vmatprep.subr.bf16.mxu0 0
      %4357 = vmatpush1.bf16.msra.mxu0 0
      %4358 = vmatprep.subr.bf16.mxu0 0
      %4359 = vmatpush1.bf16.msra.mxu0 0
      %4360 = vmatprep.subr.bf16.mxu0 0
      %4361 = vmatpush1.bf16.msra.mxu0 0
      %4362 = vmatprep.subr.bf16.mxu0 0
      %4363 = vmatpush1.bf16.msra.mxu0 0
      %4364 = vmatprep.mubr.bf16.mxu0 0
      %4365 = vmatmul.mubr.bf16.gmra.mrb[0].mxu0 %v1029
      %v4366 = vpop.f32.mrb[0].mxu0
      %v4367 = vadd.f32 %v3907, %v4366
      %v4368 = vpop.f32.mrb[0].mxu0
      %v4369 = vadd.f32 %v3909, %v4368
      %v4370 = vpop.f32.mrb[0].mxu0
      %v4371 = vpop.f32.mrb[0].mxu0
      %4372 = vdwg.mxu0
      %s4373 = scalar_lea.vmem %s165, 1792
      %v4374 = vld [vmem:[%s4373] sm:$0xff]
      %v4375 = vld [vmem:[%s4373 + $0x8] sm:$0xff]
      %v4376 = vld [vmem:[%s4373 + $0x10] sm:$0xff]
      %v4377 = vld [vmem:[%s4373 + $0x18] sm:$0xff]
      %v4378 = vld [vmem:[%s4373 + $0x20] sm:$0xff]
      %v4379 = vld [vmem:[%s4373 + $0x28] sm:$0xff]
      %v4380 = vld [vmem:[%s4373 + $0x30] sm:$0xff]
      %v4381 = vld [vmem:[%s4373 + $0x38] sm:$0xff]
      %v4382 = vld [vmem:[%s4373 + $0x40] sm:$0xff]
      %v4383 = vld [vmem:[%s4373 + $0x48] sm:$0xff]
      %v4384 = vld [vmem:[%s4373 + $0x50] sm:$0xff]
      %v4385 = vld [vmem:[%s4373 + $0x58] sm:$0xff]
      %v4386 = vld [vmem:[%s4373 + $0x60] sm:$0xff]
      %v4387 = vld [vmem:[%s4373 + $0x68] sm:$0xff]
      %v4388 = vld [vmem:[%s4373 + $0x70] sm:$0xff]
      %v4389 = vld [vmem:[%s4373 + $0x78] sm:$0xff]
      %v4390 = vld [vmem:[%s4373 + $0x80] sm:$0xff]
      %v4391 = vld [vmem:[%s4373 + $0x88] sm:$0xff]
      %v4392 = vld [vmem:[%s4373 + $0x90] sm:$0xff]
      %v4393 = vld [vmem:[%s4373 + $0x98] sm:$0xff]
      %v4394 = vld [vmem:[%s4373 + $0xa0] sm:$0xff]
      %v4395 = vld [vmem:[%s4373 + $0xa8] sm:$0xff]
      %v4396 = vld [vmem:[%s4373 + $0xb0] sm:$0xff]
      %v4397 = vld [vmem:[%s4373 + $0xb8] sm:$0xff]
      %v4398 = vld [vmem:[%s4373 + $0xc0] sm:$0xff]
      %v4399 = vld [vmem:[%s4373 + $0xc8] sm:$0xff]
      %v4400 = vld [vmem:[%s4373 + $0xd0] sm:$0xff]
      %v4401 = vld [vmem:[%s4373 + $0xd8] sm:$0xff]
      %v4402 = vld [vmem:[%s4373 + $0xe0] sm:$0xff]
      %v4403 = vld [vmem:[%s4373 + $0xe8] sm:$0xff]
      %v4404 = vld [vmem:[%s4373 + $0xf0] sm:$0xff]
      %v4405 = vld [vmem:[%s4373 + $0xf8] sm:$0xff]
      %v4406 = vld [vmem:[%s4373 + $0x100] sm:$0xff]
      %v4407 = vld [vmem:[%s4373 + $0x108] sm:$0xff]
      %v4408 = vld [vmem:[%s4373 + $0x110] sm:$0xff]
      %v4409 = vld [vmem:[%s4373 + $0x118] sm:$0xff]
      %v4410 = vld [vmem:[%s4373 + $0x120] sm:$0xff]
      %v4411 = vld [vmem:[%s4373 + $0x128] sm:$0xff]
      %v4412 = vld [vmem:[%s4373 + $0x130] sm:$0xff]
      %v4413 = vld [vmem:[%s4373 + $0x138] sm:$0xff]
      %v4414 = vld [vmem:[%s4373 + $0x140] sm:$0xff]
      %v4415 = vld [vmem:[%s4373 + $0x148] sm:$0xff]
      %v4416 = vld [vmem:[%s4373 + $0x150] sm:$0xff]
      %v4417 = vld [vmem:[%s4373 + $0x158] sm:$0xff]
      %v4418 = vld [vmem:[%s4373 + $0x160] sm:$0xff]
      %v4419 = vld [vmem:[%s4373 + $0x168] sm:$0xff]
      %v4420 = vld [vmem:[%s4373 + $0x170] sm:$0xff]
      %v4421 = vld [vmem:[%s4373 + $0x178] sm:$0xff]
      %v4422 = vld [vmem:[%s4373 + $0x180] sm:$0xff]
      %v4423 = vld [vmem:[%s4373 + $0x188] sm:$0xff]
      %v4424 = vld [vmem:[%s4373 + $0x190] sm:$0xff]
      %v4425 = vld [vmem:[%s4373 + $0x198] sm:$0xff]
      %v4426 = vld [vmem:[%s4373 + $0x1a0] sm:$0x33]
      %v4427 = vld [vmem:[%s4373 + $0x1a8] sm:$0x33]
      %v4428 = vld [vmem:[%s4373 + $0x1b0] sm:$0x33]
      %v4429 = vld [vmem:[%s4373 + $0x1b8] sm:$0x33]
      %v4486 = vunpack.c.l.b16 %v4374
      %v4487 = vunpack.c.h.b16 %v4374
      %v4488 = vunpack.c.l.b16 %v4375
      %v4489 = vunpack.c.h.b16 %v4375
      %v4490 = vunpack.c.l.b16 %v4376
      %v4491 = vunpack.c.h.b16 %v4376
      %v4492 = vunpack.c.l.b16 %v4377
      %v4493 = vunpack.c.h.b16 %v4377
      %v4494 = vunpack.c.l.b16 %v4378
      %v4495 = vunpack.c.h.b16 %v4378
      %v4496 = vunpack.c.l.b16 %v4379
      %v4497 = vunpack.c.h.b16 %v4379
      %v4498 = vunpack.c.l.b16 %v4380
      %v4499 = vunpack.c.h.b16 %v4380
      %v4500 = vunpack.c.l.b16 %v4381
      %v4501 = vunpack.c.h.b16 %v4381
      %v4502 = vunpack.c.l.b16 %v4382
      %v4503 = vunpack.c.h.b16 %v4382
      %v4504 = vunpack.c.l.b16 %v4383
      %v4505 = vunpack.c.h.b16 %v4383
      %v4506 = vunpack.c.l.b16 %v4384
      %v4507 = vunpack.c.h.b16 %v4384
      %v4508 = vunpack.c.l.b16 %v4385
      %v4509 = vunpack.c.h.b16 %v4385
      %v4510 = vunpack.c.l.b16 %v4386
      %v4511 = vunpack.c.h.b16 %v4386
      %v4512 = vunpack.c.l.b16 %v4387
      %v4513 = vunpack.c.h.b16 %v4387
      %v4514 = vunpack.c.l.b16 %v4388
      %v4515 = vunpack.c.h.b16 %v4388
      %v4516 = vunpack.c.l.b16 %v4389
      %v4517 = vunpack.c.h.b16 %v4389
      %v4518 = vunpack.c.l.b16 %v4390
      %v4519 = vunpack.c.h.b16 %v4390
      %v4520 = vunpack.c.l.b16 %v4391
      %v4521 = vunpack.c.h.b16 %v4391
      %v4522 = vunpack.c.l.b16 %v4392
      %v4523 = vunpack.c.h.b16 %v4392
      %v4524 = vunpack.c.l.b16 %v4393
      %v4525 = vunpack.c.h.b16 %v4393
      %v4526 = vunpack.c.l.b16 %v4394
      %v4527 = vunpack.c.h.b16 %v4394
      %v4528 = vunpack.c.l.b16 %v4395
      %v4529 = vunpack.c.h.b16 %v4395
      %v4530 = vunpack.c.l.b16 %v4396
      %v4531 = vunpack.c.h.b16 %v4396
      %v4532 = vunpack.c.l.b16 %v4397
      %v4533 = vunpack.c.h.b16 %v4397
      %v4534 = vunpack.c.l.b16 %v4398
      %v4535 = vunpack.c.h.b16 %v4398
      %v4536 = vunpack.c.l.b16 %v4399
      %v4537 = vunpack.c.h.b16 %v4399
      %v4538 = vunpack.c.l.b16 %v4400
      %v4539 = vunpack.c.h.b16 %v4400
      %v4540 = vunpack.c.l.b16 %v4401
      %v4541 = vunpack.c.h.b16 %v4401
      %v4542 = vunpack.c.l.b16 %v4402
      %v4543 = vunpack.c.h.b16 %v4402
      %v4544 = vunpack.c.l.b16 %v4403
      %v4545 = vunpack.c.h.b16 %v4403
      %v4546 = vunpack.c.l.b16 %v4404
      %v4547 = vunpack.c.h.b16 %v4404
      %v4548 = vunpack.c.l.b16 %v4405
      %v4549 = vunpack.c.h.b16 %v4405
      %v4550 = vunpack.c.l.b16 %v4406
      %v4551 = vunpack.c.h.b16 %v4406
      %v4552 = vunpack.c.l.b16 %v4407
      %v4553 = vunpack.c.h.b16 %v4407
      %v4554 = vunpack.c.l.b16 %v4408
      %v4555 = vunpack.c.h.b16 %v4408
      %v4556 = vunpack.c.l.b16 %v4409
      %v4557 = vunpack.c.h.b16 %v4409
      %v4558 = vunpack.c.l.b16 %v4410
      %v4559 = vunpack.c.h.b16 %v4410
      %v4560 = vunpack.c.l.b16 %v4411
      %v4561 = vunpack.c.h.b16 %v4411
      %v4562 = vunpack.c.l.b16 %v4412
      %v4563 = vunpack.c.h.b16 %v4412
      %v4564 = vunpack.c.l.b16 %v4413
      %v4565 = vunpack.c.h.b16 %v4413
      %v4566 = vunpack.c.l.b16 %v4414
      %v4567 = vunpack.c.h.b16 %v4414
      %v4568 = vunpack.c.l.b16 %v4415
      %v4569 = vunpack.c.h.b16 %v4415
      %v4570 = vunpack.c.l.b16 %v4416
      %v4571 = vunpack.c.h.b16 %v4416
      %v4572 = vunpack.c.l.b16 %v4417
      %v4573 = vunpack.c.h.b16 %v4417
      %v4574 = vunpack.c.l.b16 %v4418
      %v4575 = vunpack.c.h.b16 %v4418
      %v4576 = vunpack.c.l.b16 %v4419
      %v4577 = vunpack.c.h.b16 %v4419
      %v4578 = vunpack.c.l.b16 %v4420
      %v4579 = vunpack.c.h.b16 %v4420
      %v4580 = vunpack.c.l.b16 %v4421
      %v4581 = vunpack.c.h.b16 %v4421
      %v4582 = vunpack.c.l.b16 %v4422
      %v4583 = vunpack.c.h.b16 %v4422
      %v4584 = vunpack.c.l.b16 %v4423
      %v4585 = vunpack.c.h.b16 %v4423
      %v4586 = vunpack.c.l.b16 %v4424
      %v4587 = vunpack.c.h.b16 %v4424
      %v4588 = vunpack.c.l.b16 %v4425
      %v4589 = vunpack.c.h.b16 %v4425
      %v4590 = vunpack.c.l.b16 %v4426
      %v4591 = vunpack.c.h.b16 %v4426
      %v4592 = vunpack.c.l.b16 %v4427
      %v4593 = vunpack.c.h.b16 %v4427
      %v4594 = vunpack.c.l.b16 %v4428
      %v4595 = vunpack.c.h.b16 %v4428
      %v4596 = vunpack.c.l.b16 %v4429
      %v4597 = vunpack.c.h.b16 %v4429
      %v4598 = vpack.c.b16 %v4494, %v4486
      %v4599 = vpack.c.b16 %v4495, %v4487
      %v4600 = vpack.c.b16 %v4496, %v4488
      %v4601 = vpack.c.b16 %v4497, %v4489
      %v4602 = vpack.c.b16 %v4498, %v4490
      %v4603 = vpack.c.b16 %v4499, %v4491
      %v4604 = vpack.c.b16 %v4500, %v4492
      %v4605 = vpack.c.b16 %v4501, %v4493
      %v4606 = vpack.c.b16 %v4510, %v4502
      %v4607 = vpack.c.b16 %v4511, %v4503
      %v4608 = vpack.c.b16 %v4512, %v4504
      %v4609 = vpack.c.b16 %v4513, %v4505
      %v4610 = vpack.c.b16 %v4514, %v4506
      %v4611 = vpack.c.b16 %v4515, %v4507
      %v4612 = vpack.c.b16 %v4516, %v4508
      %v4613 = vpack.c.b16 %v4517, %v4509
      %v4614 = vpack.c.b16 %v4526, %v4518
      %v4615 = vpack.c.b16 %v4527, %v4519
      %v4616 = vpack.c.b16 %v4528, %v4520
      %v4617 = vpack.c.b16 %v4529, %v4521
      %v4618 = vpack.c.b16 %v4530, %v4522
      %v4619 = vpack.c.b16 %v4531, %v4523
      %v4620 = vpack.c.b16 %v4532, %v4524
      %v4621 = vpack.c.b16 %v4533, %v4525
      %v4622 = vpack.c.b16 %v4542, %v4534
      %v4623 = vpack.c.b16 %v4543, %v4535
      %v4624 = vpack.c.b16 %v4544, %v4536
      %v4625 = vpack.c.b16 %v4545, %v4537
      %v4626 = vpack.c.b16 %v4546, %v4538
      %v4627 = vpack.c.b16 %v4547, %v4539
      %v4628 = vpack.c.b16 %v4548, %v4540
      %v4629 = vpack.c.b16 %v4549, %v4541
      %v4630 = vpack.c.b16 %v4558, %v4550
      %v4631 = vpack.c.b16 %v4559, %v4551
      %v4632 = vpack.c.b16 %v4560, %v4552
      %v4633 = vpack.c.b16 %v4561, %v4553
      %v4634 = vpack.c.b16 %v4562, %v4554
      %v4635 = vpack.c.b16 %v4563, %v4555
      %v4636 = vpack.c.b16 %v4564, %v4556
      %v4637 = vpack.c.b16 %v4565, %v4557
      %v4638 = vpack.c.b16 %v4574, %v4566
      %v4639 = vpack.c.b16 %v4575, %v4567
      %v4640 = vpack.c.b16 %v4576, %v4568
      %v4641 = vpack.c.b16 %v4577, %v4569
      %v4642 = vpack.c.b16 %v4578, %v4570
      %v4643 = vpack.c.b16 %v4579, %v4571
      %v4644 = vpack.c.b16 %v4580, %v4572
      %v4645 = vpack.c.b16 %v4581, %v4573
      %v4646 = vpack.c.b16 %v4590, %v4582
      %v4647 = vpack.c.b16 %v4591, %v4583
      %v4648 = vpack.c.b16 %v4592, %v4584
      %v4649 = vpack.c.b16 %v4593, %v4585
      %v4650 = vpack.c.b16 %v4594, %v4586
      %v4651 = vpack.c.b16 %v4595, %v4587
      %v4652 = vpack.c.b16 %v4596, %v4588
      %v4653 = vpack.c.b16 %v4597, %v4589
      %v4703 = vsel %vm567, %v4646, 0
      %v4706 = vsel %vm567, %v4647, 0
      %v4709 = vsel %vm567, %v4648, 0
      %v4712 = vsel %vm567, %v4649, 0
      %v4715 = vsel %vm567, %v4650, 0
      %v4718 = vsel %vm567, %v4651, 0
      %v4721 = vsel %vm567, %v4652, 0
      %v4724 = vsel %vm567, %v4653, 0
      %4726 = vmatprep.subr.bf16.mxu0 %v4599
      %4727 = vmatpush1.bf16.msra.mxu0 %v4598
      %4728 = vmatprep.subr.bf16.mxu0 %v4607
      %4729 = vmatpush1.bf16.msra.mxu0 %v4606
      %4730 = vmatprep.subr.bf16.mxu0 %v4615
      %4731 = vmatpush1.bf16.msra.mxu0 %v4614
      %4732 = vmatprep.subr.bf16.mxu0 %v4623
      %4733 = vmatpush1.bf16.msra.mxu0 %v4622
      %4734 = vmatprep.subr.bf16.mxu0 %v4631
      %4735 = vmatpush1.bf16.msra.mxu0 %v4630
      %4736 = vmatprep.subr.bf16.mxu0 %v4639
      %4737 = vmatpush1.bf16.msra.mxu0 %v4638
      %4738 = vmatprep.subr.bf16.mxu0 %v4706
      %4739 = vmatpush1.bf16.msra.mxu0 %v4703
      %4740 = vmatprep.subr.bf16.mxu0 0
      %4741 = vmatpush1.bf16.msra.mxu0 0
      %4742 = vmatprep.subr.bf16.mxu0 0
      %4743 = vmatpush1.bf16.msra.mxu0 0
      %4744 = vmatprep.subr.bf16.mxu0 0
      %4745 = vmatpush1.bf16.msra.mxu0 0
      %4746 = vmatprep.subr.bf16.mxu0 0
      %4747 = vmatpush1.bf16.msra.mxu0 0
      %4748 = vmatprep.subr.bf16.mxu0 0
      %4749 = vmatpush1.bf16.msra.mxu0 0
      %4750 = vmatprep.subr.bf16.mxu0 0
      %4751 = vmatpush1.bf16.msra.mxu0 0
      %4752 = vmatprep.subr.bf16.mxu0 0
      %4753 = vmatpush1.bf16.msra.mxu0 0
      %4754 = vmatprep.subr.bf16.mxu0 0
      %4755 = vmatpush1.bf16.msra.mxu0 0
      %4756 = vmatprep.subr.bf16.mxu0 0
      %4757 = vmatpush1.bf16.msra.mxu0 0
      %4758 = vmatprep.mubr.bf16.mxu0 0
      %4759 = vmatmul.mubr.bf16.gmra.mrb[0].mxu0 %v1549
      %v4760 = vpop.f32.mrb[0].mxu0
      %v4761 = vadd.f32 0.0, %v4760
      %v4762 = vpop.f32.mrb[0].mxu0
      %v4763 = vadd.f32 0.0, %v4762
      %v4764 = vpop.f32.mrb[0].mxu0
      %v4765 = vpop.f32.mrb[0].mxu0
      %4766 = vdwg.mxu0
      %4767 = vmatprep.subr.bf16.mxu0 %v4601
      %4768 = vmatpush1.bf16.msra.mxu0 %v4600
      %4769 = vmatprep.subr.bf16.mxu0 %v4609
      %4770 = vmatpush1.bf16.msra.mxu0 %v4608
      %4771 = vmatprep.subr.bf16.mxu0 %v4617
      %4772 = vmatpush1.bf16.msra.mxu0 %v4616
      %4773 = vmatprep.subr.bf16.mxu0 %v4625
      %4774 = vmatpush1.bf16.msra.mxu0 %v4624
      %4775 = vmatprep.subr.bf16.mxu0 %v4633
      %4776 = vmatpush1.bf16.msra.mxu0 %v4632
      %4777 = vmatprep.subr.bf16.mxu0 %v4641
      %4778 = vmatpush1.bf16.msra.mxu0 %v4640
      %4779 = vmatprep.subr.bf16.mxu0 %v4712
      %4780 = vmatpush1.bf16.msra.mxu0 %v4709
      %4781 = vmatprep.subr.bf16.mxu0 0
      %4782 = vmatpush1.bf16.msra.mxu0 0
      %4783 = vmatprep.subr.bf16.mxu0 0
      %4784 = vmatpush1.bf16.msra.mxu0 0
      %4785 = vmatprep.subr.bf16.mxu0 0
      %4786 = vmatpush1.bf16.msra.mxu0 0
      %4787 = vmatprep.subr.bf16.mxu0 0
      %4788 = vmatpush1.bf16.msra.mxu0 0
      %4789 = vmatprep.subr.bf16.mxu0 0
      %4790 = vmatpush1.bf16.msra.mxu0 0
      %4791 = vmatprep.subr.bf16.mxu0 0
      %4792 = vmatpush1.bf16.msra.mxu0 0
      %4793 = vmatprep.subr.bf16.mxu0 0
      %4794 = vmatpush1.bf16.msra.mxu0 0
      %4795 = vmatprep.subr.bf16.mxu0 0
      %4796 = vmatpush1.bf16.msra.mxu0 0
      %4797 = vmatprep.subr.bf16.mxu0 0
      %4798 = vmatpush1.bf16.msra.mxu0 0
      %4799 = vmatprep.mubr.bf16.mxu0 0
      %4800 = vmatmul.mubr.bf16.gmra.mrb[0].mxu0 %v1549
      %v4801 = vpop.f32.mrb[0].mxu0
      %v4802 = vadd.f32 0.0, %v4801
      %v4803 = vpop.f32.mrb[0].mxu0
      %v4804 = vadd.f32 0.0, %v4803
      %v4805 = vpop.f32.mrb[0].mxu0
      %v4806 = vpop.f32.mrb[0].mxu0
      %4807 = vdwg.mxu0
      %4808 = vmatprep.subr.bf16.mxu0 %v4603
      %4809 = vmatpush1.bf16.msra.mxu0 %v4602
      %4810 = vmatprep.subr.bf16.mxu0 %v4611
      %4811 = vmatpush1.bf16.msra.mxu0 %v4610
      %4812 = vmatprep.subr.bf16.mxu0 %v4619
      %4813 = vmatpush1.bf16.msra.mxu0 %v4618
      %4814 = vmatprep.subr.bf16.mxu0 %v4627
      %4815 = vmatpush1.bf16.msra.mxu0 %v4626
      %4816 = vmatprep.subr.bf16.mxu0 %v4635
      %4817 = vmatpush1.bf16.msra.mxu0 %v4634
      %4818 = vmatprep.subr.bf16.mxu0 %v4643
      %4819 = vmatpush1.bf16.msra.mxu0 %v4642
      %4820 = vmatprep.subr.bf16.mxu0 %v4718
      %4821 = vmatpush1.bf16.msra.mxu0 %v4715
      %4822 = vmatprep.subr.bf16.mxu0 0
      %4823 = vmatpush1.bf16.msra.mxu0 0
      %4824 = vmatprep.subr.bf16.mxu0 0
      %4825 = vmatpush1.bf16.msra.mxu0 0
      %4826 = vmatprep.subr.bf16.mxu0 0
      %4827 = vmatpush1.bf16.msra.mxu0 0
      %4828 = vmatprep.subr.bf16.mxu0 0
      %4829 = vmatpush1.bf16.msra.mxu0 0
      %4830 = vmatprep.subr.bf16.mxu0 0
      %4831 = vmatpush1.bf16.msra.mxu0 0
      %4832 = vmatprep.subr.bf16.mxu0 0
      %4833 = vmatpush1.bf16.msra.mxu0 0
      %4834 = vmatprep.subr.bf16.mxu0 0
      %4835 = vmatpush1.bf16.msra.mxu0 0
      %4836 = vmatprep.subr.bf16.mxu0 0
      %4837 = vmatpush1.bf16.msra.mxu0 0
      %4838 = vmatprep.subr.bf16.mxu0 0
      %4839 = vmatpush1.bf16.msra.mxu0 0
      %4840 = vmatprep.mubr.bf16.mxu0 0
      %4841 = vmatmul.mubr.bf16.gmra.mrb[0].mxu0 %v1549
      %v4842 = vpop.f32.mrb[0].mxu0
      %v4843 = vadd.f32 0.0, %v4842
      %v4844 = vpop.f32.mrb[0].mxu0
      %v4845 = vadd.f32 0.0, %v4844
      %v4846 = vpop.f32.mrb[0].mxu0
      %v4847 = vpop.f32.mrb[0].mxu0
      %4848 = vdwg.mxu0
      %4849 = vmatprep.subr.bf16.mxu0 %v4605
      %4850 = vmatpush1.bf16.msra.mxu0 %v4604
      %4851 = vmatprep.subr.bf16.mxu0 %v4613
      %4852 = vmatpush1.bf16.msra.mxu0 %v4612
      %4853 = vmatprep.subr.bf16.mxu0 %v4621
      %4854 = vmatpush1.bf16.msra.mxu0 %v4620
      %4855 = vmatprep.subr.bf16.mxu0 %v4629
      %4856 = vmatpush1.bf16.msra.mxu0 %v4628
      %4857 = vmatprep.subr.bf16.mxu0 %v4637
      %4858 = vmatpush1.bf16.msra.mxu0 %v4636
      %4859 = vmatprep.subr.bf16.mxu0 %v4645
      %4860 = vmatpush1.bf16.msra.mxu0 %v4644
      %4861 = vmatprep.subr.bf16.mxu0 %v4724
      %4862 = vmatpush1.bf16.msra.mxu0 %v4721
      %4863 = vmatprep.subr.bf16.mxu0 0
      %4864 = vmatpush1.bf16.msra.mxu0 0
      %4865 = vmatprep.subr.bf16.mxu0 0
      %4866 = vmatpush1.bf16.msra.mxu0 0
      %4867 = vmatprep.subr.bf16.mxu0 0
      %4868 = vmatpush1.bf16.msra.mxu0 0
      %4869 = vmatprep.subr.bf16.mxu0 0
      %4870 = vmatpush1.bf16.msra.mxu0 0
      %4871 = vmatprep.subr.bf16.mxu0 0
      %4872 = vmatpush1.bf16.msra.mxu0 0
      %4873 = vmatprep.subr.bf16.mxu0 0
      %4874 = vmatpush1.bf16.msra.mxu0 0
      %4875 = vmatprep.subr.bf16.mxu0 0
      %4876 = vmatpush1.bf16.msra.mxu0 0
      %4877 = vmatprep.subr.bf16.mxu0 0
      %4878 = vmatpush1.bf16.msra.mxu0 0
      %4879 = vmatprep.subr.bf16.mxu0 0
      %4880 = vmatpush1.bf16.msra.mxu0 0
      %4881 = vmatprep.mubr.bf16.mxu0 0
      %4882 = vmatmul.mubr.bf16.gmra.mrb[0].mxu0 %v1549
      %v4883 = vpop.f32.mrb[0].mxu0
      %v4884 = vadd.f32 0.0, %v4883
      %v4885 = vpop.f32.mrb[0].mxu0
      %v4886 = vadd.f32 0.0, %v4885
      %v4887 = vpop.f32.mrb[0].mxu0
      %v4888 = vpop.f32.mrb[0].mxu0
      %4889 = vdwg.mxu0
      %v4890 = vadd.f32 %v4244, %v4761
      %v4891 = vadd.f32 %v4246, %v4763
      %v4892 = vadd.f32 %v4285, %v4802
      %v4893 = vadd.f32 %v4287, %v4804
      %v4894 = vadd.f32 %v4326, %v4843
      %v4895 = vadd.f32 %v4328, %v4845
      %v4896 = vadd.f32 %v4367, %v4884
      %v4897 = vadd.f32 %v4369, %v4886
      %v4898 = vadd.f32 %v4890, %v1750
      %v4899 = vadd.f32 %v4891, %v1750
      %v4900 = vadd.f32 %v4892, %v1750
      %v4901 = vadd.f32 %v4893, %v1750
      %v4902 = vadd.f32 %v4894, %v1750
      %v4903 = vadd.f32 %v4895, %v1750
      %v4904 = vadd.f32 %v4896, %v1750
      %v4905 = vadd.f32 %v4897, %v1750
      %4906 = vst [vmem:[%s170 + $0x80] sm:$0xff] %v4898
      %4907 = vst [vmem:[%s170 + $0x88] sm:$0xff] %v4899
      %4908 = vst [vmem:[%s170 + $0x90] sm:$0xff] %v4900
      %4909 = vst [vmem:[%s170 + $0x98] sm:$0xff] %v4901
      %4910 = vst [vmem:[%s170 + $0xa0] sm:$0xff] %v4902
      %4911 = vst [vmem:[%s170 + $0xa8] sm:$0xff] %v4903
      %4912 = vst [vmem:[%s170 + $0xb0] sm:$0xff] %v4904
      %4913 = vst [vmem:[%s170 + $0xb8] sm:$0xff] %v4905
      %v4914 = vld [vmem:[%s2800] sm:$0xff]
      %v4915 = vld [vmem:[%s2800 + $0x8] sm:$0xff]
      %v4916 = vld [vmem:[%s2800 + $0x10] sm:$0xff]
      %v4917 = vld [vmem:[%s2800 + $0x18] sm:$0xff]
      %v4918 = vld [vmem:[%s2800 + $0x20] sm:$0xff]
      %v4919 = vld [vmem:[%s2800 + $0x28] sm:$0xff]
      %v4920 = vld [vmem:[%s2800 + $0x30] sm:$0xff]
      %v4921 = vld [vmem:[%s2800 + $0x38] sm:$0xff]
      %v4922 = vld [vmem:[%s2800 + $0x40] sm:$0xff]
      %v4923 = vld [vmem:[%s2800 + $0x48] sm:$0xff]
      %v4924 = vld [vmem:[%s2800 + $0x50] sm:$0xff]
      %v4925 = vld [vmem:[%s2800 + $0x58] sm:$0xff]
      %v4926 = vld [vmem:[%s2800 + $0x60] sm:$0xff]
      %v4927 = vld [vmem:[%s2800 + $0x68] sm:$0xff]
      %v4928 = vld [vmem:[%s2800 + $0x70] sm:$0xff]
      %v4929 = vld [vmem:[%s2800 + $0x78] sm:$0xff]
      %v4930 = vld [vmem:[%s2800 + $0x80] sm:$0xff]
      %v4931 = vld [vmem:[%s2800 + $0x88] sm:$0xff]
      %v4932 = vld [vmem:[%s2800 + $0x90] sm:$0xff]
      %v4933 = vld [vmem:[%s2800 + $0x98] sm:$0xff]
      %v4934 = vld [vmem:[%s2800 + $0xa0] sm:$0xff]
      %v4935 = vld [vmem:[%s2800 + $0xa8] sm:$0xff]
      %v4936 = vld [vmem:[%s2800 + $0xb0] sm:$0xff]
      %v4937 = vld [vmem:[%s2800 + $0xb8] sm:$0xff]
      %v4938 = vld [vmem:[%s2800 + $0xc0] sm:$0xff]
      %v4939 = vld [vmem:[%s2800 + $0xc8] sm:$0xff]
      %v4940 = vld [vmem:[%s2800 + $0xd0] sm:$0xff]
      %v4941 = vld [vmem:[%s2800 + $0xd8] sm:$0xff]
      %v4942 = vld [vmem:[%s2800 + $0xe0] sm:$0xff]
      %v4943 = vld [vmem:[%s2800 + $0xe8] sm:$0xff]
      %v4944 = vld [vmem:[%s2800 + $0xf0] sm:$0xff]
      %v4945 = vld [vmem:[%s2800 + $0xf8] sm:$0xff]
      %v4946 = vld [vmem:[%s2800 + $0x100] sm:$0xff]
      %v4947 = vld [vmem:[%s2800 + $0x108] sm:$0xff]
      %v4948 = vld [vmem:[%s2800 + $0x110] sm:$0xff]
      %v4949 = vld [vmem:[%s2800 + $0x118] sm:$0xff]
      %v4950 = vld [vmem:[%s2800 + $0x120] sm:$0xff]
      %v4951 = vld [vmem:[%s2800 + $0x128] sm:$0xff]
      %v4952 = vld [vmem:[%s2800 + $0x130] sm:$0xff]
      %v4953 = vld [vmem:[%s2800 + $0x138] sm:$0xff]
      %v4954 = vld [vmem:[%s2800 + $0x140] sm:$0xff]
      %v4955 = vld [vmem:[%s2800 + $0x148] sm:$0xff]
      %v4956 = vld [vmem:[%s2800 + $0x150] sm:$0xff]
      %v4957 = vld [vmem:[%s2800 + $0x158] sm:$0xff]
      %v4958 = vld [vmem:[%s2800 + $0x160] sm:$0xff]
      %v4959 = vld [vmem:[%s2800 + $0x168] sm:$0xff]
      %v4960 = vld [vmem:[%s2800 + $0x170] sm:$0xff]
      %v4961 = vld [vmem:[%s2800 + $0x178] sm:$0xff]
      %v4962 = vld [vmem:[%s2800 + $0x180] sm:$0xff]
      %v4963 = vld [vmem:[%s2800 + $0x188] sm:$0xff]
      %v4964 = vld [vmem:[%s2800 + $0x190] sm:$0xff]
      %v4965 = vld [vmem:[%s2800 + $0x198] sm:$0xff]
      %v4966 = vld [vmem:[%s2800 + $0x1a0] sm:$0x33]
      %v4967 = vld [vmem:[%s2800 + $0x1a8] sm:$0x33]
      %v4968 = vld [vmem:[%s2800 + $0x1b0] sm:$0x33]
      %v4969 = vld [vmem:[%s2800 + $0x1b8] sm:$0x33]
      %v4970 = vld [vmem:[%s4373] sm:$0xff]
      %v4971 = vld [vmem:[%s4373 + $0x8] sm:$0xff]
      %v4972 = vld [vmem:[%s4373 + $0x10] sm:$0xff]
      %v4973 = vld [vmem:[%s4373 + $0x18] sm:$0xff]
      %v4974 = vld [vmem:[%s4373 + $0x20] sm:$0xff]
      %v4975 = vld [vmem:[%s4373 + $0x28] sm:$0xff]
      %v4976 = vld [vmem:[%s4373 + $0x30] sm:$0xff]
      %v4977 = vld [vmem:[%s4373 + $0x38] sm:$0xff]
      %v4978 = vld [vmem:[%s4373 + $0x40] sm:$0xff]
      %v4979 = vld [vmem:[%s4373 + $0x48] sm:$0xff]
      %v4980 = vld [vmem:[%s4373 + $0x50] sm:$0xff]
      %v4981 = vld [vmem:[%s4373 + $0x58] sm:$0xff]
      %v4982 = vld [vmem:[%s4373 + $0x60] sm:$0xff]
      %v4983 = vld [vmem:[%s4373 + $0x68] sm:$0xff]
      %v4984 = vld [vmem:[%s4373 + $0x70] sm:$0xff]
      %v4985 = vld [vmem:[%s4373 + $0x78] sm:$0xff]
      %v4986 = vld [vmem:[%s4373 + $0x80] sm:$0xff]
      %v4987 = vld [vmem:[%s4373 + $0x88] sm:$0xff]
      %v4988 = vld [vmem:[%s4373 + $0x90] sm:$0xff]
      %v4989 = vld [vmem:[%s4373 + $0x98] sm:$0xff]
      %v4990 = vld [vmem:[%s4373 + $0xa0] sm:$0xff]
      %v4991 = vld [vmem:[%s4373 + $0xa8] sm:$0xff]
      %v4992 = vld [vmem:[%s4373 + $0xb0] sm:$0xff]
      %v4993 = vld [vmem:[%s4373 + $0xb8] sm:$0xff]
      %v4994 = vld [vmem:[%s4373 + $0xc0] sm:$0xff]
      %v4995 = vld [vmem:[%s4373 + $0xc8] sm:$0xff]
      %v4996 = vld [vmem:[%s4373 + $0xd0] sm:$0xff]
      %v4997 = vld [vmem:[%s4373 + $0xd8] sm:$0xff]
      %v4998 = vld [vmem:[%s4373 + $0xe0] sm:$0xff]
      %v4999 = vld [vmem:[%s4373 + $0xe8] sm:$0xff]
      %v5000 = vld [vmem:[%s4373 + $0xf0] sm:$0xff]
      %v5001 = vld [vmem:[%s4373 + $0xf8] sm:$0xff]
      %v5002 = vld [vmem:[%s4373 + $0x100] sm:$0xff]
      %v5003 = vld [vmem:[%s4373 + $0x108] sm:$0xff]
      %v5004 = vld [vmem:[%s4373 + $0x110] sm:$0xff]
      %v5005 = vld [vmem:[%s4373 + $0x118] sm:$0xff]
      %v5006 = vld [vmem:[%s4373 + $0x120] sm:$0xff]
      %v5007 = vld [vmem:[%s4373 + $0x128] sm:$0xff]
      %v5008 = vld [vmem:[%s4373 + $0x130] sm:$0xff]
      %v5009 = vld [vmem:[%s4373 + $0x138] sm:$0xff]
      %v5010 = vld [vmem:[%s4373 + $0x140] sm:$0xff]
      %v5011 = vld [vmem:[%s4373 + $0x148] sm:$0xff]
      %v5012 = vld [vmem:[%s4373 + $0x150] sm:$0xff]
      %v5013 = vld [vmem:[%s4373 + $0x158] sm:$0xff]
      %v5014 = vld [vmem:[%s4373 + $0x160] sm:$0xff]
      %v5015 = vld [vmem:[%s4373 + $0x168] sm:$0xff]
      %v5016 = vld [vmem:[%s4373 + $0x170] sm:$0xff]
      %v5017 = vld [vmem:[%s4373 + $0x178] sm:$0xff]
      %v5018 = vld [vmem:[%s4373 + $0x180] sm:$0xff]
      %v5019 = vld [vmem:[%s4373 + $0x188] sm:$0xff]
      %v5020 = vld [vmem:[%s4373 + $0x190] sm:$0xff]
      %v5021 = vld [vmem:[%s4373 + $0x198] sm:$0xff]
      %v5022 = vld [vmem:[%s4373 + $0x1a0] sm:$0x33]
      %v5023 = vld [vmem:[%s4373 + $0x1a8] sm:$0x33]
      %v5024 = vld [vmem:[%s4373 + $0x1b0] sm:$0x33]
      %v5025 = vld [vmem:[%s4373 + $0x1b8] sm:$0x33]
      %v5082 = vunpack.c.l.b16 %v4970
      %v5083 = vunpack.c.h.b16 %v4970
      %v5084 = vunpack.c.l.b16 %v4971
      %v5085 = vunpack.c.h.b16 %v4971
      %v5086 = vunpack.c.l.b16 %v4972
      %v5087 = vunpack.c.h.b16 %v4972
      %v5088 = vunpack.c.l.b16 %v4973
      %v5089 = vunpack.c.h.b16 %v4973
      %v5090 = vunpack.c.l.b16 %v4974
      %v5091 = vunpack.c.h.b16 %v4974
      %v5092 = vunpack.c.l.b16 %v4975
      %v5093 = vunpack.c.h.b16 %v4975
      %v5094 = vunpack.c.l.b16 %v4976
      %v5095 = vunpack.c.h.b16 %v4976
      %v5096 = vunpack.c.l.b16 %v4977
      %v5097 = vunpack.c.h.b16 %v4977
      %v5098 = vunpack.c.l.b16 %v4978
      %v5099 = vunpack.c.h.b16 %v4978
      %v5100 = vunpack.c.l.b16 %v4979
      %v5101 = vunpack.c.h.b16 %v4979
      %v5102 = vunpack.c.l.b16 %v4980
      %v5103 = vunpack.c.h.b16 %v4980
      %v5104 = vunpack.c.l.b16 %v4981
      %v5105 = vunpack.c.h.b16 %v4981
      %v5106 = vunpack.c.l.b16 %v4982
      %v5107 = vunpack.c.h.b16 %v4982
      %v5108 = vunpack.c.l.b16 %v4983
      %v5109 = vunpack.c.h.b16 %v4983
      %v5110 = vunpack.c.l.b16 %v4984
      %v5111 = vunpack.c.h.b16 %v4984
      %v5112 = vunpack.c.l.b16 %v4985
      %v5113 = vunpack.c.h.b16 %v4985
      %v5114 = vunpack.c.l.b16 %v4986
      %v5115 = vunpack.c.h.b16 %v4986
      %v5116 = vunpack.c.l.b16 %v4987
      %v5117 = vunpack.c.h.b16 %v4987
      %v5118 = vunpack.c.l.b16 %v4988
      %v5119 = vunpack.c.h.b16 %v4988
      %v5120 = vunpack.c.l.b16 %v4989
      %v5121 = vunpack.c.h.b16 %v4989
      %v5122 = vunpack.c.l.b16 %v4990
      %v5123 = vunpack.c.h.b16 %v4990
      %v5124 = vunpack.c.l.b16 %v4991
      %v5125 = vunpack.c.h.b16 %v4991
      %v5126 = vunpack.c.l.b16 %v4992
      %v5127 = vunpack.c.h.b16 %v4992
      %v5128 = vunpack.c.l.b16 %v4993
      %v5129 = vunpack.c.h.b16 %v4993
      %v5130 = vunpack.c.l.b16 %v4994
      %v5131 = vunpack.c.h.b16 %v4994
      %v5132 = vunpack.c.l.b16 %v4995
      %v5133 = vunpack.c.h.b16 %v4995
      %v5134 = vunpack.c.l.b16 %v4996
      %v5135 = vunpack.c.h.b16 %v4996
      %v5136 = vunpack.c.l.b16 %v4997
      %v5137 = vunpack.c.h.b16 %v4997
      %v5138 = vunpack.c.l.b16 %v4998
      %v5139 = vunpack.c.h.b16 %v4998
      %v5140 = vunpack.c.l.b16 %v4999
      %v5141 = vunpack.c.h.b16 %v4999
      %v5142 = vunpack.c.l.b16 %v5000
      %v5143 = vunpack.c.h.b16 %v5000
      %v5144 = vunpack.c.l.b16 %v5001
      %v5145 = vunpack.c.h.b16 %v5001
      %v5146 = vunpack.c.l.b16 %v5002
      %v5147 = vunpack.c.h.b16 %v5002
      %v5148 = vunpack.c.l.b16 %v5003
      %v5149 = vunpack.c.h.b16 %v5003
      %v5150 = vunpack.c.l.b16 %v5004
      %v5151 = vunpack.c.h.b16 %v5004
      %v5152 = vunpack.c.l.b16 %v5005
      %v5153 = vunpack.c.h.b16 %v5005
      %v5154 = vunpack.c.l.b16 %v5006
      %v5155 = vunpack.c.h.b16 %v5006
      %v5156 = vunpack.c.l.b16 %v5007
      %v5157 = vunpack.c.h.b16 %v5007
      %v5158 = vunpack.c.l.b16 %v5008
      %v5159 = vunpack.c.h.b16 %v5008
      %v5160 = vunpack.c.l.b16 %v5009
      %v5161 = vunpack.c.h.b16 %v5009
      %v5162 = vunpack.c.l.b16 %v5010
      %v5163 = vunpack.c.h.b16 %v5010
      %v5164 = vunpack.c.l.b16 %v5011
      %v5165 = vunpack.c.h.b16 %v5011
      %v5166 = vunpack.c.l.b16 %v5012
      %v5167 = vunpack.c.h.b16 %v5012
      %v5168 = vunpack.c.l.b16 %v5013
      %v5169 = vunpack.c.h.b16 %v5013
      %v5170 = vunpack.c.l.b16 %v5014
      %v5171 = vunpack.c.h.b16 %v5014
      %v5172 = vunpack.c.l.b16 %v5015
      %v5173 = vunpack.c.h.b16 %v5015
      %v5174 = vunpack.c.l.b16 %v5016
      %v5175 = vunpack.c.h.b16 %v5016
      %v5176 = vunpack.c.l.b16 %v5017
      %v5177 = vunpack.c.h.b16 %v5017
      %v5178 = vunpack.c.l.b16 %v5018
      %v5179 = vunpack.c.h.b16 %v5018
      %v5180 = vunpack.c.l.b16 %v5019
      %v5181 = vunpack.c.h.b16 %v5019
      %v5182 = vunpack.c.l.b16 %v5020
      %v5183 = vunpack.c.h.b16 %v5020
      %v5184 = vunpack.c.l.b16 %v5021
      %v5185 = vunpack.c.h.b16 %v5021
      %v5186 = vunpack.c.l.b16 %v5022
      %v5187 = vunpack.c.h.b16 %v5022
      %v5188 = vunpack.c.l.b16 %v5023
      %v5189 = vunpack.c.h.b16 %v5023
      %v5190 = vunpack.c.l.b16 %v5024
      %v5191 = vunpack.c.h.b16 %v5024
      %v5192 = vunpack.c.l.b16 %v5025
      %v5193 = vunpack.c.h.b16 %v5025
      %v5194 = vpack.c.b16 %v5090, %v5082
      %v5195 = vpack.c.b16 %v5091, %v5083
      %v5196 = vpack.c.b16 %v5092, %v5084
      %v5197 = vpack.c.b16 %v5093, %v5085
      %v5198 = vpack.c.b16 %v5094, %v5086
      %v5199 = vpack.c.b16 %v5095, %v5087
      %v5200 = vpack.c.b16 %v5096, %v5088
      %v5201 = vpack.c.b16 %v5097, %v5089
      %v5202 = vpack.c.b16 %v5106, %v5098
      %v5203 = vpack.c.b16 %v5107, %v5099
      %v5204 = vpack.c.b16 %v5108, %v5100
      %v5205 = vpack.c.b16 %v5109, %v5101
      %v5206 = vpack.c.b16 %v5110, %v5102
      %v5207 = vpack.c.b16 %v5111, %v5103
      %v5208 = vpack.c.b16 %v5112, %v5104
      %v5209 = vpack.c.b16 %v5113, %v5105
      %v5210 = vpack.c.b16 %v5122, %v5114
      %v5211 = vpack.c.b16 %v5123, %v5115
      %v5212 = vpack.c.b16 %v5124, %v5116
      %v5213 = vpack.c.b16 %v5125, %v5117
      %v5214 = vpack.c.b16 %v5126, %v5118
      %v5215 = vpack.c.b16 %v5127, %v5119
      %v5216 = vpack.c.b16 %v5128, %v5120
      %v5217 = vpack.c.b16 %v5129, %v5121
      %v5218 = vpack.c.b16 %v5138, %v5130
      %v5219 = vpack.c.b16 %v5139, %v5131
      %v5220 = vpack.c.b16 %v5140, %v5132
      %v5221 = vpack.c.b16 %v5141, %v5133
      %v5222 = vpack.c.b16 %v5142, %v5134
      %v5223 = vpack.c.b16 %v5143, %v5135
      %v5224 = vpack.c.b16 %v5144, %v5136
      %v5225 = vpack.c.b16 %v5145, %v5137
      %v5226 = vpack.c.b16 %v5154, %v5146
      %v5227 = vpack.c.b16 %v5155, %v5147
      %v5228 = vpack.c.b16 %v5156, %v5148
      %v5229 = vpack.c.b16 %v5157, %v5149
      %v5230 = vpack.c.b16 %v5158, %v5150
      %v5231 = vpack.c.b16 %v5159, %v5151
      %v5232 = vpack.c.b16 %v5160, %v5152
      %v5233 = vpack.c.b16 %v5161, %v5153
      %v5234 = vpack.c.b16 %v5170, %v5162
      %v5235 = vpack.c.b16 %v5171, %v5163
      %v5236 = vpack.c.b16 %v5172, %v5164
      %v5237 = vpack.c.b16 %v5173, %v5165
      %v5238 = vpack.c.b16 %v5174, %v5166
      %v5239 = vpack.c.b16 %v5175, %v5167
      %v5240 = vpack.c.b16 %v5176, %v5168
      %v5241 = vpack.c.b16 %v5177, %v5169
      %v5242 = vpack.c.b16 %v5186, %v5178
      %v5243 = vpack.c.b16 %v5187, %v5179
      %v5244 = vpack.c.b16 %v5188, %v5180
      %v5245 = vpack.c.b16 %v5189, %v5181
      %v5246 = vpack.c.b16 %v5190, %v5182
      %v5247 = vpack.c.b16 %v5191, %v5183
      %v5248 = vpack.c.b16 %v5192, %v5184
      %v5249 = vpack.c.b16 %v5193, %v5185
      %v5299 = vsel %vm567, %v5242, 0
      %v5302 = vsel %vm567, %v5243, 0
      %v5305 = vsel %vm567, %v5244, 0
      %v5308 = vsel %vm567, %v5245, 0
      %v5311 = vsel %vm567, %v5246, 0
      %v5314 = vsel %vm567, %v5247, 0
      %v5317 = vsel %vm567, %v5248, 0
      %v5320 = vsel %vm567, %v5249, 0
      %5322 = vmatprep.subr.bf16.mxu0 %v5195
      %5323 = vmatpush1.bf16.msra.mxu0 %v5194
      %5324 = vmatprep.subr.bf16.mxu0 %v5203
      %5325 = vmatpush1.bf16.msra.mxu0 %v5202
      %5326 = vmatprep.subr.bf16.mxu0 %v5211
      %5327 = vmatpush1.bf16.msra.mxu0 %v5210
      %5328 = vmatprep.subr.bf16.mxu0 %v5219
      %5329 = vmatpush1.bf16.msra.mxu0 %v5218
      %5330 = vmatprep.subr.bf16.mxu0 %v5227
      %5331 = vmatpush1.bf16.msra.mxu0 %v5226
      %5332 = vmatprep.subr.bf16.mxu0 %v5235
      %5333 = vmatpush1.bf16.msra.mxu0 %v5234
      %5334 = vmatprep.subr.bf16.mxu0 %v5302
      %5335 = vmatpush1.bf16.msra.mxu0 %v5299
      %5336 = vmatprep.subr.bf16.mxu0 0
      %5337 = vmatpush1.bf16.msra.mxu0 0
      %5338 = vmatprep.subr.bf16.mxu0 0
      %5339 = vmatpush1.bf16.msra.mxu0 0
      %5340 = vmatprep.subr.bf16.mxu0 0
      %5341 = vmatpush1.bf16.msra.mxu0 0
      %5342 = vmatprep.subr.bf16.mxu0 0
      %5343 = vmatpush1.bf16.msra.mxu0 0
      %5344 = vmatprep.subr.bf16.mxu0 0
      %5345 = vmatpush1.bf16.msra.mxu0 0
      %5346 = vmatprep.subr.bf16.mxu0 0
      %5347 = vmatpush1.bf16.msra.mxu0 0
      %5348 = vmatprep.subr.bf16.mxu0 0
      %5349 = vmatpush1.bf16.msra.mxu0 0
      %5350 = vmatprep.subr.bf16.mxu0 0
      %5351 = vmatpush1.bf16.msra.mxu0 0
      %5352 = vmatprep.subr.bf16.mxu0 0
      %5353 = vmatpush1.bf16.msra.mxu0 0
      %5354 = vmatprep.mubr.bf16.mxu0 0
      %5355 = vmatmul.mubr.bf16.gmra.mrb[0].mxu0 %v565
      %v5356 = vpop.f32.mrb[0].mxu0
      %v5357 = vadd.f32 0.0, %v5356
      %v5358 = vpop.f32.mrb[0].mxu0
      %v5359 = vadd.f32 0.0, %v5358
      %v5360 = vpop.f32.mrb[0].mxu0
      %v5361 = vpop.f32.mrb[0].mxu0
      %5362 = vdwg.mxu0
      %5363 = vmatprep.subr.bf16.mxu0 %v5197
      %5364 = vmatpush1.bf16.msra.mxu0 %v5196
      %5365 = vmatprep.subr.bf16.mxu0 %v5205
      %5366 = vmatpush1.bf16.msra.mxu0 %v5204
      %5367 = vmatprep.subr.bf16.mxu0 %v5213
      %5368 = vmatpush1.bf16.msra.mxu0 %v5212
      %5369 = vmatprep.subr.bf16.mxu0 %v5221
      %5370 = vmatpush1.bf16.msra.mxu0 %v5220
      %5371 = vmatprep.subr.bf16.mxu0 %v5229
      %5372 = vmatpush1.bf16.msra.mxu0 %v5228
      %5373 = vmatprep.subr.bf16.mxu0 %v5237
      %5374 = vmatpush1.bf16.msra.mxu0 %v5236
      %5375 = vmatprep.subr.bf16.mxu0 %v5308
      %5376 = vmatpush1.bf16.msra.mxu0 %v5305
      %5377 = vmatprep.subr.bf16.mxu0 0
      %5378 = vmatpush1.bf16.msra.mxu0 0
      %5379 = vmatprep.subr.bf16.mxu0 0
      %5380 = vmatpush1.bf16.msra.mxu0 0
      %5381 = vmatprep.subr.bf16.mxu0 0
      %5382 = vmatpush1.bf16.msra.mxu0 0
      %5383 = vmatprep.subr.bf16.mxu0 0
      %5384 = vmatpush1.bf16.msra.mxu0 0
      %5385 = vmatprep.subr.bf16.mxu0 0
      %5386 = vmatpush1.bf16.msra.mxu0 0
      %5387 = vmatprep.subr.bf16.mxu0 0
      %5388 = vmatpush1.bf16.msra.mxu0 0
      %5389 = vmatprep.subr.bf16.mxu0 0
      %5390 = vmatpush1.bf16.msra.mxu0 0
      %5391 = vmatprep.subr.bf16.mxu0 0
      %5392 = vmatpush1.bf16.msra.mxu0 0
      %5393 = vmatprep.subr.bf16.mxu0 0
      %5394 = vmatpush1.bf16.msra.mxu0 0
      %5395 = vmatprep.mubr.bf16.mxu0 0
      %5396 = vmatmul.mubr.bf16.gmra.mrb[0].mxu0 %v565
      %v5397 = vpop.f32.mrb[0].mxu0
      %v5398 = vadd.f32 0.0, %v5397
      %v5399 = vpop.f32.mrb[0].mxu0
      %v5400 = vadd.f32 0.0, %v5399
      %v5401 = vpop.f32.mrb[0].mxu0
      %v5402 = vpop.f32.mrb[0].mxu0
      %5403 = vdwg.mxu0
      %5404 = vmatprep.subr.bf16.mxu0 %v5199
      %5405 = vmatpush1.bf16.msra.mxu0 %v5198
      %5406 = vmatprep.subr.bf16.mxu0 %v5207
      %5407 = vmatpush1.bf16.msra.mxu0 %v5206
      %5408 = vmatprep.subr.bf16.mxu0 %v5215
      %5409 = vmatpush1.bf16.msra.mxu0 %v5214
      %5410 = vmatprep.subr.bf16.mxu0 %v5223
      %5411 = vmatpush1.bf16.msra.mxu0 %v5222
      %5412 = vmatprep.subr.bf16.mxu0 %v5231
      %5413 = vmatpush1.bf16.msra.mxu0 %v5230
      %5414 = vmatprep.subr.bf16.mxu0 %v5239
      %5415 = vmatpush1.bf16.msra.mxu0 %v5238
      %5416 = vmatprep.subr.bf16.mxu0 %v5314
      %5417 = vmatpush1.bf16.msra.mxu0 %v5311
      %5418 = vmatprep.subr.bf16.mxu0 0
      %5419 = vmatpush1.bf16.msra.mxu0 0
      %5420 = vmatprep.subr.bf16.mxu0 0
      %5421 = vmatpush1.bf16.msra.mxu0 0
      %5422 = vmatprep.subr.bf16.mxu0 0
      %5423 = vmatpush1.bf16.msra.mxu0 0
      %5424 = vmatprep.subr.bf16.mxu0 0
      %5425 = vmatpush1.bf16.msra.mxu0 0
      %5426 = vmatprep.subr.bf16.mxu0 0
      %5427 = vmatpush1.bf16.msra.mxu0 0
      %5428 = vmatprep.subr.bf16.mxu0 0
      %5429 = vmatpush1.bf16.msra.mxu0 0
      %5430 = vmatprep.subr.bf16.mxu0 0
      %5431 = vmatpush1.bf16.msra.mxu0 0
      %5432 = vmatprep.subr.bf16.mxu0 0
      %5433 = vmatpush1.bf16.msra.mxu0 0
      %5434 = vmatprep.subr.bf16.mxu0 0
      %5435 = vmatpush1.bf16.msra.mxu0 0
      %5436 = vmatprep.mubr.bf16.mxu0 0
      %5437 = vmatmul.mubr.bf16.gmra.mrb[0].mxu0 %v565
      %v5438 = vpop.f32.mrb[0].mxu0
      %v5439 = vadd.f32 0.0, %v5438
      %v5440 = vpop.f32.mrb[0].mxu0
      %v5441 = vadd.f32 0.0, %v5440
      %v5442 = vpop.f32.mrb[0].mxu0
      %v5443 = vpop.f32.mrb[0].mxu0
      %5444 = vdwg.mxu0
      %5445 = vmatprep.subr.bf16.mxu0 %v5201
      %5446 = vmatpush1.bf16.msra.mxu0 %v5200
      %5447 = vmatprep.subr.bf16.mxu0 %v5209
      %5448 = vmatpush1.bf16.msra.mxu0 %v5208
      %5449 = vmatprep.subr.bf16.mxu0 %v5217
      %5450 = vmatpush1.bf16.msra.mxu0 %v5216
      %5451 = vmatprep.subr.bf16.mxu0 %v5225
      %5452 = vmatpush1.bf16.msra.mxu0 %v5224
      %5453 = vmatprep.subr.bf16.mxu0 %v5233
      %5454 = vmatpush1.bf16.msra.mxu0 %v5232
      %5455 = vmatprep.subr.bf16.mxu0 %v5241
      %5456 = vmatpush1.bf16.msra.mxu0 %v5240
      %5457 = vmatprep.subr.bf16.mxu0 %v5320
      %5458 = vmatpush1.bf16.msra.mxu0 %v5317
      %5459 = vmatprep.subr.bf16.mxu0 0
      %5460 = vmatpush1.bf16.msra.mxu0 0
      %5461 = vmatprep.subr.bf16.mxu0 0
      %5462 = vmatpush1.bf16.msra.mxu0 0
      %5463 = vmatprep.subr.bf16.mxu0 0
      %5464 = vmatpush1.bf16.msra.mxu0 0
      %5465 = vmatprep.subr.bf16.mxu0 0
      %5466 = vmatpush1.bf16.msra.mxu0 0
      %5467 = vmatprep.subr.bf16.mxu0 0
      %5468 = vmatpush1.bf16.msra.mxu0 0
      %5469 = vmatprep.subr.bf16.mxu0 0
      %5470 = vmatpush1.bf16.msra.mxu0 0
      %5471 = vmatprep.subr.bf16.mxu0 0
      %5472 = vmatpush1.bf16.msra.mxu0 0
      %5473 = vmatprep.subr.bf16.mxu0 0
      %5474 = vmatpush1.bf16.msra.mxu0 0
      %5475 = vmatprep.subr.bf16.mxu0 0
      %5476 = vmatpush1.bf16.msra.mxu0 0
      %5477 = vmatprep.mubr.bf16.mxu0 0
      %5478 = vmatmul.mubr.bf16.gmra.mrb[0].mxu0 %v565
      %v5479 = vpop.f32.mrb[0].mxu0
      %v5480 = vadd.f32 0.0, %v5479
      %v5481 = vpop.f32.mrb[0].mxu0
      %v5482 = vadd.f32 0.0, %v5481
      %v5483 = vpop.f32.mrb[0].mxu0
      %v5484 = vpop.f32.mrb[0].mxu0
      %5485 = vdwg.mxu0
      %v5542 = vunpack.c.l.b16 %v4914
      %v5543 = vunpack.c.h.b16 %v4914
      %v5544 = vunpack.c.l.b16 %v4915
      %v5545 = vunpack.c.h.b16 %v4915
      %v5546 = vunpack.c.l.b16 %v4916
      %v5547 = vunpack.c.h.b16 %v4916
      %v5548 = vunpack.c.l.b16 %v4917
      %v5549 = vunpack.c.h.b16 %v4917
      %v5550 = vunpack.c.l.b16 %v4918
      %v5551 = vunpack.c.h.b16 %v4918
      %v5552 = vunpack.c.l.b16 %v4919
      %v5553 = vunpack.c.h.b16 %v4919
      %v5554 = vunpack.c.l.b16 %v4920
      %v5555 = vunpack.c.h.b16 %v4920
      %v5556 = vunpack.c.l.b16 %v4921
      %v5557 = vunpack.c.h.b16 %v4921
      %v5558 = vunpack.c.l.b16 %v4922
      %v5559 = vunpack.c.h.b16 %v4922
      %v5560 = vunpack.c.l.b16 %v4923
      %v5561 = vunpack.c.h.b16 %v4923
      %v5562 = vunpack.c.l.b16 %v4924
      %v5563 = vunpack.c.h.b16 %v4924
      %v5564 = vunpack.c.l.b16 %v4925
      %v5565 = vunpack.c.h.b16 %v4925
      %v5566 = vunpack.c.l.b16 %v4926
      %v5567 = vunpack.c.h.b16 %v4926
      %v5568 = vunpack.c.l.b16 %v4927
      %v5569 = vunpack.c.h.b16 %v4927
      %v5570 = vunpack.c.l.b16 %v4928
      %v5571 = vunpack.c.h.b16 %v4928
      %v5572 = vunpack.c.l.b16 %v4929
      %v5573 = vunpack.c.h.b16 %v4929
      %v5574 = vunpack.c.l.b16 %v4930
      %v5575 = vunpack.c.h.b16 %v4930
      %v5576 = vunpack.c.l.b16 %v4931
      %v5577 = vunpack.c.h.b16 %v4931
      %v5578 = vunpack.c.l.b16 %v4932
      %v5579 = vunpack.c.h.b16 %v4932
      %v5580 = vunpack.c.l.b16 %v4933
      %v5581 = vunpack.c.h.b16 %v4933
      %v5582 = vunpack.c.l.b16 %v4934
      %v5583 = vunpack.c.h.b16 %v4934
      %v5584 = vunpack.c.l.b16 %v4935
      %v5585 = vunpack.c.h.b16 %v4935
      %v5586 = vunpack.c.l.b16 %v4936
      %v5587 = vunpack.c.h.b16 %v4936
      %v5588 = vunpack.c.l.b16 %v4937
      %v5589 = vunpack.c.h.b16 %v4937
      %v5590 = vunpack.c.l.b16 %v4938
      %v5591 = vunpack.c.h.b16 %v4938
      %v5592 = vunpack.c.l.b16 %v4939
      %v5593 = vunpack.c.h.b16 %v4939
      %v5594 = vunpack.c.l.b16 %v4940
      %v5595 = vunpack.c.h.b16 %v4940
      %v5596 = vunpack.c.l.b16 %v4941
      %v5597 = vunpack.c.h.b16 %v4941
      %v5598 = vunpack.c.l.b16 %v4942
      %v5599 = vunpack.c.h.b16 %v4942
      %v5600 = vunpack.c.l.b16 %v4943
      %v5601 = vunpack.c.h.b16 %v4943
      %v5602 = vunpack.c.l.b16 %v4944
      %v5603 = vunpack.c.h.b16 %v4944
      %v5604 = vunpack.c.l.b16 %v4945
      %v5605 = vunpack.c.h.b16 %v4945
      %v5606 = vunpack.c.l.b16 %v4946
      %v5607 = vunpack.c.h.b16 %v4946
      %v5608 = vunpack.c.l.b16 %v4947
      %v5609 = vunpack.c.h.b16 %v4947
      %v5610 = vunpack.c.l.b16 %v4948
      %v5611 = vunpack.c.h.b16 %v4948
      %v5612 = vunpack.c.l.b16 %v4949
      %v5613 = vunpack.c.h.b16 %v4949
      %v5614 = vunpack.c.l.b16 %v4950
      %v5615 = vunpack.c.h.b16 %v4950
      %v5616 = vunpack.c.l.b16 %v4951
      %v5617 = vunpack.c.h.b16 %v4951
      %v5618 = vunpack.c.l.b16 %v4952
      %v5619 = vunpack.c.h.b16 %v4952
      %v5620 = vunpack.c.l.b16 %v4953
      %v5621 = vunpack.c.h.b16 %v4953
      %v5622 = vunpack.c.l.b16 %v4954
      %v5623 = vunpack.c.h.b16 %v4954
      %v5624 = vunpack.c.l.b16 %v4955
      %v5625 = vunpack.c.h.b16 %v4955
      %v5626 = vunpack.c.l.b16 %v4956
      %v5627 = vunpack.c.h.b16 %v4956
      %v5628 = vunpack.c.l.b16 %v4957
      %v5629 = vunpack.c.h.b16 %v4957
      %v5630 = vunpack.c.l.b16 %v4958
      %v5631 = vunpack.c.h.b16 %v4958
      %v5632 = vunpack.c.l.b16 %v4959
      %v5633 = vunpack.c.h.b16 %v4959
      %v5634 = vunpack.c.l.b16 %v4960
      %v5635 = vunpack.c.h.b16 %v4960
      %v5636 = vunpack.c.l.b16 %v4961
      %v5637 = vunpack.c.h.b16 %v4961
      %v5638 = vunpack.c.l.b16 %v4962
      %v5639 = vunpack.c.h.b16 %v4962
      %v5640 = vunpack.c.l.b16 %v4963
      %v5641 = vunpack.c.h.b16 %v4963
      %v5642 = vunpack.c.l.b16 %v4964
      %v5643 = vunpack.c.h.b16 %v4964
      %v5644 = vunpack.c.l.b16 %v4965
      %v5645 = vunpack.c.h.b16 %v4965
      %v5646 = vunpack.c.l.b16 %v4966
      %v5647 = vunpack.c.h.b16 %v4966
      %v5648 = vunpack.c.l.b16 %v4967
      %v5649 = vunpack.c.h.b16 %v4967
      %v5650 = vunpack.c.l.b16 %v4968
      %v5651 = vunpack.c.h.b16 %v4968
      %v5652 = vunpack.c.l.b16 %v4969
      %v5653 = vunpack.c.h.b16 %v4969
      %v5654 = vpack.c.b16 %v5550, %v5542
      %v5655 = vpack.c.b16 %v5551, %v5543
      %v5656 = vpack.c.b16 %v5552, %v5544
      %v5657 = vpack.c.b16 %v5553, %v5545
      %v5658 = vpack.c.b16 %v5554, %v5546
      %v5659 = vpack.c.b16 %v5555, %v5547
      %v5660 = vpack.c.b16 %v5556, %v5548
      %v5661 = vpack.c.b16 %v5557, %v5549
      %v5662 = vpack.c.b16 %v5566, %v5558
      %v5663 = vpack.c.b16 %v5567, %v5559
      %v5664 = vpack.c.b16 %v5568, %v5560
      %v5665 = vpack.c.b16 %v5569, %v5561
      %v5666 = vpack.c.b16 %v5570, %v5562
      %v5667 = vpack.c.b16 %v5571, %v5563
      %v5668 = vpack.c.b16 %v5572, %v5564
      %v5669 = vpack.c.b16 %v5573, %v5565
      %v5670 = vpack.c.b16 %v5582, %v5574
      %v5671 = vpack.c.b16 %v5583, %v5575
      %v5672 = vpack.c.b16 %v5584, %v5576
      %v5673 = vpack.c.b16 %v5585, %v5577
      %v5674 = vpack.c.b16 %v5586, %v5578
      %v5675 = vpack.c.b16 %v5587, %v5579
      %v5676 = vpack.c.b16 %v5588, %v5580
      %v5677 = vpack.c.b16 %v5589, %v5581
      %v5678 = vpack.c.b16 %v5598, %v5590
      %v5679 = vpack.c.b16 %v5599, %v5591
      %v5680 = vpack.c.b16 %v5600, %v5592
      %v5681 = vpack.c.b16 %v5601, %v5593
      %v5682 = vpack.c.b16 %v5602, %v5594
      %v5683 = vpack.c.b16 %v5603, %v5595
      %v5684 = vpack.c.b16 %v5604, %v5596
      %v5685 = vpack.c.b16 %v5605, %v5597
      %v5686 = vpack.c.b16 %v5614, %v5606
      %v5687 = vpack.c.b16 %v5615, %v5607
      %v5688 = vpack.c.b16 %v5616, %v5608
      %v5689 = vpack.c.b16 %v5617, %v5609
      %v5690 = vpack.c.b16 %v5618, %v5610
      %v5691 = vpack.c.b16 %v5619, %v5611
      %v5692 = vpack.c.b16 %v5620, %v5612
      %v5693 = vpack.c.b16 %v5621, %v5613
      %v5694 = vpack.c.b16 %v5630, %v5622
      %v5695 = vpack.c.b16 %v5631, %v5623
      %v5696 = vpack.c.b16 %v5632, %v5624
      %v5697 = vpack.c.b16 %v5633, %v5625
      %v5698 = vpack.c.b16 %v5634, %v5626
      %v5699 = vpack.c.b16 %v5635, %v5627
      %v5700 = vpack.c.b16 %v5636, %v5628
      %v5701 = vpack.c.b16 %v5637, %v5629
      %v5702 = vpack.c.b16 %v5646, %v5638
      %v5703 = vpack.c.b16 %v5647, %v5639
      %v5704 = vpack.c.b16 %v5648, %v5640
      %v5705 = vpack.c.b16 %v5649, %v5641
      %v5706 = vpack.c.b16 %v5650, %v5642
      %v5707 = vpack.c.b16 %v5651, %v5643
      %v5708 = vpack.c.b16 %v5652, %v5644
      %v5709 = vpack.c.b16 %v5653, %v5645
      %v5759 = vsel %vm567, %v5702, 0
      %v5762 = vsel %vm567, %v5703, 0
      %v5765 = vsel %vm567, %v5704, 0
      %v5768 = vsel %vm567, %v5705, 0
      %v5771 = vsel %vm567, %v5706, 0
      %v5774 = vsel %vm567, %v5707, 0
      %v5777 = vsel %vm567, %v5708, 0
      %v5780 = vsel %vm567, %v5709, 0
      %5782 = vmatprep.subr.bf16.mxu0 %v5655
      %5783 = vmatpush1.bf16.msra.mxu0 %v5654
      %5784 = vmatprep.subr.bf16.mxu0 %v5663
      %5785 = vmatpush1.bf16.msra.mxu0 %v5662
      %5786 = vmatprep.subr.bf16.mxu0 %v5671
      %5787 = vmatpush1.bf16.msra.mxu0 %v5670
      %5788 = vmatprep.subr.bf16.mxu0 %v5679
      %5789 = vmatpush1.bf16.msra.mxu0 %v5678
      %5790 = vmatprep.subr.bf16.mxu0 %v5687
      %5791 = vmatpush1.bf16.msra.mxu0 %v5686
      %5792 = vmatprep.subr.bf16.mxu0 %v5695
      %5793 = vmatpush1.bf16.msra.mxu0 %v5694
      %5794 = vmatprep.subr.bf16.mxu0 %v5762
      %5795 = vmatpush1.bf16.msra.mxu0 %v5759
      %5796 = vmatprep.subr.bf16.mxu0 0
      %5797 = vmatpush1.bf16.msra.mxu0 0
      %5798 = vmatprep.subr.bf16.mxu0 0
      %5799 = vmatpush1.bf16.msra.mxu0 0
      %5800 = vmatprep.subr.bf16.mxu0 0
      %5801 = vmatpush1.bf16.msra.mxu0 0
      %5802 = vmatprep.subr.bf16.mxu0 0
      %5803 = vmatpush1.bf16.msra.mxu0 0
      %5804 = vmatprep.subr.bf16.mxu0 0
      %5805 = vmatpush1.bf16.msra.mxu0 0
      %5806 = vmatprep.subr.bf16.mxu0 0
      %5807 = vmatpush1.bf16.msra.mxu0 0
      %5808 = vmatprep.subr.bf16.mxu0 0
      %5809 = vmatpush1.bf16.msra.mxu0 0
      %5810 = vmatprep.subr.bf16.mxu0 0
      %5811 = vmatpush1.bf16.msra.mxu0 0
      %5812 = vmatprep.subr.bf16.mxu0 0
      %5813 = vmatpush1.bf16.msra.mxu0 0
      %5814 = vmatprep.mubr.bf16.mxu0 0
      %5815 = vmatmul.mubr.bf16.gmra.mrb[0].mxu0 %v1029
      %v5816 = vpop.f32.mrb[0].mxu0
      %v5817 = vadd.f32 %v5357, %v5816
      %v5818 = vpop.f32.mrb[0].mxu0
      %v5819 = vadd.f32 %v5359, %v5818
      %v5820 = vpop.f32.mrb[0].mxu0
      %v5821 = vpop.f32.mrb[0].mxu0
      %5822 = vdwg.mxu0
      %5823 = vmatprep.subr.bf16.mxu0 %v5657
      %5824 = vmatpush1.bf16.msra.mxu0 %v5656
      %5825 = vmatprep.subr.bf16.mxu0 %v5665
      %5826 = vmatpush1.bf16.msra.mxu0 %v5664
      %5827 = vmatprep.subr.bf16.mxu0 %v5673
      %5828 = vmatpush1.bf16.msra.mxu0 %v5672
      %5829 = vmatprep.subr.bf16.mxu0 %v5681
      %5830 = vmatpush1.bf16.msra.mxu0 %v5680
      %5831 = vmatprep.subr.bf16.mxu0 %v5689
      %5832 = vmatpush1.bf16.msra.mxu0 %v5688
      %5833 = vmatprep.subr.bf16.mxu0 %v5697
      %5834 = vmatpush1.bf16.msra.mxu0 %v5696
      %5835 = vmatprep.subr.bf16.mxu0 %v5768
      %5836 = vmatpush1.bf16.msra.mxu0 %v5765
      %5837 = vmatprep.subr.bf16.mxu0 0
      %5838 = vmatpush1.bf16.msra.mxu0 0
      %5839 = vmatprep.subr.bf16.mxu0 0
      %5840 = vmatpush1.bf16.msra.mxu0 0
      %5841 = vmatprep.subr.bf16.mxu0 0
      %5842 = vmatpush1.bf16.msra.mxu0 0
      %5843 = vmatprep.subr.bf16.mxu0 0
      %5844 = vmatpush1.bf16.msra.mxu0 0
      %5845 = vmatprep.subr.bf16.mxu0 0
      %5846 = vmatpush1.bf16.msra.mxu0 0
      %5847 = vmatprep.subr.bf16.mxu0 0
      %5848 = vmatpush1.bf16.msra.mxu0 0
      %5849 = vmatprep.subr.bf16.mxu0 0
      %5850 = vmatpush1.bf16.msra.mxu0 0
      %5851 = vmatprep.subr.bf16.mxu0 0
      %5852 = vmatpush1.bf16.msra.mxu0 0
      %5853 = vmatprep.subr.bf16.mxu0 0
      %5854 = vmatpush1.bf16.msra.mxu0 0
      %5855 = vmatprep.mubr.bf16.mxu0 0
      %5856 = vmatmul.mubr.bf16.gmra.mrb[0].mxu0 %v1029
      %v5857 = vpop.f32.mrb[0].mxu0
      %v5858 = vadd.f32 %v5398, %v5857
      %v5859 = vpop.f32.mrb[0].mxu0
      %v5860 = vadd.f32 %v5400, %v5859
      %v5861 = vpop.f32.mrb[0].mxu0
      %v5862 = vpop.f32.mrb[0].mxu0
      %5863 = vdwg.mxu0
      %5864 = vmatprep.subr.bf16.mxu0 %v5659
      %5865 = vmatpush1.bf16.msra.mxu0 %v5658
      %5866 = vmatprep.subr.bf16.mxu0 %v5667
      %5867 = vmatpush1.bf16.msra.mxu0 %v5666
      %5868 = vmatprep.subr.bf16.mxu0 %v5675
      %5869 = vmatpush1.bf16.msra.mxu0 %v5674
      %5870 = vmatprep.subr.bf16.mxu0 %v5683
      %5871 = vmatpush1.bf16.msra.mxu0 %v5682
      %5872 = vmatprep.subr.bf16.mxu0 %v5691
      %5873 = vmatpush1.bf16.msra.mxu0 %v5690
      %5874 = vmatprep.subr.bf16.mxu0 %v5699
      %5875 = vmatpush1.bf16.msra.mxu0 %v5698
      %5876 = vmatprep.subr.bf16.mxu0 %v5774
      %5877 = vmatpush1.bf16.msra.mxu0 %v5771
      %5878 = vmatprep.subr.bf16.mxu0 0
      %5879 = vmatpush1.bf16.msra.mxu0 0
      %5880 = vmatprep.subr.bf16.mxu0 0
      %5881 = vmatpush1.bf16.msra.mxu0 0
      %5882 = vmatprep.subr.bf16.mxu0 0
      %5883 = vmatpush1.bf16.msra.mxu0 0
      %5884 = vmatprep.subr.bf16.mxu0 0
      %5885 = vmatpush1.bf16.msra.mxu0 0
      %5886 = vmatprep.subr.bf16.mxu0 0
      %5887 = vmatpush1.bf16.msra.mxu0 0
      %5888 = vmatprep.subr.bf16.mxu0 0
      %5889 = vmatpush1.bf16.msra.mxu0 0
      %5890 = vmatprep.subr.bf16.mxu0 0
      %5891 = vmatpush1.bf16.msra.mxu0 0
      %5892 = vmatprep.subr.bf16.mxu0 0
      %5893 = vmatpush1.bf16.msra.mxu0 0
      %5894 = vmatprep.subr.bf16.mxu0 0
      %5895 = vmatpush1.bf16.msra.mxu0 0
      %5896 = vmatprep.mubr.bf16.mxu0 0
      %5897 = vmatmul.mubr.bf16.gmra.mrb[0].mxu0 %v1029
      %v5898 = vpop.f32.mrb[0].mxu0
      %v5899 = vadd.f32 %v5439, %v5898
      %v5900 = vpop.f32.mrb[0].mxu0
      %v5901 = vadd.f32 %v5441, %v5900
      %v5902 = vpop.f32.mrb[0].mxu0
      %v5903 = vpop.f32.mrb[0].mxu0
      %5904 = vdwg.mxu0
      %5905 = vmatprep.subr.bf16.mxu0 %v5661
      %5906 = vmatpush1.bf16.msra.mxu0 %v5660
      %5907 = vmatprep.subr.bf16.mxu0 %v5669
      %5908 = vmatpush1.bf16.msra.mxu0 %v5668
      %5909 = vmatprep.subr.bf16.mxu0 %v5677
      %5910 = vmatpush1.bf16.msra.mxu0 %v5676
      %5911 = vmatprep.subr.bf16.mxu0 %v5685
      %5912 = vmatpush1.bf16.msra.mxu0 %v5684
      %5913 = vmatprep.subr.bf16.mxu0 %v5693
      %5914 = vmatpush1.bf16.msra.mxu0 %v5692
      %5915 = vmatprep.subr.bf16.mxu0 %v5701
      %5916 = vmatpush1.bf16.msra.mxu0 %v5700
      %5917 = vmatprep.subr.bf16.mxu0 %v5780
      %5918 = vmatpush1.bf16.msra.mxu0 %v5777
      %5919 = vmatprep.subr.bf16.mxu0 0
      %5920 = vmatpush1.bf16.msra.mxu0 0
      %5921 = vmatprep.subr.bf16.mxu0 0
      %5922 = vmatpush1.bf16.msra.mxu0 0
      %5923 = vmatprep.subr.bf16.mxu0 0
      %5924 = vmatpush1.bf16.msra.mxu0 0
      %5925 = vmatprep.subr.bf16.mxu0 0
      %5926 = vmatpush1.bf16.msra.mxu0 0
      %5927 = vmatprep.subr.bf16.mxu0 0
      %5928 = vmatpush1.bf16.msra.mxu0 0
      %5929 = vmatprep.subr.bf16.mxu0 0
      %5930 = vmatpush1.bf16.msra.mxu0 0
      %5931 = vmatprep.subr.bf16.mxu0 0
      %5932 = vmatpush1.bf16.msra.mxu0 0
      %5933 = vmatprep.subr.bf16.mxu0 0
      %5934 = vmatpush1.bf16.msra.mxu0 0
      %5935 = vmatprep.subr.bf16.mxu0 0
      %5936 = vmatpush1.bf16.msra.mxu0 0
      %5937 = vmatprep.mubr.bf16.mxu0 0
      %5938 = vmatmul.mubr.bf16.gmra.mrb[0].mxu0 %v1029
      %v5939 = vpop.f32.mrb[0].mxu0
      %v5940 = vadd.f32 %v5480, %v5939
      %v5941 = vpop.f32.mrb[0].mxu0
      %v5942 = vadd.f32 %v5482, %v5941
      %v5943 = vpop.f32.mrb[0].mxu0
      %v5944 = vpop.f32.mrb[0].mxu0
      %5945 = vdwg.mxu0
      %s5946 = scalar_lea.vmem %s165, 2240
      %v5947 = vld [vmem:[%s5946] sm:$0xff]
      %v5948 = vld [vmem:[%s5946 + $0x8] sm:$0xff]
      %v5949 = vld [vmem:[%s5946 + $0x10] sm:$0xff]
      %v5950 = vld [vmem:[%s5946 + $0x18] sm:$0xff]
      %v5951 = vld [vmem:[%s5946 + $0x20] sm:$0xff]
      %v5952 = vld [vmem:[%s5946 + $0x28] sm:$0xff]
      %v5953 = vld [vmem:[%s5946 + $0x30] sm:$0xff]
      %v5954 = vld [vmem:[%s5946 + $0x38] sm:$0xff]
      %v5955 = vld [vmem:[%s5946 + $0x40] sm:$0xff]
      %v5956 = vld [vmem:[%s5946 + $0x48] sm:$0xff]
      %v5957 = vld [vmem:[%s5946 + $0x50] sm:$0xff]
      %v5958 = vld [vmem:[%s5946 + $0x58] sm:$0xff]
      %v5959 = vld [vmem:[%s5946 + $0x60] sm:$0xff]
      %v5960 = vld [vmem:[%s5946 + $0x68] sm:$0xff]
      %v5961 = vld [vmem:[%s5946 + $0x70] sm:$0xff]
      %v5962 = vld [vmem:[%s5946 + $0x78] sm:$0xff]
      %v5963 = vld [vmem:[%s5946 + $0x80] sm:$0xff]
      %v5964 = vld [vmem:[%s5946 + $0x88] sm:$0xff]
      %v5965 = vld [vmem:[%s5946 + $0x90] sm:$0xff]
      %v5966 = vld [vmem:[%s5946 + $0x98] sm:$0xff]
      %v5967 = vld [vmem:[%s5946 + $0xa0] sm:$0xff]
      %v5968 = vld [vmem:[%s5946 + $0xa8] sm:$0xff]
      %v5969 = vld [vmem:[%s5946 + $0xb0] sm:$0xff]
      %v5970 = vld [vmem:[%s5946 + $0xb8] sm:$0xff]
      %v5971 = vld [vmem:[%s5946 + $0xc0] sm:$0xff]
      %v5972 = vld [vmem:[%s5946 + $0xc8] sm:$0xff]
      %v5973 = vld [vmem:[%s5946 + $0xd0] sm:$0xff]
      %v5974 = vld [vmem:[%s5946 + $0xd8] sm:$0xff]
      %v5975 = vld [vmem:[%s5946 + $0xe0] sm:$0xff]
      %v5976 = vld [vmem:[%s5946 + $0xe8] sm:$0xff]
      %v5977 = vld [vmem:[%s5946 + $0xf0] sm:$0xff]
      %v5978 = vld [vmem:[%s5946 + $0xf8] sm:$0xff]
      %v5979 = vld [vmem:[%s5946 + $0x100] sm:$0xff]
      %v5980 = vld [vmem:[%s5946 + $0x108] sm:$0xff]
      %v5981 = vld [vmem:[%s5946 + $0x110] sm:$0xff]
      %v5982 = vld [vmem:[%s5946 + $0x118] sm:$0xff]
      %v5983 = vld [vmem:[%s5946 + $0x120] sm:$0xff]
      %v5984 = vld [vmem:[%s5946 + $0x128] sm:$0xff]
      %v5985 = vld [vmem:[%s5946 + $0x130] sm:$0xff]
      %v5986 = vld [vmem:[%s5946 + $0x138] sm:$0xff]
      %v5987 = vld [vmem:[%s5946 + $0x140] sm:$0xff]
      %v5988 = vld [vmem:[%s5946 + $0x148] sm:$0xff]
      %v5989 = vld [vmem:[%s5946 + $0x150] sm:$0xff]
      %v5990 = vld [vmem:[%s5946 + $0x158] sm:$0xff]
      %v5991 = vld [vmem:[%s5946 + $0x160] sm:$0xff]
      %v5992 = vld [vmem:[%s5946 + $0x168] sm:$0xff]
      %v5993 = vld [vmem:[%s5946 + $0x170] sm:$0xff]
      %v5994 = vld [vmem:[%s5946 + $0x178] sm:$0xff]
      %v5995 = vld [vmem:[%s5946 + $0x180] sm:$0xff]
      %v5996 = vld [vmem:[%s5946 + $0x188] sm:$0xff]
      %v5997 = vld [vmem:[%s5946 + $0x190] sm:$0xff]
      %v5998 = vld [vmem:[%s5946 + $0x198] sm:$0xff]
      %v5999 = vld [vmem:[%s5946 + $0x1a0] sm:$0x33]
      %v6000 = vld [vmem:[%s5946 + $0x1a8] sm:$0x33]
      %v6001 = vld [vmem:[%s5946 + $0x1b0] sm:$0x33]
      %v6002 = vld [vmem:[%s5946 + $0x1b8] sm:$0x33]
      %v6059 = vunpack.c.l.b16 %v5947
      %v6060 = vunpack.c.h.b16 %v5947
      %v6061 = vunpack.c.l.b16 %v5948
      %v6062 = vunpack.c.h.b16 %v5948
      %v6063 = vunpack.c.l.b16 %v5949
      %v6064 = vunpack.c.h.b16 %v5949
      %v6065 = vunpack.c.l.b16 %v5950
      %v6066 = vunpack.c.h.b16 %v5950
      %v6067 = vunpack.c.l.b16 %v5951
      %v6068 = vunpack.c.h.b16 %v5951
      %v6069 = vunpack.c.l.b16 %v5952
      %v6070 = vunpack.c.h.b16 %v5952
      %v6071 = vunpack.c.l.b16 %v5953
      %v6072 = vunpack.c.h.b16 %v5953
      %v6073 = vunpack.c.l.b16 %v5954
      %v6074 = vunpack.c.h.b16 %v5954
      %v6075 = vunpack.c.l.b16 %v5955
      %v6076 = vunpack.c.h.b16 %v5955
      %v6077 = vunpack.c.l.b16 %v5956
      %v6078 = vunpack.c.h.b16 %v5956
      %v6079 = vunpack.c.l.b16 %v5957
      %v6080 = vunpack.c.h.b16 %v5957
      %v6081 = vunpack.c.l.b16 %v5958
      %v6082 = vunpack.c.h.b16 %v5958
      %v6083 = vunpack.c.l.b16 %v5959
      %v6084 = vunpack.c.h.b16 %v5959
      %v6085 = vunpack.c.l.b16 %v5960
      %v6086 = vunpack.c.h.b16 %v5960
      %v6087 = vunpack.c.l.b16 %v5961
      %v6088 = vunpack.c.h.b16 %v5961
      %v6089 = vunpack.c.l.b16 %v5962
      %v6090 = vunpack.c.h.b16 %v5962
      %v6091 = vunpack.c.l.b16 %v5963
      %v6092 = vunpack.c.h.b16 %v5963
      %v6093 = vunpack.c.l.b16 %v5964
      %v6094 = vunpack.c.h.b16 %v5964
      %v6095 = vunpack.c.l.b16 %v5965
      %v6096 = vunpack.c.h.b16 %v5965
      %v6097 = vunpack.c.l.b16 %v5966
      %v6098 = vunpack.c.h.b16 %v5966
      %v6099 = vunpack.c.l.b16 %v5967
      %v6100 = vunpack.c.h.b16 %v5967
      %v6101 = vunpack.c.l.b16 %v5968
      %v6102 = vunpack.c.h.b16 %v5968
      %v6103 = vunpack.c.l.b16 %v5969
      %v6104 = vunpack.c.h.b16 %v5969
      %v6105 = vunpack.c.l.b16 %v5970
      %v6106 = vunpack.c.h.b16 %v5970
      %v6107 = vunpack.c.l.b16 %v5971
      %v6108 = vunpack.c.h.b16 %v5971
      %v6109 = vunpack.c.l.b16 %v5972
      %v6110 = vunpack.c.h.b16 %v5972
      %v6111 = vunpack.c.l.b16 %v5973
      %v6112 = vunpack.c.h.b16 %v5973
      %v6113 = vunpack.c.l.b16 %v5974
      %v6114 = vunpack.c.h.b16 %v5974
      %v6115 = vunpack.c.l.b16 %v5975
      %v6116 = vunpack.c.h.b16 %v5975
      %v6117 = vunpack.c.l.b16 %v5976
      %v6118 = vunpack.c.h.b16 %v5976
      %v6119 = vunpack.c.l.b16 %v5977
      %v6120 = vunpack.c.h.b16 %v5977
      %v6121 = vunpack.c.l.b16 %v5978
      %v6122 = vunpack.c.h.b16 %v5978
      %v6123 = vunpack.c.l.b16 %v5979
      %v6124 = vunpack.c.h.b16 %v5979
      %v6125 = vunpack.c.l.b16 %v5980
      %v6126 = vunpack.c.h.b16 %v5980
      %v6127 = vunpack.c.l.b16 %v5981
      %v6128 = vunpack.c.h.b16 %v5981
      %v6129 = vunpack.c.l.b16 %v5982
      %v6130 = vunpack.c.h.b16 %v5982
      %v6131 = vunpack.c.l.b16 %v5983
      %v6132 = vunpack.c.h.b16 %v5983
      %v6133 = vunpack.c.l.b16 %v5984
      %v6134 = vunpack.c.h.b16 %v5984
      %v6135 = vunpack.c.l.b16 %v5985
      %v6136 = vunpack.c.h.b16 %v5985
      %v6137 = vunpack.c.l.b16 %v5986
      %v6138 = vunpack.c.h.b16 %v5986
      %v6139 = vunpack.c.l.b16 %v5987
      %v6140 = vunpack.c.h.b16 %v5987
      %v6141 = vunpack.c.l.b16 %v5988
      %v6142 = vunpack.c.h.b16 %v5988
      %v6143 = vunpack.c.l.b16 %v5989
      %v6144 = vunpack.c.h.b16 %v5989
      %v6145 = vunpack.c.l.b16 %v5990
      %v6146 = vunpack.c.h.b16 %v5990
      %v6147 = vunpack.c.l.b16 %v5991
      %v6148 = vunpack.c.h.b16 %v5991
      %v6149 = vunpack.c.l.b16 %v5992
      %v6150 = vunpack.c.h.b16 %v5992
      %v6151 = vunpack.c.l.b16 %v5993
      %v6152 = vunpack.c.h.b16 %v5993
      %v6153 = vunpack.c.l.b16 %v5994
      %v6154 = vunpack.c.h.b16 %v5994
      %v6155 = vunpack.c.l.b16 %v5995
      %v6156 = vunpack.c.h.b16 %v5995
      %v6157 = vunpack.c.l.b16 %v5996
      %v6158 = vunpack.c.h.b16 %v5996
      %v6159 = vunpack.c.l.b16 %v5997
      %v6160 = vunpack.c.h.b16 %v5997
      %v6161 = vunpack.c.l.b16 %v5998
      %v6162 = vunpack.c.h.b16 %v5998
      %v6163 = vunpack.c.l.b16 %v5999
      %v6164 = vunpack.c.h.b16 %v5999
      %v6165 = vunpack.c.l.b16 %v6000
      %v6166 = vunpack.c.h.b16 %v6000
      %v6167 = vunpack.c.l.b16 %v6001
      %v6168 = vunpack.c.h.b16 %v6001
      %v6169 = vunpack.c.l.b16 %v6002
      %v6170 = vunpack.c.h.b16 %v6002
      %v6171 = vpack.c.b16 %v6067, %v6059
      %v6172 = vpack.c.b16 %v6068, %v6060
      %v6173 = vpack.c.b16 %v6069, %v6061
      %v6174 = vpack.c.b16 %v6070, %v6062
      %v6175 = vpack.c.b16 %v6071, %v6063
      %v6176 = vpack.c.b16 %v6072, %v6064
      %v6177 = vpack.c.b16 %v6073, %v6065
      %v6178 = vpack.c.b16 %v6074, %v6066
      %v6179 = vpack.c.b16 %v6083, %v6075
      %v6180 = vpack.c.b16 %v6084, %v6076
      %v6181 = vpack.c.b16 %v6085, %v6077
      %v6182 = vpack.c.b16 %v6086, %v6078
      %v6183 = vpack.c.b16 %v6087, %v6079
      %v6184 = vpack.c.b16 %v6088, %v6080
      %v6185 = vpack.c.b16 %v6089, %v6081
      %v6186 = vpack.c.b16 %v6090, %v6082
      %v6187 = vpack.c.b16 %v6099, %v6091
      %v6188 = vpack.c.b16 %v6100, %v6092
      %v6189 = vpack.c.b16 %v6101, %v6093
      %v6190 = vpack.c.b16 %v6102, %v6094
      %v6191 = vpack.c.b16 %v6103, %v6095
      %v6192 = vpack.c.b16 %v6104, %v6096
      %v6193 = vpack.c.b16 %v6105, %v6097
      %v6194 = vpack.c.b16 %v6106, %v6098
      %v6195 = vpack.c.b16 %v6115, %v6107
      %v6196 = vpack.c.b16 %v6116, %v6108
      %v6197 = vpack.c.b16 %v6117, %v6109
      %v6198 = vpack.c.b16 %v6118, %v6110
      %v6199 = vpack.c.b16 %v6119, %v6111
      %v6200 = vpack.c.b16 %v6120, %v6112
      %v6201 = vpack.c.b16 %v6121, %v6113
      %v6202 = vpack.c.b16 %v6122, %v6114
      %v6203 = vpack.c.b16 %v6131, %v6123
      %v6204 = vpack.c.b16 %v6132, %v6124
      %v6205 = vpack.c.b16 %v6133, %v6125
      %v6206 = vpack.c.b16 %v6134, %v6126
      %v6207 = vpack.c.b16 %v6135, %v6127
      %v6208 = vpack.c.b16 %v6136, %v6128
      %v6209 = vpack.c.b16 %v6137, %v6129
      %v6210 = vpack.c.b16 %v6138, %v6130
      %v6211 = vpack.c.b16 %v6147, %v6139
      %v6212 = vpack.c.b16 %v6148, %v6140
      %v6213 = vpack.c.b16 %v6149, %v6141
      %v6214 = vpack.c.b16 %v6150, %v6142
      %v6215 = vpack.c.b16 %v6151, %v6143
      %v6216 = vpack.c.b16 %v6152, %v6144
      %v6217 = vpack.c.b16 %v6153, %v6145
      %v6218 = vpack.c.b16 %v6154, %v6146
      %v6219 = vpack.c.b16 %v6163, %v6155
      %v6220 = vpack.c.b16 %v6164, %v6156
      %v6221 = vpack.c.b16 %v6165, %v6157
      %v6222 = vpack.c.b16 %v6166, %v6158
      %v6223 = vpack.c.b16 %v6167, %v6159
      %v6224 = vpack.c.b16 %v6168, %v6160
      %v6225 = vpack.c.b16 %v6169, %v6161
      %v6226 = vpack.c.b16 %v6170, %v6162
      %v6276 = vsel %vm567, %v6219, 0
      %v6279 = vsel %vm567, %v6220, 0
      %v6282 = vsel %vm567, %v6221, 0
      %v6285 = vsel %vm567, %v6222, 0
      %v6288 = vsel %vm567, %v6223, 0
      %v6291 = vsel %vm567, %v6224, 0
      %v6294 = vsel %vm567, %v6225, 0
      %v6297 = vsel %vm567, %v6226, 0
      %6299 = vmatprep.subr.bf16.mxu0 %v6172
      %6300 = vmatpush1.bf16.msra.mxu0 %v6171
      %6301 = vmatprep.subr.bf16.mxu0 %v6180
      %6302 = vmatpush1.bf16.msra.mxu0 %v6179
      %6303 = vmatprep.subr.bf16.mxu0 %v6188
      %6304 = vmatpush1.bf16.msra.mxu0 %v6187
      %6305 = vmatprep.subr.bf16.mxu0 %v6196
      %6306 = vmatpush1.bf16.msra.mxu0 %v6195
      %6307 = vmatprep.subr.bf16.mxu0 %v6204
      %6308 = vmatpush1.bf16.msra.mxu0 %v6203
      %6309 = vmatprep.subr.bf16.mxu0 %v6212
      %6310 = vmatpush1.bf16.msra.mxu0 %v6211
      %6311 = vmatprep.subr.bf16.mxu0 %v6279
      %6312 = vmatpush1.bf16.msra.mxu0 %v6276
      %6313 = vmatprep.subr.bf16.mxu0 0
      %6314 = vmatpush1.bf16.msra.mxu0 0
      %6315 = vmatprep.subr.bf16.mxu0 0
      %6316 = vmatpush1.bf16.msra.mxu0 0
      %6317 = vmatprep.subr.bf16.mxu0 0
      %6318 = vmatpush1.bf16.msra.mxu0 0
      %6319 = vmatprep.subr.bf16.mxu0 0
      %6320 = vmatpush1.bf16.msra.mxu0 0
      %6321 = vmatprep.subr.bf16.mxu0 0
      %6322 = vmatpush1.bf16.msra.mxu0 0
      %6323 = vmatprep.subr.bf16.mxu0 0
      %6324 = vmatpush1.bf16.msra.mxu0 0
      %6325 = vmatprep.subr.bf16.mxu0 0
      %6326 = vmatpush1.bf16.msra.mxu0 0
      %6327 = vmatprep.subr.bf16.mxu0 0
      %6328 = vmatpush1.bf16.msra.mxu0 0
      %6329 = vmatprep.subr.bf16.mxu0 0
      %6330 = vmatpush1.bf16.msra.mxu0 0
      %6331 = vmatprep.mubr.bf16.mxu0 0
      %6332 = vmatmul.mubr.bf16.gmra.mrb[0].mxu0 %v1549
      %v6333 = vpop.f32.mrb[0].mxu0
      %v6334 = vadd.f32 0.0, %v6333
      %v6335 = vpop.f32.mrb[0].mxu0
      %v6336 = vadd.f32 0.0, %v6335
      %v6337 = vpop.f32.mrb[0].mxu0
      %v6338 = vpop.f32.mrb[0].mxu0
      %6339 = vdwg.mxu0
      %6340 = vmatprep.subr.bf16.mxu0 %v6174
      %6341 = vmatpush1.bf16.msra.mxu0 %v6173
      %6342 = vmatprep.subr.bf16.mxu0 %v6182
      %6343 = vmatpush1.bf16.msra.mxu0 %v6181
      %6344 = vmatprep.subr.bf16.mxu0 %v6190
      %6345 = vmatpush1.bf16.msra.mxu0 %v6189
      %6346 = vmatprep.subr.bf16.mxu0 %v6198
      %6347 = vmatpush1.bf16.msra.mxu0 %v6197
      %6348 = vmatprep.subr.bf16.mxu0 %v6206
      %6349 = vmatpush1.bf16.msra.mxu0 %v6205
      %6350 = vmatprep.subr.bf16.mxu0 %v6214
      %6351 = vmatpush1.bf16.msra.mxu0 %v6213
      %6352 = vmatprep.subr.bf16.mxu0 %v6285
      %6353 = vmatpush1.bf16.msra.mxu0 %v6282
      %6354 = vmatprep.subr.bf16.mxu0 0
      %6355 = vmatpush1.bf16.msra.mxu0 0
      %6356 = vmatprep.subr.bf16.mxu0 0
      %6357 = vmatpush1.bf16.msra.mxu0 0
      %6358 = vmatprep.subr.bf16.mxu0 0
      %6359 = vmatpush1.bf16.msra.mxu0 0
      %6360 = vmatprep.subr.bf16.mxu0 0
      %6361 = vmatpush1.bf16.msra.mxu0 0
      %6362 = vmatprep.subr.bf16.mxu0 0
      %6363 = vmatpush1.bf16.msra.mxu0 0
      %6364 = vmatprep.subr.bf16.mxu0 0
      %6365 = vmatpush1.bf16.msra.mxu0 0
      %6366 = vmatprep.subr.bf16.mxu0 0
      %6367 = vmatpush1.bf16.msra.mxu0 0
      %6368 = vmatprep.subr.bf16.mxu0 0
      %6369 = vmatpush1.bf16.msra.mxu0 0
      %6370 = vmatprep.subr.bf16.mxu0 0
      %6371 = vmatpush1.bf16.msra.mxu0 0
      %6372 = vmatprep.mubr.bf16.mxu0 0
      %6373 = vmatmul.mubr.bf16.gmra.mrb[0].mxu0 %v1549
      %v6374 = vpop.f32.mrb[0].mxu0
      %v6375 = vadd.f32 0.0, %v6374
      %v6376 = vpop.f32.mrb[0].mxu0
      %v6377 = vadd.f32 0.0, %v6376
      %v6378 = vpop.f32.mrb[0].mxu0
      %v6379 = vpop.f32.mrb[0].mxu0
      %6380 = vdwg.mxu0
      %6381 = vmatprep.subr.bf16.mxu0 %v6176
      %6382 = vmatpush1.bf16.msra.mxu0 %v6175
      %6383 = vmatprep.subr.bf16.mxu0 %v6184
      %6384 = vmatpush1.bf16.msra.mxu0 %v6183
      %6385 = vmatprep.subr.bf16.mxu0 %v6192
      %6386 = vmatpush1.bf16.msra.mxu0 %v6191
      %6387 = vmatprep.subr.bf16.mxu0 %v6200
      %6388 = vmatpush1.bf16.msra.mxu0 %v6199
      %6389 = vmatprep.subr.bf16.mxu0 %v6208
      %6390 = vmatpush1.bf16.msra.mxu0 %v6207
      %6391 = vmatprep.subr.bf16.mxu0 %v6216
      %6392 = vmatpush1.bf16.msra.mxu0 %v6215
      %6393 = vmatprep.subr.bf16.mxu0 %v6291
      %6394 = vmatpush1.bf16.msra.mxu0 %v6288
      %6395 = vmatprep.subr.bf16.mxu0 0
      %6396 = vmatpush1.bf16.msra.mxu0 0
      %6397 = vmatprep.subr.bf16.mxu0 0
      %6398 = vmatpush1.bf16.msra.mxu0 0
      %6399 = vmatprep.subr.bf16.mxu0 0
      %6400 = vmatpush1.bf16.msra.mxu0 0
      %6401 = vmatprep.subr.bf16.mxu0 0
      %6402 = vmatpush1.bf16.msra.mxu0 0
      %6403 = vmatprep.subr.bf16.mxu0 0
      %6404 = vmatpush1.bf16.msra.mxu0 0
      %6405 = vmatprep.subr.bf16.mxu0 0
      %6406 = vmatpush1.bf16.msra.mxu0 0
      %6407 = vmatprep.subr.bf16.mxu0 0
      %6408 = vmatpush1.bf16.msra.mxu0 0
      %6409 = vmatprep.subr.bf16.mxu0 0
      %6410 = vmatpush1.bf16.msra.mxu0 0
      %6411 = vmatprep.subr.bf16.mxu0 0
      %6412 = vmatpush1.bf16.msra.mxu0 0
      %6413 = vmatprep.mubr.bf16.mxu0 0
      %6414 = vmatmul.mubr.bf16.gmra.mrb[0].mxu0 %v1549
      %v6415 = vpop.f32.mrb[0].mxu0
      %v6416 = vadd.f32 0.0, %v6415
      %v6417 = vpop.f32.mrb[0].mxu0
      %v6418 = vadd.f32 0.0, %v6417
      %v6419 = vpop.f32.mrb[0].mxu0
      %v6420 = vpop.f32.mrb[0].mxu0
      %6421 = vdwg.mxu0
      %6422 = vmatprep.subr.bf16.mxu0 %v6178
      %6423 = vmatpush1.bf16.msra.mxu0 %v6177
      %6424 = vmatprep.subr.bf16.mxu0 %v6186
      %6425 = vmatpush1.bf16.msra.mxu0 %v6185
      %6426 = vmatprep.subr.bf16.mxu0 %v6194
      %6427 = vmatpush1.bf16.msra.mxu0 %v6193
      %6428 = vmatprep.subr.bf16.mxu0 %v6202
      %6429 = vmatpush1.bf16.msra.mxu0 %v6201
      %6430 = vmatprep.subr.bf16.mxu0 %v6210
      %6431 = vmatpush1.bf16.msra.mxu0 %v6209
      %6432 = vmatprep.subr.bf16.mxu0 %v6218
      %6433 = vmatpush1.bf16.msra.mxu0 %v6217
      %6434 = vmatprep.subr.bf16.mxu0 %v6297
      %6435 = vmatpush1.bf16.msra.mxu0 %v6294
      %6436 = vmatprep.subr.bf16.mxu0 0
      %6437 = vmatpush1.bf16.msra.mxu0 0
      %6438 = vmatprep.subr.bf16.mxu0 0
      %6439 = vmatpush1.bf16.msra.mxu0 0
      %6440 = vmatprep.subr.bf16.mxu0 0
      %6441 = vmatpush1.bf16.msra.mxu0 0
      %6442 = vmatprep.subr.bf16.mxu0 0
      %6443 = vmatpush1.bf16.msra.mxu0 0
      %6444 = vmatprep.subr.bf16.mxu0 0
      %6445 = vmatpush1.bf16.msra.mxu0 0
      %6446 = vmatprep.subr.bf16.mxu0 0
      %6447 = vmatpush1.bf16.msra.mxu0 0
      %6448 = vmatprep.subr.bf16.mxu0 0
      %6449 = vmatpush1.bf16.msra.mxu0 0
      %6450 = vmatprep.subr.bf16.mxu0 0
      %6451 = vmatpush1.bf16.msra.mxu0 0
      %6452 = vmatprep.subr.bf16.mxu0 0
      %6453 = vmatpush1.bf16.msra.mxu0 0
      %6454 = vmatprep.mubr.bf16.mxu0 0
      %6455 = vmatmul.mubr.bf16.gmra.mrb[0].mxu0 %v1549
      %v6456 = vpop.f32.mrb[0].mxu0
      %v6457 = vadd.f32 0.0, %v6456
      %v6458 = vpop.f32.mrb[0].mxu0
      %v6459 = vadd.f32 0.0, %v6458
      %v6460 = vpop.f32.mrb[0].mxu0
      %v6461 = vpop.f32.mrb[0].mxu0
      %6462 = vdwg.mxu0
      %v6463 = vadd.f32 %v5817, %v6334
      %v6464 = vadd.f32 %v5819, %v6336
      %v6465 = vadd.f32 %v5858, %v6375
      %v6466 = vadd.f32 %v5860, %v6377
      %v6467 = vadd.f32 %v5899, %v6416
      %v6468 = vadd.f32 %v5901, %v6418
      %v6469 = vadd.f32 %v5940, %v6457
      %v6470 = vadd.f32 %v5942, %v6459
      %v6471 = vadd.f32 %v6463, %v1750
      %v6472 = vadd.f32 %v6464, %v1750
      %v6473 = vadd.f32 %v6465, %v1750
      %v6474 = vadd.f32 %v6466, %v1750
      %v6475 = vadd.f32 %v6467, %v1750
      %v6476 = vadd.f32 %v6468, %v1750
      %v6477 = vadd.f32 %v6469, %v1750
      %v6478 = vadd.f32 %v6470, %v1750
      %6479 = vst [vmem:[%s170 + $0xc0] sm:$0xff] %v6471
      %6480 = vst [vmem:[%s170 + $0xc8] sm:$0xff] %v6472
      %6481 = vst [vmem:[%s170 + $0xd0] sm:$0xff] %v6473
      %6482 = vst [vmem:[%s170 + $0xd8] sm:$0xff] %v6474
      %6483 = vst [vmem:[%s170 + $0xe0] sm:$0xff] %v6475
      %6484 = vst [vmem:[%s170 + $0xe8] sm:$0xff] %v6476
      %6485 = vst [vmem:[%s170 + $0xf0] sm:$0xff] %v6477
      %6486 = vst [vmem:[%s170 + $0xf8] sm:$0xff] %v6478
      %p6487 = scmp.lt.s32.totalorder %s14, 1
      %s6488 = scalar_select %p6487, %s14, 1
      %s6489 = smul.addr %s6488, 32
      %s6490 = smul.addr %s6489, 8
      %s6491 = scalar_lea.vmem %s3, %s6490
      // Predicated region
      $region33: #{conv4d_pallas.1} parent=31 // pred_check
        %p6492 = pneg %p100
      $region34: #{conv4d_pallas.1} parent=31 // pred_check_branch
        %6494 = sbr.rel (%p6492) target = $region36
      $region35: #{conv4d_pallas.1} parent=31 // pred_region
        _
      $region36: #{conv4d_pallas.1} parent=31 // pred_fallthru
        _
    $region32: #{conv4d_pallas.1} parent=5 // pred_fallthru
      _
    %p6495 = scmp.le.s32.totalorder 2, %s9
    // Predicated region
    $region37: #{conv4d_pallas.1} parent=5 // pred_check
      %p6496 = pneg %p6495
    $region38: #{conv4d_pallas.1} parent=5 // pred_check_branch
      %6498 = sbr.rel (%p6496) target = $region40
    $region39: #{conv4d_pallas.1} parent=5 // pred_region
      %s6499 = ssub.s32 %s9, 2
      // Predicated region
      $region41: #{conv4d_pallas.1} parent=39 // pred_check
        %p6500 = pneg %p106
      $region42: #{conv4d_pallas.1} parent=39 // pred_check_branch
        %6502 = sbr.rel (%p6500) target = $region44
      $region43: #{conv4d_pallas.1} parent=39 // pred_region
        %p6503 = scmp.lt.s32.totalorder %s15, 1
        %s6504 = scalar_select %p6503, %s15, 1
        %s6505 = smul.addr %s6504, 32
        %s6506 = smul.addr %s6505, 8
        %s6507 = scalar_lea.vmem %s3, %s6506
      $region44: #{conv4d_pallas.1} parent=39 // pred_fallthru
        _
    $region40: #{conv4d_pallas.1} parent=5 // pred_fallthru
      _
  $region6: #{conv4d_pallas.1} parent=0 // loop_footer
    %s13 = sadd.s32 1, %s9
  $region7: #{conv4d_pallas.1} parent=0 // loop_footer_branch
    %8 = sbr.rel target = $region3
  $region8: #{conv4d_pallas.1} parent=0 // loop_exit
    _

</llo_original>
